<compile_context>
chip_gen: v5e
topology: v5e:2x2
jax: 0.10.0
libtpu: 0.0.40
codegen_flags: <defaults>
</compile_context>

<pallas_src>
import functools

import jax
import jax.numpy as jnp
from jax import lax
from jax.experimental import pallas as pl
from jax.experimental.pallas import tpu as pltpu


# ------------------------------ sizing helpers ------------------------------

@functools.lru_cache(maxsize=None)
def _vmem_limit_bytes():
    """Scoped-VMEM cap: ~3/4 of physical VMEM (128 MiB on v5e/v6e, 64 MiB on v7x)."""
    cap = 64 * 1024 * 1024
    try:
        cap = int(getattr(pltpu.get_tpu_info(), "vmem_capacity_bytes", cap))
    except Exception:
        pass
    return int(min(max(cap * 3 // 4, 32 * 1024 * 1024), 100 * 1024 * 1024))


def _pick_row_tile(n, cap):
    """Largest row tile <= cap dividing n, preferring sublane-aligned (x8) tiles."""
    top = min(cap, n)
    for t in range(top - top % 8, 0, -8):
        if n % t == 0:
            return t
    for t in range(top, 0, -1):
        if n % t == 0:
            return t
    return n


def _mosaic(*sem):
    return pltpu.CompilerParams(dimension_semantics=sem,
                                vmem_limit_bytes=_vmem_limit_bytes())


def _erf_f32(x):
    # Abramowitz & Stegun 7.1.26 (|err| ~1.5e-7): matches exact-erf GELU far
    # below the test tolerance; built only from exp/mul/add/where (VPU + EUP).
    a1, a2, a3, a4, a5 = 0.254829592, -0.284496736, 1.421413741, -1.453152027, 1.061405429
    p = 0.3275911
    ax = jnp.abs(x)
    t = 1.0 / (1.0 + p * ax)
    poly = ((((a5 * t + a4) * t + a3) * t + a2) * t + a1) * t
    y = 1.0 - poly * jnp.exp(-ax * ax)
    return jnp.where(x < 0, -y, y)


# ----------------------------- Pallas kernels ------------------------------

def _ln_matmul_kernel(x_ref, lnw_ref, lnb_ref, w_ref, b_ref, o_ref):
    # Fused WithBias LayerNorm (eps=1e-5, biased var) + 1x1 conv (row matmul).
    # LN statistics stay f32; the matmul runs on the MXU in the weight dtype
    # (bf16) with f32 accumulation.  rsqrt goes to the EUP slot.
    x = x_ref[...].astype(jnp.float32)
    mu = jnp.mean(x, axis=-1, keepdims=True)
    xc = x - mu
    var = jnp.mean(xc * xc, axis=-1, keepdims=True)
    y = xc * lax.rsqrt(var + 1e-5) * lnw_ref[...] + lnb_ref[...]
    acc = jnp.dot(y.astype(w_ref.dtype), w_ref[...],
                  preferred_element_type=jnp.float32)
    o_ref[...] = (acc + b_ref[...]).astype(o_ref.dtype)


def ln_pointwise(x2d, ln_w, ln_b, w_ic_oc, bias, tm):
    n, cin = x2d.shape
    cout = w_ic_oc.shape[1]
    return pl.pallas_call(
        _ln_matmul_kernel,
        out_shape=jax.ShapeDtypeStruct((n, cout), x2d.dtype),
        grid=(n // tm,),
        in_specs=[
            pl.BlockSpec((tm, cin), lambda i: (i, 0)),
            pl.BlockSpec((1, cin), lambda i: (0, 0)),
            pl.BlockSpec((1, cin), lambda i: (0, 0)),
            pl.BlockSpec((cin, cout), lambda i: (0, 0)),   # resident bf16 weights
            pl.BlockSpec((1, cout), lambda i: (0, 0)),
        ],
        out_specs=pl.BlockSpec((tm, cout), lambda i: (i, 0)),
        compiler_params=_mosaic("parallel"),
    )(x2d, ln_w.reshape(1, cin), ln_b.reshape(1, cin), w_ic_oc,
      bias.reshape(1, cout))


def _matmul_res_kernel(x_ref, w_ref, b_ref, r_ref, o_ref):
    # 1x1 conv (bf16 MXU matmul, f32 accum) + bias + residual.
    acc = jnp.dot(x_ref[...].astype(w_ref.dtype), w_ref[...],
                  preferred_element_type=jnp.float32)
    o_ref[...] = (acc + b_ref[...] + r_ref[...].astype(jnp.float32)).astype(o_ref.dtype)


def pointwise_residual(x2d, w_ic_oc, bias, res2d, tm):
    n, cin = x2d.shape
    cout = w_ic_oc.shape[1]
    return pl.pallas_call(
        _matmul_res_kernel,
        out_shape=jax.ShapeDtypeStruct((n, cout), res2d.dtype),
        grid=(n // tm,),
        in_specs=[
            pl.BlockSpec((tm, cin), lambda i: (i, 0)),
            pl.BlockSpec((cin, cout), lambda i: (0, 0)),
            pl.BlockSpec((1, cout), lambda i: (0, 0)),
            pl.BlockSpec((tm, cout), lambda i: (i, 0)),
        ],
        out_specs=pl.BlockSpec((tm, cout), lambda i: (i, 0)),
        compiler_params=_mosaic("parallel"),
    )(x2d, w_ic_oc, bias.reshape(1, cout), res2d)


def _dwconv3x3_taps(x_ref, w9_ref, xp_ref):
    """3x3 depthwise taps on one (H, W, C) image; 1-px halo built in VMEM.

    Only the 1-px border of the scratch is zeroed (the interior is fully
    overwritten every grid step, so this is correct under 'parallel' batch
    semantics and removes the full-tensor zero store), and the padded block is
    sliced dx-major so the expensive sublane (W-axis) shifts happen 3x, with the
    free leading-dim (H) slices reused across dy.
    """
    H, W, C = x_ref.shape
    z_row = jnp.zeros((1, W + 2, C), xp_ref.dtype)
    z_col = jnp.zeros((H + 2, 1, C), xp_ref.dtype)
    xp_ref[0:1, :, :] = z_row
    xp_ref[H + 1:H + 2, :, :] = z_row
    xp_ref[:, 0:1, :] = z_col
    xp_ref[:, W + 1:W + 2, :] = z_col
    xp_ref[1:H + 1, 1:W + 1, :] = x_ref[...]
    xp = xp_ref[...].astype(jnp.float32)
    acc = jnp.zeros((H, W, C), jnp.float32)
    for dx in range(3):
        col = xp[:, dx:dx + W, :]                 # one sublane shift per dx
        for dy in range(3):                       # leading-dim slices are free
            tap = w9_ref[dy * 3 + dx, :].astype(jnp.float32).reshape(1, 1, C)
            acc = acc + col[dy:dy + H, :, :] * tap
    return acc


def _dwconv3x3_kernel(x_ref, w9_ref, b_ref, o_ref, xp_ref):
    C = x_ref.shape[-1]
    acc = _dwconv3x3_taps(x_ref, w9_ref, xp_ref)
    o_ref[...] = (acc + b_ref[...].reshape(1, 1, C)).astype(o_ref.dtype)


def _dwconv3x3_gelu_kernel(x_ref, w9_ref, b_ref, o_ref, xp_ref):
    # FFN depthwise conv with the GELU gate fused into the epilogue: only the
    # gated `hidden`-channel tensor (half of the 2*hidden intermediate) is
    # written to HBM, halving the write here and the read of the next kernel.
    C = x_ref.shape[-1]
    hidden = o_ref.shape[-1]
    y = _dwconv3x3_taps(x_ref, w9_ref, xp_ref) + b_ref[...].reshape(1, 1, C)
    x1 = y[:, :, :hidden]
    x2 = y[:, :, hidden:]
    o_ref[...] = (0.5 * x1 * (1.0 + _erf_f32(x1 * 0.7071067811865476)) * x2
                  ).astype(o_ref.dtype)


def _dwconv_call(kernel, x_nhwc, w9, bias, cout):
    # Whole-image-per-batch tiles; at very large H*W on v7x this should become
    # a (B, H//th) row-tiled grid with a 2-row halo to fit 64 MiB VMEM.
    B, H, W, C = x_nhwc.shape
    return pl.pallas_call(
        kernel,
        out_shape=jax.ShapeDtypeStruct((B, H, W, cout), x_nhwc.dtype),
        grid=(B,),
        in_specs=[
            pl.BlockSpec((None, H, W, C), lambda i: (i, 0, 0, 0)),
            pl.BlockSpec((9, C), lambda i: (0, 0)),
            pl.BlockSpec((1, C), lambda i: (0, 0)),
        ],
        out_specs=pl.BlockSpec((None, H, W, cout), lambda i: (i, 0, 0, 0)),
        scratch_shapes=[pltpu.VMEM((H + 2, W + 2, C), x_nhwc.dtype)],
        compiler_params=_mosaic("parallel"),
    )(x_nhwc, w9, bias.reshape(1, C))


def dwconv3x3(x_nhwc, w9, bias):
    return _dwconv_call(_dwconv3x3_kernel, x_nhwc, w9, bias, x_nhwc.shape[-1])


def dwconv3x3_gelu_gate(x_nhwc, w9, bias, hidden):
    return _dwconv_call(_dwconv3x3_gelu_kernel, x_nhwc, w9, bias, hidden)


def _attn_proj_res_kernel(qkv_ref, t_ref, wp_ref, bp_ref, r_ref, o_ref, *, num_heads):
    # Channel attention for one batch image (all heads in one grid step), with
    # the output projection + bias + residual fused.  The qkv block arrives
    # token-major (hw, 3c) straight from the dwconv output, so no XLA transpose
    # is needed on either side; the single per-head flip happens in-register.
    hw, c3 = qkv_ref.shape
    c = c3 // 3
    ch = c // num_heads
    qkv = qkv_ref[...].astype(jnp.float32)
    acc = r_ref[...].astype(jnp.float32) + bp_ref[...]
    for hh in range(num_heads):                    # num_heads is small & static
        q = qkv[:, hh * ch:(hh + 1) * ch]          # (hw, ch) token-major
        k = qkv[:, c + hh * ch:c + (hh + 1) * ch]
        v = qkv[:, 2 * c + hh * ch:2 * c + (hh + 1) * ch]
        # F.normalize over the spatial dim (dim=-1 of the channel-major view)
        # == axis 0 here; rsqrt keeps the divide on the EUP.
        qn = q * lax.rsqrt(jnp.maximum(jnp.sum(q * q, axis=0, keepdims=True), 1e-24))
        kn = k * lax.rsqrt(jnp.maximum(jnp.sum(k * k, axis=0, keepdims=True), 1e-24))
        a = jnp.dot(qn.T, kn, preferred_element_type=jnp.float32)      # (ch, ch)
        a = a * t_ref[hh:hh + 1, :]
        a = a - jnp.max(a, axis=-1, keepdims=True)
        e = jnp.exp(a)
        p = e * pl.reciprocal(jnp.sum(e, axis=-1, keepdims=True), approx=True)
        # token-major head output: out[s, i] = sum_j p[i, j] * v[s, j]
        out_tm = lax.dot_general(v, p, (((1,), (1,)), ((), ())),
                                 preferred_element_type=jnp.float32)   # (hw, ch)
        # partial output-projection for this head's channel slice
        acc = acc + jnp.dot(out_tm.astype(wp_ref.dtype),
                            wp_ref[hh * ch:(hh + 1) * ch, :],
                            preferred_element_type=jnp.float32)
    o_ref[...] = acc.astype(o_ref.dtype)


def attention_proj_residual(qkv_tok, temperature, wp, bp, res2d, num_heads):
    # qkv_tok: (B, hw, 3c) token-major; res2d/out: (B*hw, c) token-major rows.
    B, hw, c3 = qkv_tok.shape
    c = c3 // 3
    kern = functools.partial(_attn_proj_res_kernel, num_heads=num_heads)
    return pl.pallas_call(
        kern,
        out_shape=jax.ShapeDtypeStruct((B * hw, c), res2d.dtype),
        grid=(B,),
        in_specs=[
            pl.BlockSpec((None, hw, c3), lambda b: (b, 0, 0)),
            pl.BlockSpec((num_heads, 1), lambda b: (0, 0)),
            pl.BlockSpec((c, c), lambda b: (0, 0)),
            pl.BlockSpec((1, c), lambda b: (0, 0)),
            pl.BlockSpec((hw, c), lambda b: (b, 0)),
        ],
        out_specs=pl.BlockSpec((hw, c), lambda b: (b, 0)),
        compiler_params=_mosaic("parallel"),
    )(qkv_tok, temperature, wp, bp.reshape(1, c), res2d)


# ------------------------------ forward (glue) ------------------------------

def transformer_block(x_nchw, params, num_heads):
    b, c, h, w = x_nchw.shape
    hw = h * w
    n = b * hw
    hidden = params['pout_w_t'].shape[0]
    tm = _pick_row_tile(n, cap=1024 if _vmem_limit_bytes() >= (64 << 20) else 512)

    # NCHW -> token-major rows (b*h*w, c); channels land on the lane axis.
    x2d = jnp.transpose(x_nchw, (0, 2, 3, 1)).reshape(n, c)

    # ---------------- attention branch ----------------
    qkv2d = ln_pointwise(x2d, params['ln1_w'], params['ln1_b'],
                         params['qkv_w_t'], params['qkv_b'], tm)
    qkv = dwconv3x3(qkv2d.reshape(b, h, w, 3 * c),
                    params['qkv_dw_w9'], params['qkv_dw_b'])
    # fused channel-attention + project_out + residual, consumed straight off
    # the token-major dwconv output (no XLA transposes, no attn-out round trip)
    x2d = attention_proj_residual(qkv.reshape(b, hw, 3 * c), params['temperature'],
                                  params['proj_w_t'], params['proj_b'], x2d,
                                  num_heads)

    # ------------------- FFN branch --------------------
    pin2d = ln_pointwise(x2d, params['ln2_w'], params['ln2_b'],
                         params['pin_w_t'], params['pin_b'], tm)
    gated = dwconv3x3_gelu_gate(pin2d.reshape(b, h, w, 2 * hidden),
                                params['ffn_dw_w9'], params['ffn_dw_b'], hidden)
    x2d = pointwise_residual(gated.reshape(n, hidden), params['pout_w_t'],
                             params['pout_b'], x2d, tm)

    return jnp.transpose(x2d.reshape(b, h, w, c), (0, 3, 1, 2))  # back to NCHW


# --------------------------- parameters (synthetic) --------------------------

def init_params(key, dim, num_heads, ffn_expansion_factor):
    """PyTorch-layout parameters (as nn.Conv2d / LayerNorm would hold them)."""
    hidden = int(dim * ffn_expansion_factor)
    ks = jax.random.split(key, 12)

    def nrm(k, shape, scale=0.1):
        return scale * jax.random.normal(k, shape, jnp.float32)

    return dict(
        ln1_w=jnp.ones((dim,), jnp.float32), ln1_b=jnp.zeros((dim,), jnp.float32),
        ln2_w=jnp.ones((dim,), jnp.float32), ln2_b=jnp.zeros((dim,), jnp.float32),
        temperature=jnp.ones((num_heads,), jnp.float32),
        qkv_w=nrm(ks[0], (3 * dim, dim)), qkv_b=nrm(ks[1], (3 * dim,)),
        qkv_dw_w=nrm(ks[2], (3 * dim, 3, 3)), qkv_dw_b=nrm(ks[3], (3 * dim,)),
        proj_w=nrm(ks[4], (dim, dim)), proj_b=nrm(ks[5], (dim,)),
        pin_w=nrm(ks[6], (2 * hidden, dim)), pin_b=nrm(ks[7], (2 * hidden,)),
        ffn_dw_w=nrm(ks[8], (2 * hidden, 3, 3)), ffn_dw_b=nrm(ks[9], (2 * hidden,)),
        pout_w=nrm(ks[10], (dim, hidden)), pout_b=nrm(ks[11], (dim,)),
    )


def prepare_params(p, matmul_dtype=jnp.bfloat16):
    """One-time weight prep (outside the jit'd forward): transpose 1x1-conv
    weights to (in, out), cast MXU weights to bf16, reshape depthwise weights to
    tap-major (9, C).  Avoids per-call weight transposes / materialized copies;
    LN params, biases and dwconv taps stay f32 (v5e VPU/EUP have no bf16)."""
    def t(wgt):
        return jnp.transpose(wgt).astype(matmul_dtype)

    def dw9(wgt):  # (C, 3, 3) -> (9, C), w9[dy*3+dx, c] = w[c, dy, dx]
        return jnp.transpose(wgt, (1, 2, 0)).reshape(9, wgt.shape[0]).astype(jnp.float32)

    f32 = lambda a: a.astype(jnp.float32)
    return dict(
        ln1_w=f32(p['ln1_w']), ln1_b=f32(p['ln1_b']),
        ln2_w=f32(p['ln2_w']), ln2_b=f32(p['ln2_b']),
        temperature=f32(p['temperature']).reshape(-1, 1),
        qkv_w_t=t(p['qkv_w']), qkv_b=f32(p['qkv_b']),
        qkv_dw_w9=dw9(p['qkv_dw_w']), qkv_dw_b=f32(p['qkv_dw_b']),
        proj_w_t=t(p['proj_w']), proj_b=f32(p['proj_b']),
        pin_w_t=t(p['pin_w']), pin_b=f32(p['pin_b']),
        ffn_dw_w9=dw9(p['ffn_dw_w']), ffn_dw_b=f32(p['ffn_dw_b']),
        pout_w_t=t(p['pout_w']), pout_b=f32(p['pout_b']),
    )


# ------------------------- pure-XLA reference (check) ------------------------

def reference_forward(x, params, num_heads):
    b, c, h, w = x.shape

    def ln(x, wgt, bias):
        x3 = x.reshape(b, c, h * w).transpose(0, 2, 1)
        mu = x3.mean(-1, keepdims=True)
        var = ((x3 - mu) ** 2).mean(-1, keepdims=True)
        y = (x3 - mu) / jnp.sqrt(var + 1e-5) * wgt + bias
        return y.transpose(0, 2, 1).reshape(b, c, h, w)

    def conv1x1(x, wgt, bias):
        out = lax.conv_general_dilated(x, wgt.reshape(wgt.shape[0], wgt.shape[1], 1, 1),
                                       (1, 1), 'VALID',
                                       dimension_numbers=('NCHW', 'OIHW', 'NCHW'))
        return out + bias.reshape(1, -1, 1, 1)

    def dconv(x, wgt, bias):
        C = wgt.shape[0]
        out = lax.conv_general_dilated(x, wgt.reshape(C, 1, 3, 3), (1, 1),
                                       ((1, 1), (1, 1)),
                                       dimension_numbers=('NCHW', 'OIHW', 'NCHW'),
                                       feature_group_count=C)
        return out + bias.reshape(1, -1, 1, 1)

    y = ln(x, params['ln1_w'], params['ln1_b'])
    qkv = dconv(conv1x1(y, params['qkv_w'], params['qkv_b']),
                params['qkv_dw_w'], params['qkv_dw_b'])
    q, k, v = jnp.split(qkv, 3, axis=1)
    ch = c // num_heads
    rh = lambda t: t.reshape(b, num_heads, ch, h * w)
    q, k, v = rh(q), rh(k), rh(v)
    q = q / jnp.maximum(jnp.linalg.norm(q, axis=-1, keepdims=True), 1e-12)
    k = k / jnp.maximum(jnp.linalg.norm(k, axis=-1, keepdims=True), 1e-12)
    attn = jnp.einsum('bhcd,bhed->bhce', q, k) * params['temperature'].reshape(1, num_heads, 1, 1)
    attn = jax.nn.softmax(attn, axis=-1)
    out = jnp.einsum('bhce,bhed->bhcd', attn, v).reshape(b, c, h, w)
    x = x + conv1x1(out, params['proj_w'], params['proj_b'])

    y = ln(x, params['ln2_w'], params['ln2_b'])
    hidden = params['pout_w'].shape[1]
    t = dconv(conv1x1(y, params['pin_w'], params['pin_b']),
              params['ffn_dw_w'], params['ffn_dw_b'])
    x1, x2 = t[:, :hidden], t[:, hidden:]
    g = jax.nn.gelu(x1, approximate=False) * x2
    x = x + conv1x1(g, params['pout_w'], params['pout_b'])
    return x


# ------------------------------------ main -----------------------------------

if __name__ == "__main__":
    dim, num_heads, ffn_factor, B, H, W = 16, 2, 2, 2, 8, 8
    key = jax.random.PRNGKey(0)
    kx, kp = jax.random.split(key)
    x = jax.random.normal(kx, (B, dim, H, W), jnp.float32)
    params = init_params(kp, dim, num_heads, ffn_factor)
    kparams = prepare_params(params)          # one-time transpose / bf16 / (9,C) prep

    fwd = jax.jit(functools.partial(transformer_block, num_heads=num_heads))
    out = fwd(x, kparams)
    jax.block_until_ready(out)

    assert out.shape == x.shape and out.dtype == x.dtype
    ref = reference_forward(x, params, num_heads)
    err = float(jnp.max(jnp.abs(out - ref)))
    assert err < 5e-2, f"mismatch vs reference: {err}"
    print("KERNEL_OK")
</pallas_src>

<mosaic_0001>
module attributes {stable_mosaic.version = 11 : i64} {
  func.func @_dwconv3x3_kernel(%arg0: i32, %arg1: memref<1x8x8x48xf32, #tpu.memory_space<vmem>>, %arg2: memref<9x48xf32, #tpu.memory_space<vmem>>, %arg3: memref<1x48xf32, #tpu.memory_space<vmem>>, %arg4: memref<1x8x8x48xf32, #tpu.memory_space<vmem>>, %arg5: memref<10x10x48xf32, #tpu.memory_space<vmem>>) attributes {dimension_semantics = [#tpu.dimension_semantics<parallel>], iteration_bounds = array<i64: 2>, scalar_prefetch = 0 : i64, scratch_operands = 1 : i64, tpu.core_type = #tpu.core_type<tc>, window_params = [{transform_indices = @transform_0, window_bounds = array<i64: 1, 8, 8, 48>}, {pipeline_mode = #tpu.pipeline_mode<synchronous>, transform_indices = @transform_1, window_bounds = array<i64: 9, 48>}, {pipeline_mode = #tpu.pipeline_mode<synchronous>, transform_indices = @transform_2, window_bounds = array<i64: 1, 48>}, {transform_indices = @transform_3, window_bounds = array<i64: 1, 8, 8, 48>}]} {
    %cst = arith.constant 0.000000e+00 : f32
    %0 = vector.broadcast %cst : f32 to vector<1x10x48xf32>
    %cst_0 = arith.constant 0.000000e+00 : f32
    %1 = vector.broadcast %cst_0 : f32 to vector<10x1x48xf32>
    %c0 = arith.constant 0 : index
    %c0_1 = arith.constant 0 : index
    %c0_2 = arith.constant 0 : index
    %2 = vector.load %arg5[%c0, %c0_1, %c0_2] : memref<10x10x48xf32, #tpu.memory_space<vmem>>, vector<1x10x48xf32>
    tpu.vector_store %arg5[%c0, %c0_1, %c0_2], %0 {strides = array<i32>} : memref<10x10x48xf32, #tpu.memory_space<vmem>>, vector<1x10x48xf32>,
    %c9 = arith.constant 9 : index
    %c0_3 = arith.constant 0 : index
    %c0_4 = arith.constant 0 : index
    %3 = vector.load %arg5[%c9, %c0_3, %c0_4] : memref<10x10x48xf32, #tpu.memory_space<vmem>>, vector<1x10x48xf32>
    tpu.vector_store %arg5[%c9, %c0_3, %c0_4], %0 {strides = array<i32>} : memref<10x10x48xf32, #tpu.memory_space<vmem>>, vector<1x10x48xf32>,
    %c0_5 = arith.constant 0 : index
    %c0_6 = arith.constant 0 : index
    %c0_7 = arith.constant 0 : index
    %4 = vector.load %arg5[%c0_5, %c0_6, %c0_7] : memref<10x10x48xf32, #tpu.memory_space<vmem>>, vector<10x1x48xf32>
    tpu.vector_store %arg5[%c0_5, %c0_6, %c0_7], %1 {strides = array<i32>} : memref<10x10x48xf32, #tpu.memory_space<vmem>>, vector<10x1x48xf32>,
    %c0_8 = arith.constant 0 : index
    %c9_9 = arith.constant 9 : index
    %c0_10 = arith.constant 0 : index
    %5 = vector.load %arg5[%c0_8, %c9_9, %c0_10] : memref<10x10x48xf32, #tpu.memory_space<vmem>>, vector<10x1x48xf32>
    tpu.vector_store %arg5[%c0_8, %c9_9, %c0_10], %1 {strides = array<i32>} : memref<10x10x48xf32, #tpu.memory_space<vmem>>, vector<10x1x48xf32>,
    %c0_11 = arith.constant 0 : index
    %c0_12 = arith.constant 0 : index
    %c0_13 = arith.constant 0 : index
    %c0_14 = arith.constant 0 : index
    %6 = vector.load %arg1[%c0_11, %c0_12, %c0_13, %c0_14] : memref<1x8x8x48xf32, #tpu.memory_space<vmem>>, vector<1x8x8x48xf32>
    %7 = vector.shape_cast %6 : vector<1x8x8x48xf32> to vector<8x8x48xf32>
    %c1 = arith.constant 1 : index
    %c1_15 = arith.constant 1 : index
    %c0_16 = arith.constant 0 : index
    %8 = vector.load %arg5[%c1, %c1_15, %c0_16] : memref<10x10x48xf32, #tpu.memory_space<vmem>>, vector<8x8x48xf32>
    tpu.vector_store %arg5[%c1, %c1_15, %c0_16], %7 {strides = array<i32>} : memref<10x10x48xf32, #tpu.memory_space<vmem>>, vector<8x8x48xf32>,
    %c0_17 = arith.constant 0 : index
    %c0_18 = arith.constant 0 : index
    %c0_19 = arith.constant 0 : index
    %9 = vector.load %arg5[%c0_17, %c0_18, %c0_19] : memref<10x10x48xf32, #tpu.memory_space<vmem>>, vector<10x10x48xf32>
    %cst_20 = arith.constant 0.000000e+00 : f32
    %10 = vector.broadcast %cst_20 : f32 to vector<8x8x48xf32>
    %11 = vector.extract_strided_slice %9 {offsets = [0, 0, 0], sizes = [10, 8, 48], strides = [1, 1, 1]} : vector<10x10x48xf32> to vector<10x8x48xf32>
    %c0_21 = arith.constant 0 : index
    %c0_22 = arith.constant 0 : index
    %12 = vector.load %arg2[%c0_21, %c0_22] : memref<9x48xf32, #tpu.memory_space<vmem>>, vector<1x48xf32>
    %13 = vector.shape_cast %12 : vector<1x48xf32> to vector<48xf32>
    %14 = vector.shape_cast %13 : vector<48xf32> to vector<1x1x48xf32>
    %15 = vector.extract_strided_slice %11 {offsets = [0, 0, 0], sizes = [8, 8, 48], strides = [1, 1, 1]} : vector<10x8x48xf32> to vector<8x8x48xf32>
    %16 = vector.broadcast %14 : vector<1x1x48xf32> to vector<8x8x48xf32>
    %17 = arith.mulf %15, %16 : vector<8x8x48xf32>
    %18 = arith.addf %10, %17 : vector<8x8x48xf32>
    %c3 = arith.constant 3 : index
    %c0_23 = arith.constant 0 : index
    %19 = vector.load %arg2[%c3, %c0_23] : memref<9x48xf32, #tpu.memory_space<vmem>>, vector<1x48xf32>
    %20 = vector.shape_cast %19 : vector<1x48xf32> to vector<48xf32>
    %21 = vector.shape_cast %20 : vector<48xf32> to vector<1x1x48xf32>
    %22 = vector.extract_strided_slice %11 {offsets = [1, 0, 0], sizes = [8, 8, 48], strides = [1, 1, 1]} : vector<10x8x48xf32> to vector<8x8x48xf32>
    %23 = vector.broadcast %21 : vector<1x1x48xf32> to vector<8x8x48xf32>
    %24 = arith.mulf %22, %23 : vector<8x8x48xf32>
    %25 = arith.addf %18, %24 : vector<8x8x48xf32>
    %c6 = arith.constant 6 : index
    %c0_24 = arith.constant 0 : index
    %26 = vector.load %arg2[%c6, %c0_24] : memref<9x48xf32, #tpu.memory_space<vmem>>, vector<1x48xf32>
    %27 = vector.shape_cast %26 : vector<1x48xf32> to vector<48xf32>
    %28 = vector.shape_cast %27 : vector<48xf32> to vector<1x1x48xf32>
    %29 = vector.extract_strided_slice %11 {offsets = [2, 0, 0], sizes = [8, 8, 48], strides = [1, 1, 1]} : vector<10x8x48xf32> to vector<8x8x48xf32>
    %30 = vector.broadcast %28 : vector<1x1x48xf32> to vector<8x8x48xf32>
    %31 = arith.mulf %29, %30 : vector<8x8x48xf32>
    %32 = arith.addf %25, %31 : vector<8x8x48xf32>
    %33 = vector.extract_strided_slice %9 {offsets = [0, 1, 0], sizes = [10, 8, 48], strides = [1, 1, 1]} : vector<10x10x48xf32> to vector<10x8x48xf32>
    %c1_25 = arith.constant 1 : index
    %c0_26 = arith.constant 0 : index
    %34 = vector.load %arg2[%c1_25, %c0_26] : memref<9x48xf32, #tpu.memory_space<vmem>>, vector<1x48xf32>
    %35 = vector.shape_cast %34 : vector<1x48xf32> to vector<48xf32>
    %36 = vector.shape_cast %35 : vector<48xf32> to vector<1x1x48xf32>
    %37 = vector.extract_strided_slice %33 {offsets = [0, 0, 0], sizes = [8, 8, 48], strides = [1, 1, 1]} : vector<10x8x48xf32> to vector<8x8x48xf32>
    %38 = vector.broadcast %36 : vector<1x1x48xf32> to vector<8x8x48xf32>
    %39 = arith.mulf %37, %38 : vector<8x8x48xf32>
    %40 = arith.addf %32, %39 : vector<8x8x48xf32>
    %c4 = arith.constant 4 : index
    %c0_27 = arith.constant 0 : index
    %41 = vector.load %arg2[%c4, %c0_27] : memref<9x48xf32, #tpu.memory_space<vmem>>, vector<1x48xf32>
    %42 = vector.shape_cast %41 : vector<1x48xf32> to vector<48xf32>
    %43 = vector.shape_cast %42 : vector<48xf32> to vector<1x1x48xf32>
    %44 = vector.extract_strided_slice %33 {offsets = [1, 0, 0], sizes = [8, 8, 48], strides = [1, 1, 1]} : vector<10x8x48xf32> to vector<8x8x48xf32>
    %45 = vector.broadcast %43 : vector<1x1x48xf32> to vector<8x8x48xf32>
    %46 = arith.mulf %44, %45 : vector<8x8x48xf32>
    %47 = arith.addf %40, %46 : vector<8x8x48xf32>
    %c7 = arith.constant 7 : index
    %c0_28 = arith.constant 0 : index
    %48 = vector.load %arg2[%c7, %c0_28] : memref<9x48xf32, #tpu.memory_space<vmem>>, vector<1x48xf32>
    %49 = vector.shape_cast %48 : vector<1x48xf32> to vector<48xf32>
    %50 = vector.shape_cast %49 : vector<48xf32> to vector<1x1x48xf32>
    %51 = vector.extract_strided_slice %33 {offsets = [2, 0, 0], sizes = [8, 8, 48], strides = [1, 1, 1]} : vector<10x8x48xf32> to vector<8x8x48xf32>
    %52 = vector.broadcast %50 : vector<1x1x48xf32> to vector<8x8x48xf32>
    %53 = arith.mulf %51, %52 : vector<8x8x48xf32>
    %54 = arith.addf %47, %53 : vector<8x8x48xf32>
    %55 = vector.extract_strided_slice %9 {offsets = [0, 2, 0], sizes = [10, 8, 48], strides = [1, 1, 1]} : vector<10x10x48xf32> to vector<10x8x48xf32>
    %c2 = arith.constant 2 : index
    %c0_29 = arith.constant 0 : index
    %56 = vector.load %arg2[%c2, %c0_29] : memref<9x48xf32, #tpu.memory_space<vmem>>, vector<1x48xf32>
    %57 = vector.shape_cast %56 : vector<1x48xf32> to vector<48xf32>
    %58 = vector.shape_cast %57 : vector<48xf32> to vector<1x1x48xf32>
    %59 = vector.extract_strided_slice %55 {offsets = [0, 0, 0], sizes = [8, 8, 48], strides = [1, 1, 1]} : vector<10x8x48xf32> to vector<8x8x48xf32>
    %60 = vector.broadcast %58 : vector<1x1x48xf32> to vector<8x8x48xf32>
    %61 = arith.mulf %59, %60 : vector<8x8x48xf32>
    %62 = arith.addf %54, %61 : vector<8x8x48xf32>
    %c5 = arith.constant 5 : index
    %c0_30 = arith.constant 0 : index
    %63 = vector.load %arg2[%c5, %c0_30] : memref<9x48xf32, #tpu.memory_space<vmem>>, vector<1x48xf32>
    %64 = vector.shape_cast %63 : vector<1x48xf32> to vector<48xf32>
    %65 = vector.shape_cast %64 : vector<48xf32> to vector<1x1x48xf32>
    %66 = vector.extract_strided_slice %55 {offsets = [1, 0, 0], sizes = [8, 8, 48], strides = [1, 1, 1]} : vector<10x8x48xf32> to vector<8x8x48xf32>
    %67 = vector.broadcast %65 : vector<1x1x48xf32> to vector<8x8x48xf32>
    %68 = arith.mulf %66, %67 : vector<8x8x48xf32>
    %69 = arith.addf %62, %68 : vector<8x8x48xf32>
    %c8 = arith.constant 8 : index
    %c0_31 = arith.constant 0 : index
    %70 = vector.load %arg2[%c8, %c0_31] : memref<9x48xf32, #tpu.memory_space<vmem>>, vector<1x48xf32>
    %71 = vector.shape_cast %70 : vector<1x48xf32> to vector<48xf32>
    %72 = vector.shape_cast %71 : vector<48xf32> to vector<1x1x48xf32>
    %73 = vector.extract_strided_slice %55 {offsets = [2, 0, 0], sizes = [8, 8, 48], strides = [1, 1, 1]} : vector<10x8x48xf32> to vector<8x8x48xf32>
    %74 = vector.broadcast %72 : vector<1x1x48xf32> to vector<8x8x48xf32>
    %75 = arith.mulf %73, %74 : vector<8x8x48xf32>
    %76 = arith.addf %69, %75 : vector<8x8x48xf32>
    %c0_32 = arith.constant 0 : index
    %c0_33 = arith.constant 0 : index
    %77 = vector.load %arg3[%c0_32, %c0_33] : memref<1x48xf32, #tpu.memory_space<vmem>>, vector<1x48xf32>
    %78 = vector.shape_cast %77 : vector<1x48xf32> to vector<1x1x48xf32>
    %79 = vector.broadcast %78 : vector<1x1x48xf32> to vector<8x8x48xf32>
    %80 = arith.addf %76, %79 : vector<8x8x48xf32>
    %c0_34 = arith.constant 0 : index
    %c0_35 = arith.constant 0 : index
    %c0_36 = arith.constant 0 : index
    %c0_37 = arith.constant 0 : index
    %81 = vector.load %arg4[%c0_34, %c0_35, %c0_36, %c0_37] : memref<1x8x8x48xf32, #tpu.memory_space<vmem>>, vector<1x8x8x48xf32>
    %82 = vector.shape_cast %81 : vector<1x8x8x48xf32> to vector<8x8x48xf32>
    %83 = vector.shape_cast %80 : vector<8x8x48xf32> to vector<1x8x8x48xf32>
    tpu.vector_store %arg4[%c0_34, %c0_35, %c0_36, %c0_37], %83 {strides = array<i32>} : memref<1x8x8x48xf32, #tpu.memory_space<vmem>>, vector<1x8x8x48xf32>,
    return
  }
  func.func @transform_0(%arg0: i32) -> (i32, i32, i32, i32) {
    %c0_i32 = arith.constant 0 : i32
    %c0_i32_0 = arith.constant 0 : i32
    %c0_i32_1 = arith.constant 0 : i32
    %c0_i32_2 = arith.constant 0 : i32
    return %arg0, %c0_i32, %c0_i32_0, %c0_i32_1 : i32, i32, i32, i32
  }
  func.func @transform_1(%arg0: i32) -> (i32, i32) {
    %c0_i32 = arith.constant 0 : i32
    %c0_i32_0 = arith.constant 0 : i32
    %c0_i32_1 = arith.constant 0 : i32
    return %c0_i32, %c0_i32_0 : i32, i32
  }
  func.func @transform_2(%arg0: i32) -> (i32, i32) {
    %c0_i32 = arith.constant 0 : i32
    %c0_i32_0 = arith.constant 0 : i32
    %c0_i32_1 = arith.constant 0 : i32
    return %c0_i32, %c0_i32_0 : i32, i32
  }
  func.func @transform_3(%arg0: i32) -> (i32, i32, i32, i32) {
    %c0_i32 = arith.constant 0 : i32
    %c0_i32_0 = arith.constant 0 : i32
    %c0_i32_1 = arith.constant 0 : i32
    %c0_i32_2 = arith.constant 0 : i32
    return %arg0, %c0_i32, %c0_i32_0, %c0_i32_1 : i32, i32, i32, i32
  }
}

module attributes {stable_mosaic.version = 11 : i64} {
  func.func @_ln_matmul_kernel(%arg0: i32, %arg1: memref<128x16xf32, #tpu.memory_space<vmem>>, %arg2: memref<1x16xf32, #tpu.memory_space<vmem>>, %arg3: memref<1x16xf32, #tpu.memory_space<vmem>>, %arg4: memref<16x48xbf16, #tpu.memory_space<vmem>>, %arg5: memref<1x48xf32, #tpu.memory_space<vmem>>, %arg6: memref<128x48xf32, #tpu.memory_space<vmem>>) attributes {dimension_semantics = [#tpu.dimension_semantics<parallel>], iteration_bounds = array<i64: 1>, scalar_prefetch = 0 : i64, scratch_operands = 0 : i64, tpu.core_type = #tpu.core_type<tc>, window_params = [{transform_indices = @transform_0, window_bounds = array<i64: 128, 16>}, {pipeline_mode = #tpu.pipeline_mode<synchronous>, transform_indices = @transform_1, window_bounds = array<i64: 1, 16>}, {pipeline_mode = #tpu.pipeline_mode<synchronous>, transform_indices = @transform_2, window_bounds = array<i64: 1, 16>}, {pipeline_mode = #tpu.pipeline_mode<synchronous>, transform_indices = @transform_3, window_bounds = array<i64: 16, 48>}, {pipeline_mode = #tpu.pipeline_mode<synchronous>, transform_indices = @transform_4, window_bounds = array<i64: 1, 48>}, {transform_indices = @transform_5, window_bounds = array<i64: 128, 48>}]} {
    %c0 = arith.constant 0 : index
    %c0_0 = arith.constant 0 : index
    %0 = vector.load %arg1[%c0, %c0_0] : memref<128x16xf32, #tpu.memory_space<vmem>>, vector<128x16xf32>
    %cst = arith.constant dense<0.000000e+00> : vector<128xf32>
    %1 = vector.multi_reduction <add>, %0, %cst [1] : vector<128x16xf32> to vector<128xf32>
    %2 = vector.shape_cast %1 : vector<128xf32> to vector<128x1xf32>
    %cst_1 = arith.constant 1.600000e+01 : f32
    %3 = vector.broadcast %cst_1 : f32 to vector<128x1xf32>
    %4 = arith.divf %2, %3 : vector<128x1xf32>
    %5 = vector.broadcast %4 : vector<128x1xf32> to vector<128x16xf32>
    %6 = arith.subf %0, %5 : vector<128x16xf32>
    %7 = arith.mulf %6, %6 : vector<128x16xf32>
    %cst_2 = arith.constant dense<0.000000e+00> : vector<128xf32>
    %8 = vector.multi_reduction <add>, %7, %cst_2 [1] : vector<128x16xf32> to vector<128xf32>
    %9 = vector.shape_cast %8 : vector<128xf32> to vector<128x1xf32>
    %cst_3 = arith.constant 1.600000e+01 : f32
    %10 = vector.broadcast %cst_3 : f32 to vector<128x1xf32>
    %11 = arith.divf %9, %10 : vector<128x1xf32>
    %cst_4 = arith.constant 9.99999974E-6 : f32
    %12 = vector.broadcast %cst_4 : f32 to vector<128x1xf32>
    %13 = arith.addf %11, %12 : vector<128x1xf32>
    %14 = math.rsqrt %13 : vector<128x1xf32>
    %15 = vector.broadcast %14 : vector<128x1xf32> to vector<128x16xf32>
    %16 = arith.mulf %6, %15 : vector<128x16xf32>
    %c0_5 = arith.constant 0 : index
    %c0_6 = arith.constant 0 : index
    %17 = vector.load %arg2[%c0_5, %c0_6] : memref<1x16xf32, #tpu.memory_space<vmem>>, vector<1x16xf32>
    %18 = vector.broadcast %17 : vector<1x16xf32> to vector<128x16xf32>
    %19 = arith.mulf %16, %18 : vector<128x16xf32>
    %c0_7 = arith.constant 0 : index
    %c0_8 = arith.constant 0 : index
    %20 = vector.load %arg3[%c0_7, %c0_8] : memref<1x16xf32, #tpu.memory_space<vmem>>, vector<1x16xf32>
    %21 = vector.broadcast %20 : vector<1x16xf32> to vector<128x16xf32>
    %22 = arith.addf %19, %21 : vector<128x16xf32>
    %23 = arith.truncf %22 : vector<128x16xf32> to vector<128x16xbf16>
    %c0_9 = arith.constant 0 : index
    %c0_10 = arith.constant 0 : index
    %24 = vector.load %arg4[%c0_9, %c0_10] : memref<16x48xbf16, #tpu.memory_space<vmem>>, vector<16x48xbf16>
    %cst_11 = arith.constant dense<0.000000e+00> : vector<128x48xf32>
    %25 = tpu.matmul %23, %24, %cst_11 {dimension_numbers = #tpu.dot_dimension_numbers<[1], [0], [0], [1], [0, 0, 1, 1], [], []>} : vector<128x16xbf16>, vector<16x48xbf16>, vector<128x48xf32> -> vector<128x48xf32>
    %c0_12 = arith.constant 0 : index
    %c0_13 = arith.constant 0 : index
    %26 = vector.load %arg5[%c0_12, %c0_13] : memref<1x48xf32, #tpu.memory_space<vmem>>, vector<1x48xf32>
    %27 = vector.broadcast %26 : vector<1x48xf32> to vector<128x48xf32>
    %28 = arith.addf %25, %27 : vector<128x48xf32>
    %c0_14 = arith.constant 0 : index
    %c0_15 = arith.constant 0 : index
    %29 = vector.load %arg6[%c0_14, %c0_15] : memref<128x48xf32, #tpu.memory_space<vmem>>, vector<128x48xf32>
    tpu.vector_store %arg6[%c0_14, %c0_15], %28 {strides = array<i32>} : memref<128x48xf32, #tpu.memory_space<vmem>>, vector<128x48xf32>,
    return
  }
  func.func @transform_0(%arg0: i32) -> (i32, i32) {
    %c0_i32 = arith.constant 0 : i32
    %c0_i32_0 = arith.constant 0 : i32
    return %arg0, %c0_i32 : i32, i32
  }
  func.func @transform_1(%arg0: i32) -> (i32, i32) {
    %c0_i32 = arith.constant 0 : i32
    %c0_i32_0 = arith.constant 0 : i32
    %c0_i32_1 = arith.constant 0 : i32
    return %c0_i32, %c0_i32_0 : i32, i32
  }
  func.func @transform_2(%arg0: i32) -> (i32, i32) {
    %c0_i32 = arith.constant 0 : i32
    %c0_i32_0 = arith.constant 0 : i32
    %c0_i32_1 = arith.constant 0 : i32
    return %c0_i32, %c0_i32_0 : i32, i32
  }
  func.func @transform_3(%arg0: i32) -> (i32, i32) {
    %c0_i32 = arith.constant 0 : i32
    %c0_i32_0 = arith.constant 0 : i32
    %c0_i32_1 = arith.constant 0 : i32
    return %c0_i32, %c0_i32_0 : i32, i32
  }
  func.func @transform_4(%arg0: i32) -> (i32, i32) {
    %c0_i32 = arith.constant 0 : i32
    %c0_i32_0 = arith.constant 0 : i32
    %c0_i32_1 = arith.constant 0 : i32
    return %c0_i32, %c0_i32_0 : i32, i32
  }
  func.func @transform_5(%arg0: i32) -> (i32, i32) {
    %c0_i32 = arith.constant 0 : i32
    %c0_i32_0 = arith.constant 0 : i32
    return %arg0, %c0_i32 : i32, i32
  }
}

module attributes {stable_mosaic.version = 11 : i64} {
  func.func @_attn_proj_res_kernel(%arg0: i32, %arg1: memref<1x64x48xf32, #tpu.memory_space<vmem>>, %arg2: memref<2x1xf32, #tpu.memory_space<vmem>>, %arg3: memref<16x16xbf16, #tpu.memory_space<vmem>>, %arg4: memref<1x16xf32, #tpu.memory_space<vmem>>, %arg5: memref<64x16xf32, #tpu.memory_space<vmem>>, %arg6: memref<64x16xf32, #tpu.memory_space<vmem>>) attributes {dimension_semantics = [#tpu.dimension_semantics<parallel>], iteration_bounds = array<i64: 2>, scalar_prefetch = 0 : i64, scratch_operands = 0 : i64, tpu.core_type = #tpu.core_type<tc>, window_params = [{transform_indices = @transform_0, window_bounds = array<i64: 1, 64, 48>}, {pipeline_mode = #tpu.pipeline_mode<synchronous>, transform_indices = @transform_1, window_bounds = array<i64: 2, 1>}, {pipeline_mode = #tpu.pipeline_mode<synchronous>, transform_indices = @transform_2, window_bounds = array<i64: 16, 16>}, {pipeline_mode = #tpu.pipeline_mode<synchronous>, transform_indices = @transform_3, window_bounds = array<i64: 1, 16>}, {transform_indices = @transform_4, window_bounds = array<i64: 64, 16>}, {transform_indices = @transform_5, window_bounds = array<i64: 64, 16>}]} {
    %c0 = arith.constant 0 : index
    %c0_0 = arith.constant 0 : index
    %c0_1 = arith.constant 0 : index
    %0 = vector.load %arg1[%c0, %c0_0, %c0_1] : memref<1x64x48xf32, #tpu.memory_space<vmem>>, vector<1x64x48xf32>
    %1 = vector.shape_cast %0 : vector<1x64x48xf32> to vector<64x48xf32>
    %c0_2 = arith.constant 0 : index
    %c0_3 = arith.constant 0 : index
    %2 = vector.load %arg5[%c0_2, %c0_3] : memref<64x16xf32, #tpu.memory_space<vmem>>, vector<64x16xf32>
    %c0_4 = arith.constant 0 : index
    %c0_5 = arith.constant 0 : index
    %3 = vector.load %arg4[%c0_4, %c0_5] : memref<1x16xf32, #tpu.memory_space<vmem>>, vector<1x16xf32>
    %4 = vector.broadcast %3 : vector<1x16xf32> to vector<64x16xf32>
    %5 = arith.addf %2, %4 : vector<64x16xf32>
    %6 = vector.extract_strided_slice %1 {offsets = [0, 0], sizes = [64, 8], strides = [1, 1]} : vector<64x48xf32> to vector<64x8xf32>
    %7 = vector.extract_strided_slice %1 {offsets = [0, 16], sizes = [64, 8], strides = [1, 1]} : vector<64x48xf32> to vector<64x8xf32>
    %8 = vector.extract_strided_slice %1 {offsets = [0, 32], sizes = [64, 8], strides = [1, 1]} : vector<64x48xf32> to vector<64x8xf32>
    %9 = arith.mulf %6, %6 : vector<64x8xf32>
    %cst = arith.constant dense<0.000000e+00> : vector<8xf32>
    %10 = vector.multi_reduction <add>, %9, %cst [0] : vector<64x8xf32> to vector<8xf32>
    %11 = vector.shape_cast %10 : vector<8xf32> to vector<1x8xf32>
    %cst_6 = arith.constant 1.000000e-24 : f32
    %12 = vector.broadcast %cst_6 : f32 to vector<1x8xf32>
    %13 = arith.maximumf %11, %12 : vector<1x8xf32>
    %14 = math.rsqrt %13 : vector<1x8xf32>
    %15 = vector.broadcast %14 : vector<1x8xf32> to vector<64x8xf32>
    %16 = arith.mulf %6, %15 : vector<64x8xf32>
    %17 = arith.mulf %7, %7 : vector<64x8xf32>
    %cst_7 = arith.constant dense<0.000000e+00> : vector<8xf32>
    %18 = vector.multi_reduction <add>, %17, %cst_7 [0] : vector<64x8xf32> to vector<8xf32>
    %19 = vector.shape_cast %18 : vector<8xf32> to vector<1x8xf32>
    %cst_8 = arith.constant 1.000000e-24 : f32
    %20 = vector.broadcast %cst_8 : f32 to vector<1x8xf32>
    %21 = arith.maximumf %19, %20 : vector<1x8xf32>
    %22 = math.rsqrt %21 : vector<1x8xf32>
    %23 = vector.broadcast %22 : vector<1x8xf32> to vector<64x8xf32>
    %24 = arith.mulf %7, %23 : vector<64x8xf32>
    %25 = tpu.transpose %16, [1, 0] : vector<64x8xf32> -> vector<8x64xf32>
    %cst_9 = arith.constant dense<0.000000e+00> : vector<8x8xf32>
    %26 = tpu.matmul %25, %24, %cst_9 {dimension_numbers = #tpu.dot_dimension_numbers<[1], [0], [0], [1], [0, 0, 1, 1], [], []>} : vector<8x64xf32>, vector<64x8xf32>, vector<8x8xf32> -> vector<8x8xf32>
    %c0_10 = arith.constant 0 : index
    %c0_11 = arith.constant 0 : index
    %27 = vector.load %arg2[%c0_10, %c0_11] : memref<2x1xf32, #tpu.memory_space<vmem>>, vector<1x1xf32>
    %28 = vector.broadcast %27 : vector<1x1xf32> to vector<8x8xf32>
    %29 = arith.mulf %26, %28 : vector<8x8xf32>
    %cst_12 = arith.constant dense<0xFF800000> : vector<8xf32>
    %30 = vector.multi_reduction <maximumf>, %29, %cst_12 [1] : vector<8x8xf32> to vector<8xf32>
    %31 = vector.shape_cast %30 : vector<8xf32> to vector<8x1xf32>
    %32 = vector.broadcast %31 : vector<8x1xf32> to vector<8x8xf32>
    %33 = arith.subf %29, %32 : vector<8x8xf32>
    %34 = math.exp %33 : vector<8x8xf32>
    %cst_13 = arith.constant dense<0.000000e+00> : vector<8xf32>
    %35 = vector.multi_reduction <add>, %34, %cst_13 [1] : vector<8x8xf32> to vector<8xf32>
    %36 = vector.shape_cast %35 : vector<8xf32> to vector<8x1xf32>
    %37 = tpu.reciprocal %36 {approx = true} : vector<8x1xf32> -> vector<8x1xf32>
    %38 = vector.broadcast %37 : vector<8x1xf32> to vector<8x8xf32>
    %39 = arith.mulf %34, %38 : vector<8x8xf32>
    %cst_14 = arith.constant dense<0.000000e+00> : vector<64x8xf32>
    %40 = tpu.matmul %8, %39, %cst_14 {dimension_numbers = #tpu.dot_dimension_numbers<[1], [1], [0], [0], [0, 0, 1, 0], [], []>} : vector<64x8xf32>, vector<8x8xf32>, vector<64x8xf32> -> vector<64x8xf32>
    %41 = arith.truncf %40 : vector<64x8xf32> to vector<64x8xbf16>
    %c0_15 = arith.constant 0 : index
    %c0_16 = arith.constant 0 : index
    %42 = vector.load %arg3[%c0_15, %c0_16] : memref<16x16xbf16, #tpu.memory_space<vmem>>, vector<8x16xbf16>
    %cst_17 = arith.constant dense<0.000000e+00> : vector<64x16xf32>
    %43 = tpu.matmul %41, %42, %cst_17 {dimension_numbers = #tpu.dot_dimension_numbers<[1], [0], [0], [1], [0, 0, 1, 1], [], []>} : vector<64x8xbf16>, vector<8x16xbf16>, vector<64x16xf32> -> vector<64x16xf32>
    %44 = arith.addf %5, %43 : vector<64x16xf32>
    %45 = vector.extract_strided_slice %1 {offsets = [0, 8], sizes = [64, 8], strides = [1, 1]} : vector<64x48xf32> to vector<64x8xf32>
    %46 = vector.extract_strided_slice %1 {offsets = [0, 24], sizes = [64, 8], strides = [1, 1]} : vector<64x48xf32> to vector<64x8xf32>
    %47 = vector.extract_strided_slice %1 {offsets = [0, 40], sizes = [64, 8], strides = [1, 1]} : vector<64x48xf32> to vector<64x8xf32>
    %48 = arith.mulf %45, %45 : vector<64x8xf32>
    %cst_18 = arith.constant dense<0.000000e+00> : vector<8xf32>
    %49 = vector.multi_reduction <add>, %48, %cst_18 [0] : vector<64x8xf32> to vector<8xf32>
    %50 = vector.shape_cast %49 : vector<8xf32> to vector<1x8xf32>
    %cst_19 = arith.constant 1.000000e-24 : f32
    %51 = vector.broadcast %cst_19 : f32 to vector<1x8xf32>
    %52 = arith.maximumf %50, %51 : vector<1x8xf32>
    %53 = math.rsqrt %52 : vector<1x8xf32>
    %54 = vector.broadcast %53 : vector<1x8xf32> to vector<64x8xf32>
    %55 = arith.mulf %45, %54 : vector<64x8xf32>
    %56 = arith.mulf %46, %46 : vector<64x8xf32>
    %cst_20 = arith.constant dense<0.000000e+00> : vector<8xf32>
    %57 = vector.multi_reduction <add>, %56, %cst_20 [0] : vector<64x8xf32> to vector<8xf32>
    %58 = vector.shape_cast %57 : vector<8xf32> to vector<1x8xf32>
    %cst_21 = arith.constant 1.000000e-24 : f32
    %59 = vector.broadcast %cst_21 : f32 to vector<1x8xf32>
    %60 = arith.maximumf %58, %59 : vector<1x8xf32>
    %61 = math.rsqrt %60 : vector<1x8xf32>
    %62 = vector.broadcast %61 : vector<1x8xf32> to vector<64x8xf32>
    %63 = arith.mulf %46, %62 : vector<64x8xf32>
    %64 = tpu.transpose %55, [1, 0] : vector<64x8xf32> -> vector<8x64xf32>
    %cst_22 = arith.constant dense<0.000000e+00> : vector<8x8xf32>
    %65 = tpu.matmul %64, %63, %cst_22 {dimension_numbers = #tpu.dot_dimension_numbers<[1], [0], [0], [1], [0, 0, 1, 1], [], []>} : vector<8x64xf32>, vector<64x8xf32>, vector<8x8xf32> -> vector<8x8xf32>
    %c1 = arith.constant 1 : index
    %c0_23 = arith.constant 0 : index
    %66 = vector.load %arg2[%c1, %c0_23] : memref<2x1xf32, #tpu.memory_space<vmem>>, vector<1x1xf32>
    %67 = vector.broadcast %66 : vector<1x1xf32> to vector<8x8xf32>
    %68 = arith.mulf %65, %67 : vector<8x8xf32>
    %cst_24 = arith.constant dense<0xFF800000> : vector<8xf32>
    %69 = vector.multi_reduction <maximumf>, %68, %cst_24 [1] : vector<8x8xf32> to vector<8xf32>
    %70 = vector.shape_cast %69 : vector<8xf32> to vector<8x1xf32>
    %71 = vector.broadcast %70 : vector<8x1xf32> to vector<8x8xf32>
    %72 = arith.subf %68, %71 : vector<8x8xf32>
    %73 = math.exp %72 : vector<8x8xf32>
    %cst_25 = arith.constant dense<0.000000e+00> : vector<8xf32>
    %74 = vector.multi_reduction <add>, %73, %cst_25 [1] : vector<8x8xf32> to vector<8xf32>
    %75 = vector.shape_cast %74 : vector<8xf32> to vector<8x1xf32>
    %76 = tpu.reciprocal %75 {approx = true} : vector<8x1xf32> -> vector<8x1xf32>
    %77 = vector.broadcast %76 : vector<8x1xf32> to vector<8x8xf32>
    %78 = arith.mulf %73, %77 : vector<8x8xf32>
    %cst_26 = arith.constant dense<0.000000e+00> : vector<64x8xf32>
    %79 = tpu.matmul %47, %78, %cst_26 {dimension_numbers = #tpu.dot_dimension_numbers<[1], [1], [0], [0], [0, 0, 1, 0], [], []>} : vector<64x8xf32>, vector<8x8xf32>, vector<64x8xf32> -> vector<64x8xf32>
    %80 = arith.truncf %79 : vector<64x8xf32> to vector<64x8xbf16>
    %c8 = arith.constant 8 : index
    %c0_27 = arith.constant 0 : index
    %81 = vector.load %arg3[%c8, %c0_27] : memref<16x16xbf16, #tpu.memory_space<vmem>>, vector<8x16xbf16>
    %cst_28 = arith.constant dense<0.000000e+00> : vector<64x16xf32>
    %82 = tpu.matmul %80, %81, %cst_28 {dimension_numbers = #tpu.dot_dimension_numbers<[1], [0], [0], [1], [0, 0, 1, 1], [], []>} : vector<64x8xbf16>, vector<8x16xbf16>, vector<64x16xf32> -> vector<64x16xf32>
    %83 = arith.addf %44, %82 : vector<64x16xf32>
    %c0_29 = arith.constant 0 : index
    %c0_30 = arith.constant 0 : index
    %84 = vector.load %arg6[%c0_29, %c0_30] : memref<64x16xf32, #tpu.memory_space<vmem>>, vector<64x16xf32>
    tpu.vector_store %arg6[%c0_29, %c0_30], %83 {strides = array<i32>} : memref<64x16xf32, #tpu.memory_space<vmem>>, vector<64x16xf32>,
    return
  }
  func.func @transform_0(%arg0: i32) -> (i32, i32, i32) {
    %c0_i32 = arith.constant 0 : i32
    %c0_i32_0 = arith.constant 0 : i32
    %c0_i32_1 = arith.constant 0 : i32
    return %arg0, %c0_i32, %c0_i32_0 : i32, i32, i32
  }
  func.func @transform_1(%arg0: i32) -> (i32, i32) {
    %c0_i32 = arith.constant 0 : i32
    %c0_i32_0 = arith.constant 0 : i32
    %c0_i32_1 = arith.constant 0 : i32
    return %c0_i32, %c0_i32_0 : i32, i32
  }
  func.func @transform_2(%arg0: i32) -> (i32, i32) {
    %c0_i32 = arith.constant 0 : i32
    %c0_i32_0 = arith.constant 0 : i32
    %c0_i32_1 = arith.constant 0 : i32
    return %c0_i32, %c0_i32_0 : i32, i32
  }
  func.func @transform_3(%arg0: i32) -> (i32, i32) {
    %c0_i32 = arith.constant 0 : i32
    %c0_i32_0 = arith.constant 0 : i32
    %c0_i32_1 = arith.constant 0 : i32
    return %c0_i32, %c0_i32_0 : i32, i32
  }
  func.func @transform_4(%arg0: i32) -> (i32, i32) {
    %c0_i32 = arith.constant 0 : i32
    %c0_i32_0 = arith.constant 0 : i32
    return %arg0, %c0_i32 : i32, i32
  }
  func.func @transform_5(%arg0: i32) -> (i32, i32) {
    %c0_i32 = arith.constant 0 : i32
    %c0_i32_0 = arith.constant 0 : i32
    return %arg0, %c0_i32 : i32, i32
  }
}

module attributes {stable_mosaic.version = 11 : i64} {
  func.func @_ln_matmul_kernel(%arg0: i32, %arg1: memref<128x16xf32, #tpu.memory_space<vmem>>, %arg2: memref<1x16xf32, #tpu.memory_space<vmem>>, %arg3: memref<1x16xf32, #tpu.memory_space<vmem>>, %arg4: memref<16x64xbf16, #tpu.memory_space<vmem>>, %arg5: memref<1x64xf32, #tpu.memory_space<vmem>>, %arg6: memref<128x64xf32, #tpu.memory_space<vmem>>) attributes {dimension_semantics = [#tpu.dimension_semantics<parallel>], iteration_bounds = array<i64: 1>, scalar_prefetch = 0 : i64, scratch_operands = 0 : i64, tpu.core_type = #tpu.core_type<tc>, window_params = [{transform_indices = @transform_0, window_bounds = array<i64: 128, 16>}, {pipeline_mode = #tpu.pipeline_mode<synchronous>, transform_indices = @transform_1, window_bounds = array<i64: 1, 16>}, {pipeline_mode = #tpu.pipeline_mode<synchronous>, transform_indices = @transform_2, window_bounds = array<i64: 1, 16>}, {pipeline_mode = #tpu.pipeline_mode<synchronous>, transform_indices = @transform_3, window_bounds = array<i64: 16, 64>}, {pipeline_mode = #tpu.pipeline_mode<synchronous>, transform_indices = @transform_4, window_bounds = array<i64: 1, 64>}, {transform_indices = @transform_5, window_bounds = array<i64: 128, 64>}]} {
    %c0 = arith.constant 0 : index
    %c0_0 = arith.constant 0 : index
    %0 = vector.load %arg1[%c0, %c0_0] : memref<128x16xf32, #tpu.memory_space<vmem>>, vector<128x16xf32>
    %cst = arith.constant dense<0.000000e+00> : vector<128xf32>
    %1 = vector.multi_reduction <add>, %0, %cst [1] : vector<128x16xf32> to vector<128xf32>
    %2 = vector.shape_cast %1 : vector<128xf32> to vector<128x1xf32>
    %cst_1 = arith.constant 1.600000e+01 : f32
    %3 = vector.broadcast %cst_1 : f32 to vector<128x1xf32>
    %4 = arith.divf %2, %3 : vector<128x1xf32>
    %5 = vector.broadcast %4 : vector<128x1xf32> to vector<128x16xf32>
    %6 = arith.subf %0, %5 : vector<128x16xf32>
    %7 = arith.mulf %6, %6 : vector<128x16xf32>
    %cst_2 = arith.constant dense<0.000000e+00> : vector<128xf32>
    %8 = vector.multi_reduction <add>, %7, %cst_2 [1] : vector<128x16xf32> to vector<128xf32>
    %9 = vector.shape_cast %8 : vector<128xf32> to vector<128x1xf32>
    %cst_3 = arith.constant 1.600000e+01 : f32
    %10 = vector.broadcast %cst_3 : f32 to vector<128x1xf32>
    %11 = arith.divf %9, %10 : vector<128x1xf32>
    %cst_4 = arith.constant 9.99999974E-6 : f32
    %12 = vector.broadcast %cst_4 : f32 to vector<128x1xf32>
    %13 = arith.addf %11, %12 : vector<128x1xf32>
    %14 = math.rsqrt %13 : vector<128x1xf32>
    %15 = vector.broadcast %14 : vector<128x1xf32> to vector<128x16xf32>
    %16 = arith.mulf %6, %15 : vector<128x16xf32>
    %c0_5 = arith.constant 0 : index
    %c0_6 = arith.constant 0 : index
    %17 = vector.load %arg2[%c0_5, %c0_6] : memref<1x16xf32, #tpu.memory_space<vmem>>, vector<1x16xf32>
    %18 = vector.broadcast %17 : vector<1x16xf32> to vector<128x16xf32>
    %19 = arith.mulf %16, %18 : vector<128x16xf32>
    %c0_7 = arith.constant 0 : index
    %c0_8 = arith.constant 0 : index
    %20 = vector.load %arg3[%c0_7, %c0_8] : memref<1x16xf32, #tpu.memory_space<vmem>>, vector<1x16xf32>
    %21 = vector.broadcast %20 : vector<1x16xf32> to vector<128x16xf32>
    %22 = arith.addf %19, %21 : vector<128x16xf32>
    %23 = arith.truncf %22 : vector<128x16xf32> to vector<128x16xbf16>
    %c0_9 = arith.constant 0 : index
    %c0_10 = arith.constant 0 : index
    %24 = vector.load %arg4[%c0_9, %c0_10] : memref<16x64xbf16, #tpu.memory_space<vmem>>, vector<16x64xbf16>
    %cst_11 = arith.constant dense<0.000000e+00> : vector<128x64xf32>
    %25 = tpu.matmul %23, %24, %cst_11 {dimension_numbers = #tpu.dot_dimension_numbers<[1], [0], [0], [1], [0, 0, 1, 1], [], []>} : vector<128x16xbf16>, vector<16x64xbf16>, vector<128x64xf32> -> vector<128x64xf32>
    %c0_12 = arith.constant 0 : index
    %c0_13 = arith.constant 0 : index
    %26 = vector.load %arg5[%c0_12, %c0_13] : memref<1x64xf32, #tpu.memory_space<vmem>>, vector<1x64xf32>
    %27 = vector.broadcast %26 : vector<1x64xf32> to vector<128x64xf32>
    %28 = arith.addf %25, %27 : vector<128x64xf32>
    %c0_14 = arith.constant 0 : index
    %c0_15 = arith.constant 0 : index
    %29 = vector.load %arg6[%c0_14, %c0_15] : memref<128x64xf32, #tpu.memory_space<vmem>>, vector<128x64xf32>
    tpu.vector_store %arg6[%c0_14, %c0_15], %28 {strides = array<i32>} : memref<128x64xf32, #tpu.memory_space<vmem>>, vector<128x64xf32>,
    return
  }
  func.func @transform_0(%arg0: i32) -> (i32, i32) {
    %c0_i32 = arith.constant 0 : i32
    %c0_i32_0 = arith.constant 0 : i32
    return %arg0, %c0_i32 : i32, i32
  }
  func.func @transform_1(%arg0: i32) -> (i32, i32) {
    %c0_i32 = arith.constant 0 : i32
    %c0_i32_0 = arith.constant 0 : i32
    %c0_i32_1 = arith.constant 0 : i32
    return %c0_i32, %c0_i32_0 : i32, i32
  }
  func.func @transform_2(%arg0: i32) -> (i32, i32) {
    %c0_i32 = arith.constant 0 : i32
    %c0_i32_0 = arith.constant 0 : i32
    %c0_i32_1 = arith.constant 0 : i32
    return %c0_i32, %c0_i32_0 : i32, i32
  }
  func.func @transform_3(%arg0: i32) -> (i32, i32) {
    %c0_i32 = arith.constant 0 : i32
    %c0_i32_0 = arith.constant 0 : i32
    %c0_i32_1 = arith.constant 0 : i32
    return %c0_i32, %c0_i32_0 : i32, i32
  }
  func.func @transform_4(%arg0: i32) -> (i32, i32) {
    %c0_i32 = arith.constant 0 : i32
    %c0_i32_0 = arith.constant 0 : i32
    %c0_i32_1 = arith.constant 0 : i32
    return %c0_i32, %c0_i32_0 : i32, i32
  }
  func.func @transform_5(%arg0: i32) -> (i32, i32) {
    %c0_i32 = arith.constant 0 : i32
    %c0_i32_0 = arith.constant 0 : i32
    return %arg0, %c0_i32 : i32, i32
  }
}

module attributes {stable_mosaic.version = 11 : i64} {
  func.func @_matmul_res_kernel(%arg0: i32, %arg1: memref<128x32xf32, #tpu.memory_space<vmem>>, %arg2: memref<32x16xbf16, #tpu.memory_space<vmem>>, %arg3: memref<1x16xf32, #tpu.memory_space<vmem>>, %arg4: memref<128x16xf32, #tpu.memory_space<vmem>>, %arg5: memref<128x16xf32, #tpu.memory_space<vmem>>) attributes {dimension_semantics = [#tpu.dimension_semantics<parallel>], iteration_bounds = array<i64: 1>, scalar_prefetch = 0 : i64, scratch_operands = 0 : i64, tpu.core_type = #tpu.core_type<tc>, window_params = [{transform_indices = @transform_0, window_bounds = array<i64: 128, 32>}, {pipeline_mode = #tpu.pipeline_mode<synchronous>, transform_indices = @transform_1, window_bounds = array<i64: 32, 16>}, {pipeline_mode = #tpu.pipeline_mode<synchronous>, transform_indices = @transform_2, window_bounds = array<i64: 1, 16>}, {transform_indices = @transform_3, window_bounds = array<i64: 128, 16>}, {transform_indices = @transform_4, window_bounds = array<i64: 128, 16>}]} {
    %c0 = arith.constant 0 : index
    %c0_0 = arith.constant 0 : index
    %0 = vector.load %arg1[%c0, %c0_0] : memref<128x32xf32, #tpu.memory_space<vmem>>, vector<128x32xf32>
    %1 = arith.truncf %0 : vector<128x32xf32> to vector<128x32xbf16>
    %c0_1 = arith.constant 0 : index
    %c0_2 = arith.constant 0 : index
    %2 = vector.load %arg2[%c0_1, %c0_2] : memref<32x16xbf16, #tpu.memory_space<vmem>>, vector<32x16xbf16>
    %cst = arith.constant dense<0.000000e+00> : vector<128x16xf32>
    %3 = tpu.matmul %1, %2, %cst {dimension_numbers = #tpu.dot_dimension_numbers<[1], [0], [0], [1], [0, 0, 1, 1], [], []>} : vector<128x32xbf16>, vector<32x16xbf16>, vector<128x16xf32> -> vector<128x16xf32>
    %c0_3 = arith.constant 0 : index
    %c0_4 = arith.constant 0 : index
    %4 = vector.load %arg3[%c0_3, %c0_4] : memref<1x16xf32, #tpu.memory_space<vmem>>, vector<1x16xf32>
    %5 = vector.broadcast %4 : vector<1x16xf32> to vector<128x16xf32>
    %6 = arith.addf %3, %5 : vector<128x16xf32>
    %c0_5 = arith.constant 0 : index
    %c0_6 = arith.constant 0 : index
    %7 = vector.load %arg4[%c0_5, %c0_6] : memref<128x16xf32, #tpu.memory_space<vmem>>, vector<128x16xf32>
    %8 = arith.addf %6, %7 : vector<128x16xf32>
    %c0_7 = arith.constant 0 : index
    %c0_8 = arith.constant 0 : index
    %9 = vector.load %arg5[%c0_7, %c0_8] : memref<128x16xf32, #tpu.memory_space<vmem>>, vector<128x16xf32>
    tpu.vector_store %arg5[%c0_7, %c0_8], %8 {strides = array<i32>} : memref<128x16xf32, #tpu.memory_space<vmem>>, vector<128x16xf32>,
    return
  }
  func.func @transform_0(%arg0: i32) -> (i32, i32) {
    %c0_i32 = arith.constant 0 : i32
    %c0_i32_0 = arith.constant 0 : i32
    return %arg0, %c0_i32 : i32, i32
  }
  func.func @transform_1(%arg0: i32) -> (i32, i32) {
    %c0_i32 = arith.constant 0 : i32
    %c0_i32_0 = arith.constant 0 : i32
    %c0_i32_1 = arith.constant 0 : i32
    return %c0_i32, %c0_i32_0 : i32, i32
  }
  func.func @transform_2(%arg0: i32) -> (i32, i32) {
    %c0_i32 = arith.constant 0 : i32
    %c0_i32_0 = arith.constant 0 : i32
    %c0_i32_1 = arith.constant 0 : i32
    return %c0_i32, %c0_i32_0 : i32, i32
  }
  func.func @transform_3(%arg0: i32) -> (i32, i32) {
    %c0_i32 = arith.constant 0 : i32
    %c0_i32_0 = arith.constant 0 : i32
    return %arg0, %c0_i32 : i32, i32
  }
  func.func @transform_4(%arg0: i32) -> (i32, i32) {
    %c0_i32 = arith.constant 0 : i32
    %c0_i32_0 = arith.constant 0 : i32
    return %arg0, %c0_i32 : i32, i32
  }
}

module attributes {stable_mosaic.version = 11 : i64} {
  func.func @_dwconv3x3_gelu_kernel(%arg0: i32, %arg1: memref<1x8x8x64xf32, #tpu.memory_space<vmem>>, %arg2: memref<9x64xf32, #tpu.memory_space<vmem>>, %arg3: memref<1x64xf32, #tpu.memory_space<vmem>>, %arg4: memref<1x8x8x32xf32, #tpu.memory_space<vmem>>, %arg5: memref<10x10x64xf32, #tpu.memory_space<vmem>>) attributes {dimension_semantics = [#tpu.dimension_semantics<parallel>], iteration_bounds = array<i64: 2>, scalar_prefetch = 0 : i64, scratch_operands = 1 : i64, tpu.core_type = #tpu.core_type<tc>, window_params = [{transform_indices = @transform_0, window_bounds = array<i64: 1, 8, 8, 64>}, {pipeline_mode = #tpu.pipeline_mode<synchronous>, transform_indices = @transform_1, window_bounds = array<i64: 9, 64>}, {pipeline_mode = #tpu.pipeline_mode<synchronous>, transform_indices = @transform_2, window_bounds = array<i64: 1, 64>}, {transform_indices = @transform_3, window_bounds = array<i64: 1, 8, 8, 32>}]} {
    %cst = arith.constant 0.000000e+00 : f32
    %0 = vector.broadcast %cst : f32 to vector<1x10x64xf32>
    %cst_0 = arith.constant 0.000000e+00 : f32
    %1 = vector.broadcast %cst_0 : f32 to vector<10x1x64xf32>
    %c0 = arith.constant 0 : index
    %c0_1 = arith.constant 0 : index
    %c0_2 = arith.constant 0 : index
    %2 = vector.load %arg5[%c0, %c0_1, %c0_2] : memref<10x10x64xf32, #tpu.memory_space<vmem>>, vector<1x10x64xf32>
    tpu.vector_store %arg5[%c0, %c0_1, %c0_2], %0 {strides = array<i32>} : memref<10x10x64xf32, #tpu.memory_space<vmem>>, vector<1x10x64xf32>,
    %c9 = arith.constant 9 : index
    %c0_3 = arith.constant 0 : index
    %c0_4 = arith.constant 0 : index
    %3 = vector.load %arg5[%c9, %c0_3, %c0_4] : memref<10x10x64xf32, #tpu.memory_space<vmem>>, vector<1x10x64xf32>
    tpu.vector_store %arg5[%c9, %c0_3, %c0_4], %0 {strides = array<i32>} : memref<10x10x64xf32, #tpu.memory_space<vmem>>, vector<1x10x64xf32>,
    %c0_5 = arith.constant 0 : index
    %c0_6 = arith.constant 0 : index
    %c0_7 = arith.constant 0 : index
    %4 = vector.load %arg5[%c0_5, %c0_6, %c0_7] : memref<10x10x64xf32, #tpu.memory_space<vmem>>, vector<10x1x64xf32>
    tpu.vector_store %arg5[%c0_5, %c0_6, %c0_7], %1 {strides = array<i32>} : memref<10x10x64xf32, #tpu.memory_space<vmem>>, vector<10x1x64xf32>,
    %c0_8 = arith.constant 0 : index
    %c9_9 = arith.constant 9 : index
    %c0_10 = arith.constant 0 : index
    %5 = vector.load %arg5[%c0_8, %c9_9, %c0_10] : memref<10x10x64xf32, #tpu.memory_space<vmem>>, vector<10x1x64xf32>
    tpu.vector_store %arg5[%c0_8, %c9_9, %c0_10], %1 {strides = array<i32>} : memref<10x10x64xf32, #tpu.memory_space<vmem>>, vector<10x1x64xf32>,
    %c0_11 = arith.constant 0 : index
    %c0_12 = arith.constant 0 : index
    %c0_13 = arith.constant 0 : index
    %c0_14 = arith.constant 0 : index
    %6 = vector.load %arg1[%c0_11, %c0_12, %c0_13, %c0_14] : memref<1x8x8x64xf32, #tpu.memory_space<vmem>>, vector<1x8x8x64xf32>
    %7 = vector.shape_cast %6 : vector<1x8x8x64xf32> to vector<8x8x64xf32>
    %c1 = arith.constant 1 : index
    %c1_15 = arith.constant 1 : index
    %c0_16 = arith.constant 0 : index
    %8 = vector.load %arg5[%c1, %c1_15, %c0_16] : memref<10x10x64xf32, #tpu.memory_space<vmem>>, vector<8x8x64xf32>
    tpu.vector_store %arg5[%c1, %c1_15, %c0_16], %7 {strides = array<i32>} : memref<10x10x64xf32, #tpu.memory_space<vmem>>, vector<8x8x64xf32>,
    %c0_17 = arith.constant 0 : index
    %c0_18 = arith.constant 0 : index
    %c0_19 = arith.constant 0 : index
    %9 = vector.load %arg5[%c0_17, %c0_18, %c0_19] : memref<10x10x64xf32, #tpu.memory_space<vmem>>, vector<10x10x64xf32>
    %cst_20 = arith.constant 0.000000e+00 : f32
    %10 = vector.broadcast %cst_20 : f32 to vector<8x8x64xf32>
    %11 = vector.extract_strided_slice %9 {offsets = [0, 0, 0], sizes = [10, 8, 64], strides = [1, 1, 1]} : vector<10x10x64xf32> to vector<10x8x64xf32>
    %c0_21 = arith.constant 0 : index
    %c0_22 = arith.constant 0 : index
    %12 = vector.load %arg2[%c0_21, %c0_22] : memref<9x64xf32, #tpu.memory_space<vmem>>, vector<1x64xf32>
    %13 = vector.shape_cast %12 : vector<1x64xf32> to vector<64xf32>
    %14 = vector.shape_cast %13 : vector<64xf32> to vector<1x1x64xf32>
    %15 = vector.extract_strided_slice %11 {offsets = [0, 0, 0], sizes = [8, 8, 64], strides = [1, 1, 1]} : vector<10x8x64xf32> to vector<8x8x64xf32>
    %16 = vector.broadcast %14 : vector<1x1x64xf32> to vector<8x8x64xf32>
    %17 = arith.mulf %15, %16 : vector<8x8x64xf32>
    %18 = arith.addf %10, %17 : vector<8x8x64xf32>
    %c3 = arith.constant 3 : index
    %c0_23 = arith.constant 0 : index
    %19 = vector.load %arg2[%c3, %c0_23] : memref<9x64xf32, #tpu.memory_space<vmem>>, vector<1x64xf32>
    %20 = vector.shape_cast %19 : vector<1x64xf32> to vector<64xf32>
    %21 = vector.shape_cast %20 : vector<64xf32> to vector<1x1x64xf32>
    %22 = vector.extract_strided_slice %11 {offsets = [1, 0, 0], sizes = [8, 8, 64], strides = [1, 1, 1]} : vector<10x8x64xf32> to vector<8x8x64xf32>
    %23 = vector.broadcast %21 : vector<1x1x64xf32> to vector<8x8x64xf32>
    %24 = arith.mulf %22, %23 : vector<8x8x64xf32>
    %25 = arith.addf %18, %24 : vector<8x8x64xf32>
    %c6 = arith.constant 6 : index
    %c0_24 = arith.constant 0 : index
    %26 = vector.load %arg2[%c6, %c0_24] : memref<9x64xf32, #tpu.memory_space<vmem>>, vector<1x64xf32>
    %27 = vector.shape_cast %26 : vector<1x64xf32> to vector<64xf32>
    %28 = vector.shape_cast %27 : vector<64xf32> to vector<1x1x64xf32>
    %29 = vector.extract_strided_slice %11 {offsets = [2, 0, 0], sizes = [8, 8, 64], strides = [1, 1, 1]} : vector<10x8x64xf32> to vector<8x8x64xf32>
    %30 = vector.broadcast %28 : vector<1x1x64xf32> to vector<8x8x64xf32>
    %31 = arith.mulf %29, %30 : vector<8x8x64xf32>
    %32 = arith.addf %25, %31 : vector<8x8x64xf32>
    %33 = vector.extract_strided_slice %9 {offsets = [0, 1, 0], sizes = [10, 8, 64], strides = [1, 1, 1]} : vector<10x10x64xf32> to vector<10x8x64xf32>
    %c1_25 = arith.constant 1 : index
    %c0_26 = arith.constant 0 : index
    %34 = vector.load %arg2[%c1_25, %c0_26] : memref<9x64xf32, #tpu.memory_space<vmem>>, vector<1x64xf32>
    %35 = vector.shape_cast %34 : vector<1x64xf32> to vector<64xf32>
    %36 = vector.shape_cast %35 : vector<64xf32> to vector<1x1x64xf32>
    %37 = vector.extract_strided_slice %33 {offsets = [0, 0, 0], sizes = [8, 8, 64], strides = [1, 1, 1]} : vector<10x8x64xf32> to vector<8x8x64xf32>
    %38 = vector.broadcast %36 : vector<1x1x64xf32> to vector<8x8x64xf32>
    %39 = arith.mulf %37, %38 : vector<8x8x64xf32>
    %40 = arith.addf %32, %39 : vector<8x8x64xf32>
    %c4 = arith.constant 4 : index
    %c0_27 = arith.constant 0 : index
    %41 = vector.load %arg2[%c4, %c0_27] : memref<9x64xf32, #tpu.memory_space<vmem>>, vector<1x64xf32>
    %42 = vector.shape_cast %41 : vector<1x64xf32> to vector<64xf32>
    %43 = vector.shape_cast %42 : vector<64xf32> to vector<1x1x64xf32>
    %44 = vector.extract_strided_slice %33 {offsets = [1, 0, 0], sizes = [8, 8, 64], strides = [1, 1, 1]} : vector<10x8x64xf32> to vector<8x8x64xf32>
    %45 = vector.broadcast %43 : vector<1x1x64xf32> to vector<8x8x64xf32>
    %46 = arith.mulf %44, %45 : vector<8x8x64xf32>
    %47 = arith.addf %40, %46 : vector<8x8x64xf32>
    %c7 = arith.constant 7 : index
    %c0_28 = arith.constant 0 : index
    %48 = vector.load %arg2[%c7, %c0_28] : memref<9x64xf32, #tpu.memory_space<vmem>>, vector<1x64xf32>
    %49 = vector.shape_cast %48 : vector<1x64xf32> to vector<64xf32>
    %50 = vector.shape_cast %49 : vector<64xf32> to vector<1x1x64xf32>
    %51 = vector.extract_strided_slice %33 {offsets = [2, 0, 0], sizes = [8, 8, 64], strides = [1, 1, 1]} : vector<10x8x64xf32> to vector<8x8x64xf32>
    %52 = vector.broadcast %50 : vector<1x1x64xf32> to vector<8x8x64xf32>
    %53 = arith.mulf %51, %52 : vector<8x8x64xf32>
    %54 = arith.addf %47, %53 : vector<8x8x64xf32>
    %55 = vector.extract_strided_slice %9 {offsets = [0, 2, 0], sizes = [10, 8, 64], strides = [1, 1, 1]} : vector<10x10x64xf32> to vector<10x8x64xf32>
    %c2 = arith.constant 2 : index
    %c0_29 = arith.constant 0 : index
    %56 = vector.load %arg2[%c2, %c0_29] : memref<9x64xf32, #tpu.memory_space<vmem>>, vector<1x64xf32>
    %57 = vector.shape_cast %56 : vector<1x64xf32> to vector<64xf32>
    %58 = vector.shape_cast %57 : vector<64xf32> to vector<1x1x64xf32>
    %59 = vector.extract_strided_slice %55 {offsets = [0, 0, 0], sizes = [8, 8, 64], strides = [1, 1, 1]} : vector<10x8x64xf32> to vector<8x8x64xf32>
    %60 = vector.broadcast %58 : vector<1x1x64xf32> to vector<8x8x64xf32>
    %61 = arith.mulf %59, %60 : vector<8x8x64xf32>
    %62 = arith.addf %54, %61 : vector<8x8x64xf32>
    %c5 = arith.constant 5 : index
    %c0_30 = arith.constant 0 : index
    %63 = vector.load %arg2[%c5, %c0_30] : memref<9x64xf32, #tpu.memory_space<vmem>>, vector<1x64xf32>
    %64 = vector.shape_cast %63 : vector<1x64xf32> to vector<64xf32>
    %65 = vector.shape_cast %64 : vector<64xf32> to vector<1x1x64xf32>
    %66 = vector.extract_strided_slice %55 {offsets = [1, 0, 0], sizes = [8, 8, 64], strides = [1, 1, 1]} : vector<10x8x64xf32> to vector<8x8x64xf32>
    %67 = vector.broadcast %65 : vector<1x1x64xf32> to vector<8x8x64xf32>
    %68 = arith.mulf %66, %67 : vector<8x8x64xf32>
    %69 = arith.addf %62, %68 : vector<8x8x64xf32>
    %c8 = arith.constant 8 : index
    %c0_31 = arith.constant 0 : index
    %70 = vector.load %arg2[%c8, %c0_31] : memref<9x64xf32, #tpu.memory_space<vmem>>, vector<1x64xf32>
    %71 = vector.shape_cast %70 : vector<1x64xf32> to vector<64xf32>
    %72 = vector.shape_cast %71 : vector<64xf32> to vector<1x1x64xf32>
    %73 = vector.extract_strided_slice %55 {offsets = [2, 0, 0], sizes = [8, 8, 64], strides = [1, 1, 1]} : vector<10x8x64xf32> to vector<8x8x64xf32>
    %74 = vector.broadcast %72 : vector<1x1x64xf32> to vector<8x8x64xf32>
    %75 = arith.mulf %73, %74 : vector<8x8x64xf32>
    %76 = arith.addf %69, %75 : vector<8x8x64xf32>
    %c0_32 = arith.constant 0 : index
    %c0_33 = arith.constant 0 : index
    %77 = vector.load %arg3[%c0_32, %c0_33] : memref<1x64xf32, #tpu.memory_space<vmem>>, vector<1x64xf32>
    %78 = vector.shape_cast %77 : vector<1x64xf32> to vector<1x1x64xf32>
    %79 = vector.broadcast %78 : vector<1x1x64xf32> to vector<8x8x64xf32>
    %80 = arith.addf %76, %79 : vector<8x8x64xf32>
    %81 = vector.extract_strided_slice %80 {offsets = [0, 0, 0], sizes = [8, 8, 32], strides = [1, 1, 1]} : vector<8x8x64xf32> to vector<8x8x32xf32>
    %82 = vector.extract_strided_slice %80 {offsets = [0, 0, 32], sizes = [8, 8, 32], strides = [1, 1, 1]} : vector<8x8x64xf32> to vector<8x8x32xf32>
    %cst_34 = arith.constant 5.000000e-01 : f32
    %83 = vector.broadcast %cst_34 : f32 to vector<8x8x32xf32>
    %84 = arith.mulf %83, %81 : vector<8x8x32xf32>
    %cst_35 = arith.constant 0.707106769 : f32
    %85 = vector.broadcast %cst_35 : f32 to vector<8x8x32xf32>
    %86 = arith.mulf %81, %85 : vector<8x8x32xf32>
    %87 = math.absf %86 : vector<8x8x32xf32>
    %cst_36 = arith.constant 0.327591091 : f32
    %88 = vector.broadcast %cst_36 : f32 to vector<8x8x32xf32>
    %89 = arith.mulf %88, %87 : vector<8x8x32xf32>
    %cst_37 = arith.constant 1.000000e+00 : f32
    %90 = vector.broadcast %cst_37 : f32 to vector<8x8x32xf32>
    %91 = arith.addf %90, %89 : vector<8x8x32xf32>
    %cst_38 = arith.constant 1.000000e+00 : f32
    %92 = vector.broadcast %cst_38 : f32 to vector<8x8x32xf32>
    %93 = arith.divf %92, %91 : vector<8x8x32xf32>
    %cst_39 = arith.constant 1.06140542 : f32
    %94 = vector.broadcast %cst_39 : f32 to vector<8x8x32xf32>
    %95 = arith.mulf %94, %93 : vector<8x8x32xf32>
    %cst_40 = arith.constant -1.45315206 : f32
    %96 = vector.broadcast %cst_40 : f32 to vector<8x8x32xf32>
    %97 = arith.addf %95, %96 : vector<8x8x32xf32>
    %98 = arith.mulf %97, %93 : vector<8x8x32xf32>
    %cst_41 = arith.constant 1.42141378 : f32
    %99 = vector.broadcast %cst_41 : f32 to vector<8x8x32xf32>
    %100 = arith.addf %98, %99 : vector<8x8x32xf32>
    %101 = arith.mulf %100, %93 : vector<8x8x32xf32>
    %cst_42 = arith.constant -0.284496725 : f32
    %102 = vector.broadcast %cst_42 : f32 to vector<8x8x32xf32>
    %103 = arith.addf %101, %102 : vector<8x8x32xf32>
    %104 = arith.mulf %103, %93 : vector<8x8x32xf32>
    %cst_43 = arith.constant 0.254829586 : f32
    %105 = vector.broadcast %cst_43 : f32 to vector<8x8x32xf32>
    %106 = arith.addf %104, %105 : vector<8x8x32xf32>
    %107 = arith.mulf %106, %93 : vector<8x8x32xf32>
    %cst_44 = arith.constant 0.000000e+00 : f32
    %108 = vector.broadcast %cst_44 : f32 to vector<8x8x32xf32>
    %109 = arith.subf %108, %87 : vector<8x8x32xf32>
    %110 = arith.mulf %109, %87 : vector<8x8x32xf32>
    %111 = math.exp %110 : vector<8x8x32xf32>
    %112 = arith.mulf %107, %111 : vector<8x8x32xf32>
    %cst_45 = arith.constant 1.000000e+00 : f32
    %113 = vector.broadcast %cst_45 : f32 to vector<8x8x32xf32>
    %114 = arith.subf %113, %112 : vector<8x8x32xf32>
    %cst_46 = arith.constant 0.000000e+00 : f32
    %115 = vector.broadcast %cst_46 : f32 to vector<8x8x32xf32>
    %116 = arith.cmpf olt, %86, %115 : vector<8x8x32xf32>
    %cst_47 = arith.constant 0.000000e+00 : f32
    %117 = vector.broadcast %cst_47 : f32 to vector<8x8x32xf32>
    %118 = arith.subf %117, %114 : vector<8x8x32xf32>
    %119 = arith.select %116, %118, %114 : vector<8x8x32xi1>, vector<8x8x32xf32>
    %cst_48 = arith.constant 1.000000e+00 : f32
    %120 = vector.broadcast %cst_48 : f32 to vector<8x8x32xf32>
    %121 = arith.addf %120, %119 : vector<8x8x32xf32>
    %122 = arith.mulf %84, %121 : vector<8x8x32xf32>
    %123 = arith.mulf %122, %82 : vector<8x8x32xf32>
    %c0_49 = arith.constant 0 : index
    %c0_50 = arith.constant 0 : index
    %c0_51 = arith.constant 0 : index
    %c0_52 = arith.constant 0 : index
    %124 = vector.load %arg4[%c0_49, %c0_50, %c0_51, %c0_52] : memref<1x8x8x32xf32, #tpu.memory_space<vmem>>, vector<1x8x8x32xf32>
    %125 = vector.shape_cast %124 : vector<1x8x8x32xf32> to vector<8x8x32xf32>
    %126 = vector.shape_cast %123 : vector<8x8x32xf32> to vector<1x8x8x32xf32>
    tpu.vector_store %arg4[%c0_49, %c0_50, %c0_51, %c0_52], %126 {strides = array<i32>} : memref<1x8x8x32xf32, #tpu.memory_space<vmem>>, vector<1x8x8x32xf32>,
    return
  }
  func.func @transform_0(%arg0: i32) -> (i32, i32, i32, i32) {
    %c0_i32 = arith.constant 0 : i32
    %c0_i32_0 = arith.constant 0 : i32
    %c0_i32_1 = arith.constant 0 : i32
    %c0_i32_2 = arith.constant 0 : i32
    return %arg0, %c0_i32, %c0_i32_0, %c0_i32_1 : i32, i32, i32, i32
  }
  func.func @transform_1(%arg0: i32) -> (i32, i32) {
    %c0_i32 = arith.constant 0 : i32
    %c0_i32_0 = arith.constant 0 : i32
    %c0_i32_1 = arith.constant 0 : i32
    return %c0_i32, %c0_i32_0 : i32, i32
  }
  func.func @transform_2(%arg0: i32) -> (i32, i32) {
    %c0_i32 = arith.constant 0 : i32
    %c0_i32_0 = arith.constant 0 : i32
    %c0_i32_1 = arith.constant 0 : i32
    return %c0_i32, %c0_i32_0 : i32, i32
  }
  func.func @transform_3(%arg0: i32) -> (i32, i32, i32, i32) {
    %c0_i32 = arith.constant 0 : i32
    %c0_i32_0 = arith.constant 0 : i32
    %c0_i32_1 = arith.constant 0 : i32
    %c0_i32_2 = arith.constant 0 : i32
    return %arg0, %c0_i32, %c0_i32_0, %c0_i32_1 : i32, i32, i32, i32
  }
}

</mosaic_0001>

<llo_original>
// kernel: transformer_block.7
$region0: #{transformer_block.7}
  #allocation0 [shape = 'u32[]', space=smem, size = 0x4, offset = 0x4, fixed_abs, tag = 'smem constant byte address 0x4 - core index']
  #allocation1 [shape = 'u32[72,128]{1,0:T(1,128)}', space=vmem, size = 0x9000, scoped, tag = 'internal scratch']
  #allocation2 [shape = 'f32[10,10,48]{2,1,0:T(8,128)}', space=vmem, size = 0x14000, scoped, tag = 'scratch operand']
  %s0 = inlined_call_operand.vmem [shape: f32[2,8,8,48], index: 0, kind: input, shape index: {}]
  %s1 = inlined_call_operand.vmem [shape: f32[9,48], index: 1, kind: input, shape index: {}]
  %s2 = inlined_call_operand.vmem [shape: f32[1,48], index: 2, kind: input, shape index: {}]
  %s3 = inlined_call_operand.vmem [shape: f32[2,8,8,48], index: 3, kind: output, shape index: {}]
  %s4 = sld [smem:[#allocation0]]
  $region45: #{transformer_block.7} parent=0
    _
  %s6 = ssub.s32 1, %s4
  %s7 = scalar_select 0, %s6, %s4
  loop: start=0, step=1, limit=4
  $region2: #{transformer_block.7} parent=0 // loop_pre_header
    _
  $region3: #{transformer_block.7} parent=0 // loop_header
    %s9 = sphi 0, %s13
    %p10 = scmp.ge.s32.totalorder %s9, 4
    %s19 = sphi 0, %s21
    %s22 = sphi 0, %s19
    %s23 = sphi 0, %s22
    %s39 = sphi 0, %s23
    %s43 = sphi 0, %s43
    %s45 = sphi 0, %s43
    %s46 = sphi 0, %s45
    %s60 = sphi 0, %s46
    %s64 = sphi 0, %s64
    %s66 = sphi 0, %s64
    %s67 = sphi 0, %s66
    %s81 = sphi 0, %s67
    %s87 = sphi 0, %s89
    %s90 = sphi 0, %s87
    %s91 = sphi 0, %s90
    %s107 = sphi 0, %s91
  $region4: #{transformer_block.7} parent=0 // loop_header_branch
    %12 = sbr.rel (%p10) target = $region8
  $region5: #{transformer_block.7} parent=0 // loop_body
    %s14 = ssub.s32 %s9, 1
    %s15 = ssub.s32 %s9, 2
    %s16 = sadd.s32 %s9, 1
    %s17 = ssub.s32 %s9, %s16
    %p18 = scmp.eq.s32.totalorder %s17, 0
    %s20 = sadd.s32 %s19, 1
    %s21 = scalar_select %p18, %s19, %s20
    %p24 = pneg %p18
    %p25 = scmp.eq.s32.totalorder %s9, 1
    %p26 = por %p24, %p25
    %p27 = scmp.ne.s32.totalorder %s19, %s22
    %p28 = scmp.eq.s32.totalorder %s9, 0
    %p29 = por %p27, %p28
    %p30 = scmp.ne.s32.totalorder %s19, %s22
    %p31 = scmp.eq.s32.totalorder %s14, 1
    %p32 = por %p30, %p31
    %p33 = scmp.ne.s32.totalorder %s22, %s23
    %p34 = scmp.eq.s32.totalorder %s14, 0
    %p35 = por %p33, %p34
    %p36 = scmp.ne.s32.totalorder %s22, %s23
    %p37 = scmp.eq.s32.totalorder %s15, 1
    %p38 = por %p36, %p37
    %p40 = scmp.ne.s32.totalorder %s23, %s39
    %p41 = scmp.eq.s32.totalorder %s15, 0
    %p42 = por %p40, %p41
    %s44 = sadd.s32 %s43, 1
    %p47 = scmp.eq.s32.totalorder %s9, 1
    %p48 = scmp.ne.s32.totalorder %s43, %s45
    %p49 = scmp.eq.s32.totalorder %s9, 0
    %p50 = por %p48, %p49
    %p51 = scmp.ne.s32.totalorder %s43, %s45
    %p52 = scmp.eq.s32.totalorder %s14, 1
    %p53 = por %p51, %p52
    %p54 = scmp.ne.s32.totalorder %s45, %s46
    %p55 = scmp.eq.s32.totalorder %s14, 0
    %p56 = por %p54, %p55
    %p57 = scmp.ne.s32.totalorder %s45, %s46
    %p58 = scmp.eq.s32.totalorder %s15, 1
    %p59 = por %p57, %p58
    %p61 = scmp.ne.s32.totalorder %s46, %s60
    %p62 = scmp.eq.s32.totalorder %s15, 0
    %p63 = por %p61, %p62
    %s65 = sadd.s32 %s64, 1
    %p68 = scmp.eq.s32.totalorder %s9, 1
    %p69 = scmp.ne.s32.totalorder %s64, %s66
    %p70 = scmp.eq.s32.totalorder %s9, 0
    %p71 = por %p69, %p70
    %p72 = scmp.ne.s32.totalorder %s64, %s66
    %p73 = scmp.eq.s32.totalorder %s14, 1
    %p74 = por %p72, %p73
    %p75 = scmp.ne.s32.totalorder %s66, %s67
    %p76 = scmp.eq.s32.totalorder %s14, 0
    %p77 = por %p75, %p76
    %p78 = scmp.ne.s32.totalorder %s66, %s67
    %p79 = scmp.eq.s32.totalorder %s15, 1
    %p80 = por %p78, %p79
    %p82 = scmp.ne.s32.totalorder %s67, %s81
    %p83 = scmp.eq.s32.totalorder %s15, 0
    %p84 = por %p82, %p83
    %s85 = ssub.s32 %s9, %s16
    %p86 = scmp.eq.s32.totalorder %s85, 0
    %s88 = sadd.s32 %s87, 1
    %s89 = scalar_select %p86, %s87, %s88
    %p92 = pneg %p86
    %p93 = scmp.eq.s32.totalorder %s9, 1
    %p94 = por %p92, %p93
    %p95 = scmp.ne.s32.totalorder %s87, %s90
    %p96 = scmp.eq.s32.totalorder %s9, 0
    %p97 = por %p95, %p96
    %p98 = scmp.ne.s32.totalorder %s87, %s90
    %p99 = scmp.eq.s32.totalorder %s14, 1
    %p100 = por %p98, %p99
    %p101 = scmp.ne.s32.totalorder %s90, %s91
    %p102 = scmp.eq.s32.totalorder %s14, 0
    %p103 = por %p101, %p102
    %p104 = scmp.ne.s32.totalorder %s90, %s91
    %p105 = scmp.eq.s32.totalorder %s15, 1
    %p106 = por %p104, %p105
    %p108 = scmp.ne.s32.totalorder %s91, %s107
    %p109 = scmp.eq.s32.totalorder %s15, 0
    %p110 = por %p108, %p109
    %p111 = scmp.le.s32.totalorder 1, %s9
    %p112 = scmp.lt.s32.totalorder %s9, 3
    %p113 = pnand %p111, %p112
    %p114 = pneg %p113
    // Predicated region
    $region9: #{transformer_block.7} parent=5 // pred_check
      _
    $region10: #{transformer_block.7} parent=5 // pred_check_branch
      %116 = sbr.rel (%p113) target = $region12
    $region11: #{transformer_block.7} parent=5 // pred_region
      %s117 = ssub.s32 %s9, 1
      // Predicated region
      $region13: #{transformer_block.7} parent=11 // pred_check
        %p118 = pneg %p56
      $region14: #{transformer_block.7} parent=11 // pred_check_branch
        %120 = sbr.rel (%p118) target = $region16
      $region15: #{transformer_block.7} parent=11 // pred_region
        _
      $region16: #{transformer_block.7} parent=11 // pred_fallthru
        _
      // Predicated region
      $region17: #{transformer_block.7} parent=11 // pred_check
        %p121 = pneg %p77
      $region18: #{transformer_block.7} parent=11 // pred_check_branch
        %123 = sbr.rel (%p121) target = $region20
      $region19: #{transformer_block.7} parent=11 // pred_region
        _
      $region20: #{transformer_block.7} parent=11 // pred_fallthru
        _
    $region12: #{transformer_block.7} parent=5 // pred_fallthru
      _
    %p124 = scmp.lt.s32.totalorder %s9, 2
    // Predicated region
    $region21: #{transformer_block.7} parent=5 // pred_check
      %p125 = pneg %p124
    $region22: #{transformer_block.7} parent=5 // pred_check_branch
      %127 = sbr.rel (%p125) target = $region24
    $region23: #{transformer_block.7} parent=5 // pred_region
      // Predicated region
      $region25: #{transformer_block.7} parent=23 // pred_check
        %p128 = pneg %p29
      $region26: #{transformer_block.7} parent=23 // pred_check_branch
        %130 = sbr.rel (%p128) target = $region28
      $region27: #{transformer_block.7} parent=23 // pred_region
        %p131 = scmp.lt.s32.totalorder %s9, 1
        %s132 = scalar_select %p131, %s9, 1
        %s133 = smul.addr %s132, 8
        %s134 = smul.addr %s133, 8
        %s135 = scalar_lea.vmem %s0, %s134
      $region28: #{transformer_block.7} parent=23 // pred_fallthru
        _
    $region24: #{transformer_block.7} parent=5 // pred_fallthru
      _
    %p136 = scmp.le.s32.totalorder 1, %s9
    %p137 = scmp.lt.s32.totalorder %s9, 3
    %p138 = pnand %p136, %p137
    %p139 = pneg %p138
    // Predicated region
    $region29: #{transformer_block.7} parent=5 // pred_check
      _
    $region30: #{transformer_block.7} parent=5 // pred_check_branch
      %141 = sbr.rel (%p138) target = $region32
    $region31: #{transformer_block.7} parent=5 // pred_region
      %s142 = ssub.s32 %s9, 1
      %p143 = scmp.lt.s32.totalorder %s14, 1
      %s144 = scalar_select %p143, %s14, 1
      %s145 = smul.addr %s144, 8
      %s146 = smul.addr %s145, 8
      %s147 = scalar_lea.vmem %s0, %s146
      %p148 = pneg %p35
      %p149 = pneg %p32
      %p150 = pneg %p56
      %p151 = pneg %p53
      %p152 = pneg %p77
      %p153 = pneg %p74
      %p154 = pneg %p103
      %p155 = pneg %p100
      %p156 = scmp.lt.s32.totalorder %s14, 1
      %s157 = scalar_select %p156, %s14, 1
      %s158 = smul.addr %s157, 8
      %s159 = smul.addr %s158, 8
      %s160 = scalar_lea.vmem %s3, %s159
      %p161 = scmp.lt.s32.totalorder %s14, 1
      %s162 = scalar_select %p161, %s14, 1
      %s163 = smul.addr %s162, 8
      %s164 = smul.addr %s163, 8
      %s165 = scalar_lea.vmem %s0, %s164
      %p166 = scmp.lt.s32.totalorder %s14, 1
      %s167 = scalar_select %p166, %s14, 1
      %s168 = smul.addr %s167, 8
      %s169 = smul.addr %s168, 8
      %s170 = scalar_lea.vmem %s3, %s169
      %vm171 = vcmask 392192
      %172 = vst.msk [vmem:[#allocation2] sm:$0xff] %vm171, 0.0
      %vm173 = vcmask 386048
      %174 = vst.msk [vmem:[#allocation2 + $0x8] sm:$0x3] %vm173, 0.0
      %s175 = scalar_lea.vmem [#allocation2], 144
      %176 = vst.msk [vmem:[%s175] sm:$0xff] %vm171, 0.0
      %177 = vst.msk [vmem:[%s175 + $0x8] sm:$0x3] %vm173, 0.0
      %vm178 = vcmask 385024
      %179 = vst.msk [vmem:[#allocation2] sm:$0x1] %vm178, 0.0
      %180 = vst.msk [vmem:[#allocation2 + $0x10] sm:$0x1] %vm178, 0.0
      %181 = vst.msk [vmem:[#allocation2 + $0x20] sm:$0x1] %vm178, 0.0
      %182 = vst.msk [vmem:[#allocation2 + $0x30] sm:$0x1] %vm178, 0.0
      %183 = vst.msk [vmem:[#allocation2 + $0x40] sm:$0x1] %vm178, 0.0
      %184 = vst.msk [vmem:[#allocation2 + $0x50] sm:$0x1] %vm178, 0.0
      %185 = vst.msk [vmem:[#allocation2 + $0x60] sm:$0x1] %vm178, 0.0
      %186 = vst.msk [vmem:[#allocation2 + $0x70] sm:$0x1] %vm178, 0.0
      %187 = vst.msk [vmem:[#allocation2 + $0x80] sm:$0x1] %vm178, 0.0
      %188 = vst.msk [vmem:[#allocation2 + $0x90] sm:$0x1] %vm178, 0.0
      %189 = vst.msk [vmem:[#allocation2 + $0x9] sm:$0x1] %vm178, 0.0
      %190 = vst.msk [vmem:[#allocation2 + $0x19] sm:$0x1] %vm178, 0.0
      %191 = vst.msk [vmem:[#allocation2 + $0x29] sm:$0x1] %vm178, 0.0
      %192 = vst.msk [vmem:[#allocation2 + $0x39] sm:$0x1] %vm178, 0.0
      %193 = vst.msk [vmem:[#allocation2 + $0x49] sm:$0x1] %vm178, 0.0
      %194 = vst.msk [vmem:[#allocation2 + $0x59] sm:$0x1] %vm178, 0.0
      %195 = vst.msk [vmem:[#allocation2 + $0x69] sm:$0x1] %vm178, 0.0
      %196 = vst.msk [vmem:[#allocation2 + $0x79] sm:$0x1] %vm178, 0.0
      %197 = vst.msk [vmem:[#allocation2 + $0x89] sm:$0x1] %vm178, 0.0
      %198 = vst.msk [vmem:[#allocation2 + $0x99] sm:$0x1] %vm178, 0.0
      %v199 = vld [vmem:[%s165] sm:$0xff]
      %v200 = vld [vmem:[%s165 + $0x8] sm:$0xff]
      %v201 = vld [vmem:[%s165 + $0x10] sm:$0xff]
      %v202 = vld [vmem:[%s165 + $0x18] sm:$0xff]
      %v203 = vld [vmem:[%s165 + $0x20] sm:$0xff]
      %v204 = vld [vmem:[%s165 + $0x28] sm:$0xff]
      %v205 = vld [vmem:[%s165 + $0x30] sm:$0xff]
      %v206 = vld [vmem:[%s165 + $0x38] sm:$0xff]
      %s207 = scalar_lea.vmem [#allocation2], 16
      %208 = vst.msk [vmem:[%s207 + $0x1] sm:$0xff] %vm171, %v199
      %209 = vst.msk [vmem:[%s207 + $0x11] sm:$0xff] %vm171, %v200
      %210 = vst.msk [vmem:[%s207 + $0x21] sm:$0xff] %vm171, %v201
      %211 = vst.msk [vmem:[%s207 + $0x31] sm:$0xff] %vm171, %v202
      %212 = vst.msk [vmem:[%s207 + $0x41] sm:$0xff] %vm171, %v203
      %213 = vst.msk [vmem:[%s207 + $0x51] sm:$0xff] %vm171, %v204
      %214 = vst.msk [vmem:[%s207 + $0x61] sm:$0xff] %vm171, %v205
      %215 = vst.msk [vmem:[%s207 + $0x71] sm:$0xff] %vm171, %v206
      %v216 = vld [vmem:[#allocation2] sm:$0xff]
      %v217 = vld [vmem:[#allocation2 + $0x8] sm:$0x3]
      %v218 = vld [vmem:[#allocation2 + $0x10] sm:$0xff]
      %v219 = vld [vmem:[#allocation2 + $0x18] sm:$0x3]
      %v220 = vld [vmem:[#allocation2 + $0x20] sm:$0xff]
      %v221 = vld [vmem:[#allocation2 + $0x28] sm:$0x3]
      %v222 = vld [vmem:[#allocation2 + $0x30] sm:$0xff]
      %v223 = vld [vmem:[#allocation2 + $0x38] sm:$0x3]
      %v224 = vld [vmem:[#allocation2 + $0x40] sm:$0xff]
      %v225 = vld [vmem:[#allocation2 + $0x48] sm:$0x3]
      %v226 = vld [vmem:[#allocation2 + $0x50] sm:$0xff]
      %v227 = vld [vmem:[#allocation2 + $0x58] sm:$0x3]
      %v228 = vld [vmem:[#allocation2 + $0x60] sm:$0xff]
      %v229 = vld [vmem:[#allocation2 + $0x68] sm:$0x3]
      %v230 = vld [vmem:[#allocation2 + $0x70] sm:$0xff]
      %v231 = vld [vmem:[#allocation2 + $0x78] sm:$0x3]
      %v232 = vld [vmem:[#allocation2 + $0x80] sm:$0xff]
      %v233 = vld [vmem:[#allocation2 + $0x88] sm:$0x3]
      %v234 = vld [vmem:[#allocation2 + $0x90] sm:$0xff]
      %v235 = vld [vmem:[#allocation2 + $0x98] sm:$0x3]
      %v236 = vld [vmem:[%s1] sm:$0x1]
      %v237 = vperm.slane %v236, 0
      %v238 = vmul.f32 %v216, %v237
      %v239 = vmul.f32 %v218, %v237
      %v240 = vmul.f32 %v220, %v237
      %v241 = vmul.f32 %v222, %v237
      %v242 = vmul.f32 %v224, %v237
      %v243 = vmul.f32 %v226, %v237
      %v244 = vmul.f32 %v228, %v237
      %v245 = vmul.f32 %v230, %v237
      %v246 = vadd.f32 %v238, 0.0
      %v247 = vadd.f32 %v239, 0.0
      %v248 = vadd.f32 %v240, 0.0
      %v249 = vadd.f32 %v241, 0.0
      %v250 = vadd.f32 %v242, 0.0
      %v251 = vadd.f32 %v243, 0.0
      %v252 = vadd.f32 %v244, 0.0
      %v253 = vadd.f32 %v245, 0.0
      %v254 = vld [vmem:[%s1 + $0x3] sm:$0x1]
      %v255 = vperm.slane %v254, 0
      %v256 = vmul.f32 %v218, %v255
      %v257 = vmul.f32 %v220, %v255
      %v258 = vmul.f32 %v222, %v255
      %v259 = vmul.f32 %v224, %v255
      %v260 = vmul.f32 %v226, %v255
      %v261 = vmul.f32 %v228, %v255
      %v262 = vmul.f32 %v230, %v255
      %v263 = vmul.f32 %v232, %v255
      %v264 = vadd.f32 %v246, %v256
      %v265 = vadd.f32 %v247, %v257
      %v266 = vadd.f32 %v248, %v258
      %v267 = vadd.f32 %v249, %v259
      %v268 = vadd.f32 %v250, %v260
      %v269 = vadd.f32 %v251, %v261
      %v270 = vadd.f32 %v252, %v262
      %v271 = vadd.f32 %v253, %v263
      %v272 = vld [vmem:[%s1 + $0x6] sm:$0x1]
      %v273 = vperm.slane %v272, 0
      %v274 = vmul.f32 %v220, %v273
      %v275 = vmul.f32 %v222, %v273
      %v276 = vmul.f32 %v224, %v273
      %v277 = vmul.f32 %v226, %v273
      %v278 = vmul.f32 %v228, %v273
      %v279 = vmul.f32 %v230, %v273
      %v280 = vmul.f32 %v232, %v273
      %v281 = vmul.f32 %v234, %v273
      %v282 = vadd.f32 %v264, %v274
      %v283 = vadd.f32 %v265, %v275
      %v284 = vadd.f32 %v266, %v276
      %v285 = vadd.f32 %v267, %v277
      %v286 = vadd.f32 %v268, %v278
      %v287 = vadd.f32 %v269, %v279
      %v288 = vadd.f32 %v270, %v280
      %v289 = vadd.f32 %v271, %v281
      %v290 = vld [vmem:[%s1 + $0x1] sm:$0x1]
      %v291 = vperm.slane %v290, 0
      %v292 = vmul.f32 %v216, %v291
      %v293 = vmul.f32 %v217, %v291
      %v294 = vmul.f32 %v218, %v291
      %v295 = vmul.f32 %v219, %v291
      %v296 = vmul.f32 %v220, %v291
      %v297 = vmul.f32 %v221, %v291
      %v298 = vmul.f32 %v222, %v291
      %v299 = vmul.f32 %v223, %v291
      %v300 = vmul.f32 %v224, %v291
      %v301 = vmul.f32 %v225, %v291
      %v302 = vmul.f32 %v226, %v291
      %v303 = vmul.f32 %v227, %v291
      %v304 = vmul.f32 %v228, %v291
      %v305 = vmul.f32 %v229, %v291
      %v306 = vmul.f32 %v230, %v291
      %v307 = vmul.f32 %v231, %v291
      %vm324 = vcmask 1046528
      %v325 = vrot.slane %v292, 1
      %v326 = vrot.slane %v293, 1
      %v327 = vsel %vm324, %v325, %v326
      %v328 = vrot.slane %v294, 1
      %v329 = vrot.slane %v295, 1
      %v330 = vsel %vm324, %v328, %v329
      %v331 = vrot.slane %v296, 1
      %v332 = vrot.slane %v297, 1
      %v333 = vsel %vm324, %v331, %v332
      %v334 = vrot.slane %v298, 1
      %v335 = vrot.slane %v299, 1
      %v336 = vsel %vm324, %v334, %v335
      %v337 = vrot.slane %v300, 1
      %v338 = vrot.slane %v301, 1
      %v339 = vsel %vm324, %v337, %v338
      %v340 = vrot.slane %v302, 1
      %v341 = vrot.slane %v303, 1
      %v342 = vsel %vm324, %v340, %v341
      %v343 = vrot.slane %v304, 1
      %v344 = vrot.slane %v305, 1
      %v345 = vsel %vm324, %v343, %v344
      %v346 = vrot.slane %v306, 1
      %v347 = vrot.slane %v307, 1
      %v348 = vsel %vm324, %v346, %v347
      %v357 = vadd.f32 %v282, %v327
      %v358 = vadd.f32 %v283, %v330
      %v359 = vadd.f32 %v284, %v333
      %v360 = vadd.f32 %v285, %v336
      %v361 = vadd.f32 %v286, %v339
      %v362 = vadd.f32 %v287, %v342
      %v363 = vadd.f32 %v288, %v345
      %v364 = vadd.f32 %v289, %v348
      %v365 = vld [vmem:[%s1 + $0x4] sm:$0x1]
      %v366 = vperm.slane %v365, 0
      %v367 = vmul.f32 %v218, %v366
      %v368 = vmul.f32 %v219, %v366
      %v369 = vmul.f32 %v220, %v366
      %v370 = vmul.f32 %v221, %v366
      %v371 = vmul.f32 %v222, %v366
      %v372 = vmul.f32 %v223, %v366
      %v373 = vmul.f32 %v224, %v366
      %v374 = vmul.f32 %v225, %v366
      %v375 = vmul.f32 %v226, %v366
      %v376 = vmul.f32 %v227, %v366
      %v377 = vmul.f32 %v228, %v366
      %v378 = vmul.f32 %v229, %v366
      %v379 = vmul.f32 %v230, %v366
      %v380 = vmul.f32 %v231, %v366
      %v381 = vmul.f32 %v232, %v366
      %v382 = vmul.f32 %v233, %v366
      %v399 = vrot.slane %v367, 1
      %v400 = vrot.slane %v368, 1
      %v401 = vsel %vm324, %v399, %v400
      %v402 = vrot.slane %v369, 1
      %v403 = vrot.slane %v370, 1
      %v404 = vsel %vm324, %v402, %v403
      %v405 = vrot.slane %v371, 1
      %v406 = vrot.slane %v372, 1
      %v407 = vsel %vm324, %v405, %v406
      %v408 = vrot.slane %v373, 1
      %v409 = vrot.slane %v374, 1
      %v410 = vsel %vm324, %v408, %v409
      %v411 = vrot.slane %v375, 1
      %v412 = vrot.slane %v376, 1
      %v413 = vsel %vm324, %v411, %v412
      %v414 = vrot.slane %v377, 1
      %v415 = vrot.slane %v378, 1
      %v416 = vsel %vm324, %v414, %v415
      %v417 = vrot.slane %v379, 1
      %v418 = vrot.slane %v380, 1
      %v419 = vsel %vm324, %v417, %v418
      %v420 = vrot.slane %v381, 1
      %v421 = vrot.slane %v382, 1
      %v422 = vsel %vm324, %v420, %v421
      %v431 = vadd.f32 %v357, %v401
      %v432 = vadd.f32 %v358, %v404
      %v433 = vadd.f32 %v359, %v407
      %v434 = vadd.f32 %v360, %v410
      %v435 = vadd.f32 %v361, %v413
      %v436 = vadd.f32 %v362, %v416
      %v437 = vadd.f32 %v363, %v419
      %v438 = vadd.f32 %v364, %v422
      %v439 = vld [vmem:[%s1 + $0x7] sm:$0x1]
      %v440 = vperm.slane %v439, 0
      %v441 = vmul.f32 %v220, %v440
      %v442 = vmul.f32 %v221, %v440
      %v443 = vmul.f32 %v222, %v440
      %v444 = vmul.f32 %v223, %v440
      %v445 = vmul.f32 %v224, %v440
      %v446 = vmul.f32 %v225, %v440
      %v447 = vmul.f32 %v226, %v440
      %v448 = vmul.f32 %v227, %v440
      %v449 = vmul.f32 %v228, %v440
      %v450 = vmul.f32 %v229, %v440
      %v451 = vmul.f32 %v230, %v440
      %v452 = vmul.f32 %v231, %v440
      %v453 = vmul.f32 %v232, %v440
      %v454 = vmul.f32 %v233, %v440
      %v455 = vmul.f32 %v234, %v440
      %v456 = vmul.f32 %v235, %v440
      %v473 = vrot.slane %v441, 1
      %v474 = vrot.slane %v442, 1
      %v475 = vsel %vm324, %v473, %v474
      %v476 = vrot.slane %v443, 1
      %v477 = vrot.slane %v444, 1
      %v478 = vsel %vm324, %v476, %v477
      %v479 = vrot.slane %v445, 1
      %v480 = vrot.slane %v446, 1
      %v481 = vsel %vm324, %v479, %v480
      %v482 = vrot.slane %v447, 1
      %v483 = vrot.slane %v448, 1
      %v484 = vsel %vm324, %v482, %v483
      %v485 = vrot.slane %v449, 1
      %v486 = vrot.slane %v450, 1
      %v487 = vsel %vm324, %v485, %v486
      %v488 = vrot.slane %v451, 1
      %v489 = vrot.slane %v452, 1
      %v490 = vsel %vm324, %v488, %v489
      %v491 = vrot.slane %v453, 1
      %v492 = vrot.slane %v454, 1
      %v493 = vsel %vm324, %v491, %v492
      %v494 = vrot.slane %v455, 1
      %v495 = vrot.slane %v456, 1
      %v496 = vsel %vm324, %v494, %v495
      %v505 = vadd.f32 %v431, %v475
      %v506 = vadd.f32 %v432, %v478
      %v507 = vadd.f32 %v433, %v481
      %v508 = vadd.f32 %v434, %v484
      %v509 = vadd.f32 %v435, %v487
      %v510 = vadd.f32 %v436, %v490
      %v511 = vadd.f32 %v437, %v493
      %v512 = vadd.f32 %v438, %v496
      %v513 = vld [vmem:[%s1 + $0x2] sm:$0x1]
      %v514 = vperm.slane %v513, 0
      %v515 = vmul.f32 %v216, %v514
      %v516 = vmul.f32 %v217, %v514
      %v517 = vmul.f32 %v218, %v514
      %v518 = vmul.f32 %v219, %v514
      %v519 = vmul.f32 %v220, %v514
      %v520 = vmul.f32 %v221, %v514
      %v521 = vmul.f32 %v222, %v514
      %v522 = vmul.f32 %v223, %v514
      %v523 = vmul.f32 %v224, %v514
      %v524 = vmul.f32 %v225, %v514
      %v525 = vmul.f32 %v226, %v514
      %v526 = vmul.f32 %v227, %v514
      %v527 = vmul.f32 %v228, %v514
      %v528 = vmul.f32 %v229, %v514
      %v529 = vmul.f32 %v230, %v514
      %v530 = vmul.f32 %v231, %v514
      %vm547 = vcmask 1045504
      %v548 = vrot.slane %v515, 2
      %v549 = vrot.slane %v516, 2
      %v550 = vsel %vm547, %v548, %v549
      %v551 = vrot.slane %v517, 2
      %v552 = vrot.slane %v518, 2
      %v553 = vsel %vm547, %v551, %v552
      %v554 = vrot.slane %v519, 2
      %v555 = vrot.slane %v520, 2
      %v556 = vsel %vm547, %v554, %v555
      %v557 = vrot.slane %v521, 2
      %v558 = vrot.slane %v522, 2
      %v559 = vsel %vm547, %v557, %v558
      %v560 = vrot.slane %v523, 2
      %v561 = vrot.slane %v524, 2
      %v562 = vsel %vm547, %v560, %v561
      %v563 = vrot.slane %v525, 2
      %v564 = vrot.slane %v526, 2
      %v565 = vsel %vm547, %v563, %v564
      %v566 = vrot.slane %v527, 2
      %v567 = vrot.slane %v528, 2
      %v568 = vsel %vm547, %v566, %v567
      %v569 = vrot.slane %v529, 2
      %v570 = vrot.slane %v530, 2
      %v571 = vsel %vm547, %v569, %v570
      %v580 = vadd.f32 %v505, %v550
      %v581 = vadd.f32 %v506, %v553
      %v582 = vadd.f32 %v507, %v556
      %v583 = vadd.f32 %v508, %v559
      %v584 = vadd.f32 %v509, %v562
      %v585 = vadd.f32 %v510, %v565
      %v586 = vadd.f32 %v511, %v568
      %v587 = vadd.f32 %v512, %v571
      %v588 = vld [vmem:[%s1 + $0x5] sm:$0x1]
      %v589 = vperm.slane %v588, 0
      %v590 = vmul.f32 %v218, %v589
      %v591 = vmul.f32 %v219, %v589
      %v592 = vmul.f32 %v220, %v589
      %v593 = vmul.f32 %v221, %v589
      %v594 = vmul.f32 %v222, %v589
      %v595 = vmul.f32 %v223, %v589
      %v596 = vmul.f32 %v224, %v589
      %v597 = vmul.f32 %v225, %v589
      %v598 = vmul.f32 %v226, %v589
      %v599 = vmul.f32 %v227, %v589
      %v600 = vmul.f32 %v228, %v589
      %v601 = vmul.f32 %v229, %v589
      %v602 = vmul.f32 %v230, %v589
      %v603 = vmul.f32 %v231, %v589
      %v604 = vmul.f32 %v232, %v589
      %v605 = vmul.f32 %v233, %v589
      %v622 = vrot.slane %v590, 2
      %v623 = vrot.slane %v591, 2
      %v624 = vsel %vm547, %v622, %v623
      %v625 = vrot.slane %v592, 2
      %v626 = vrot.slane %v593, 2
      %v627 = vsel %vm547, %v625, %v626
      %v628 = vrot.slane %v594, 2
      %v629 = vrot.slane %v595, 2
      %v630 = vsel %vm547, %v628, %v629
      %v631 = vrot.slane %v596, 2
      %v632 = vrot.slane %v597, 2
      %v633 = vsel %vm547, %v631, %v632
      %v634 = vrot.slane %v598, 2
      %v635 = vrot.slane %v599, 2
      %v636 = vsel %vm547, %v634, %v635
      %v637 = vrot.slane %v600, 2
      %v638 = vrot.slane %v601, 2
      %v639 = vsel %vm547, %v637, %v638
      %v640 = vrot.slane %v602, 2
      %v641 = vrot.slane %v603, 2
      %v642 = vsel %vm547, %v640, %v641
      %v643 = vrot.slane %v604, 2
      %v644 = vrot.slane %v605, 2
      %v645 = vsel %vm547, %v643, %v644
      %v654 = vadd.f32 %v580, %v624
      %v655 = vadd.f32 %v581, %v627
      %v656 = vadd.f32 %v582, %v630
      %v657 = vadd.f32 %v583, %v633
      %v658 = vadd.f32 %v584, %v636
      %v659 = vadd.f32 %v585, %v639
      %v660 = vadd.f32 %v586, %v642
      %v661 = vadd.f32 %v587, %v645
      %v662 = vld [vmem:[%s1 + $0x8] sm:$0x1]
      %v663 = vperm.slane %v662, 0
      %v664 = vmul.f32 %v220, %v663
      %v665 = vmul.f32 %v221, %v663
      %v666 = vmul.f32 %v222, %v663
      %v667 = vmul.f32 %v223, %v663
      %v668 = vmul.f32 %v224, %v663
      %v669 = vmul.f32 %v225, %v663
      %v670 = vmul.f32 %v226, %v663
      %v671 = vmul.f32 %v227, %v663
      %v672 = vmul.f32 %v228, %v663
      %v673 = vmul.f32 %v229, %v663
      %v674 = vmul.f32 %v230, %v663
      %v675 = vmul.f32 %v231, %v663
      %v676 = vmul.f32 %v232, %v663
      %v677 = vmul.f32 %v233, %v663
      %v678 = vmul.f32 %v234, %v663
      %v679 = vmul.f32 %v235, %v663
      %v696 = vrot.slane %v664, 2
      %v697 = vrot.slane %v665, 2
      %v698 = vsel %vm547, %v696, %v697
      %v699 = vrot.slane %v666, 2
      %v700 = vrot.slane %v667, 2
      %v701 = vsel %vm547, %v699, %v700
      %v702 = vrot.slane %v668, 2
      %v703 = vrot.slane %v669, 2
      %v704 = vsel %vm547, %v702, %v703
      %v705 = vrot.slane %v670, 2
      %v706 = vrot.slane %v671, 2
      %v707 = vsel %vm547, %v705, %v706
      %v708 = vrot.slane %v672, 2
      %v709 = vrot.slane %v673, 2
      %v710 = vsel %vm547, %v708, %v709
      %v711 = vrot.slane %v674, 2
      %v712 = vrot.slane %v675, 2
      %v713 = vsel %vm547, %v711, %v712
      %v714 = vrot.slane %v676, 2
      %v715 = vrot.slane %v677, 2
      %v716 = vsel %vm547, %v714, %v715
      %v717 = vrot.slane %v678, 2
      %v718 = vrot.slane %v679, 2
      %v719 = vsel %vm547, %v717, %v718
      %v728 = vadd.f32 %v654, %v698
      %v729 = vadd.f32 %v655, %v701
      %v730 = vadd.f32 %v656, %v704
      %v731 = vadd.f32 %v657, %v707
      %v732 = vadd.f32 %v658, %v710
      %v733 = vadd.f32 %v659, %v713
      %v734 = vadd.f32 %v660, %v716
      %v735 = vadd.f32 %v661, %v719
      %v736 = vld [vmem:[%s2] sm:$0x1]
      %v738 = vperm.slane %v736, 0
      %v740 = vadd.f32 %v728, %v738
      %v741 = vadd.f32 %v729, %v738
      %v742 = vadd.f32 %v730, %v738
      %v743 = vadd.f32 %v731, %v738
      %v744 = vadd.f32 %v732, %v738
      %v745 = vadd.f32 %v733, %v738
      %v746 = vadd.f32 %v734, %v738
      %v747 = vadd.f32 %v735, %v738
      %748 = vst.msk [vmem:[%s170] sm:$0xff] %vm171, %v740
      %749 = vst.msk [vmem:[%s170 + $0x8] sm:$0xff] %vm171, %v741
      %750 = vst.msk [vmem:[%s170 + $0x10] sm:$0xff] %vm171, %v742
      %751 = vst.msk [vmem:[%s170 + $0x18] sm:$0xff] %vm171, %v743
      %752 = vst.msk [vmem:[%s170 + $0x20] sm:$0xff] %vm171, %v744
      %753 = vst.msk [vmem:[%s170 + $0x28] sm:$0xff] %vm171, %v745
      %754 = vst.msk [vmem:[%s170 + $0x30] sm:$0xff] %vm171, %v746
      %755 = vst.msk [vmem:[%s170 + $0x38] sm:$0xff] %vm171, %v747
      %p756 = scmp.lt.s32.totalorder %s14, 1
      %s757 = scalar_select %p756, %s14, 1
      %s758 = smul.addr %s757, 8
      %s759 = smul.addr %s758, 8
      %s760 = scalar_lea.vmem %s3, %s759
      // Predicated region
      $region33: #{transformer_block.7} parent=31 // pred_check
        %p761 = pneg %p100
      $region34: #{transformer_block.7} parent=31 // pred_check_branch
        %763 = sbr.rel (%p761) target = $region36
      $region35: #{transformer_block.7} parent=31 // pred_region
        _
      $region36: #{transformer_block.7} parent=31 // pred_fallthru
        _
    $region32: #{transformer_block.7} parent=5 // pred_fallthru
      _
    %p764 = scmp.le.s32.totalorder 2, %s9
    // Predicated region
    $region37: #{transformer_block.7} parent=5 // pred_check
      %p765 = pneg %p764
    $region38: #{transformer_block.7} parent=5 // pred_check_branch
      %767 = sbr.rel (%p765) target = $region40
    $region39: #{transformer_block.7} parent=5 // pred_region
      %s768 = ssub.s32 %s9, 2
      // Predicated region
      $region41: #{transformer_block.7} parent=39 // pred_check
        %p769 = pneg %p106
      $region42: #{transformer_block.7} parent=39 // pred_check_branch
        %771 = sbr.rel (%p769) target = $region44
      $region43: #{transformer_block.7} parent=39 // pred_region
        %p772 = scmp.lt.s32.totalorder %s15, 1
        %s773 = scalar_select %p772, %s15, 1
        %s774 = smul.addr %s773, 8
        %s775 = smul.addr %s774, 8
        %s776 = scalar_lea.vmem %s3, %s775
      $region44: #{transformer_block.7} parent=39 // pred_fallthru
        _
    $region40: #{transformer_block.7} parent=5 // pred_fallthru
      _
  $region6: #{transformer_block.7} parent=0 // loop_footer
    %s13 = sadd.s32 1, %s9
  $region7: #{transformer_block.7} parent=0 // loop_footer_branch
    %8 = sbr.rel target = $region3
  $region8: #{transformer_block.7} parent=0 // loop_exit
    _

// kernel: transformer_block.9
$region0: #{transformer_block.9}
  #allocation0 [shape = 'u32[]', space=smem, size = 0x4, offset = 0x4, fixed_abs, tag = 'smem constant byte address 0x4 - core index']
  #allocation1 [shape = 'u32[72,128]{1,0:T(1,128)}', space=vmem, size = 0x9000, scoped, tag = 'internal scratch']
  %s0 = inlined_call_operand.vmem [shape: f32[128,16], index: 0, kind: input, shape index: {}]
  %s1 = inlined_call_operand.hbm [shape: f32[1,16], index: 1, kind: input, shape index: {}]
  %s2 = inlined_call_operand.hbm [shape: f32[1,16], index: 2, kind: input, shape index: {}]
  %s3 = inlined_call_operand.hbm [shape: bf16[16,64], index: 3, kind: input, shape index: {}]
  %s4 = inlined_call_operand.hbm [shape: f32[1,64], index: 4, kind: input, shape index: {}]
  %s5 = inlined_call_operand.vmem [shape: f32[128,64], index: 5, kind: output, shape index: {}]
  %s6 = sld [smem:[#allocation0]]
  $region46: #{transformer_block.9} parent=0
    _
  %s8 = ssub.s32 1, %s6
  %s9 = scalar_select 0, %s8, %s6
  $region1: #{transformer_block.9} parent=0
    #allocation2 [shape = 'u8[512]{0}', space=vmem, size = 0x400, scoped, tag = 'input window, operand 1, single buffered']
    #allocation3 [shape = 's32[1]{0}', space=sflag, size = 0x4, scoped, tag = 'scoped memory for transformer_block.9']
    #allocation4 [shape = 'u8[512]{0}', space=vmem, size = 0x400, scoped, tag = 'input window, operand 2, single buffered']
    #allocation5 [shape = 's32[1]{0}', space=sflag, size = 0x4, scoped, tag = 'scoped memory for transformer_block.9']
    #allocation6 [shape = 'u8[4096]{0}', space=vmem, size = 0x1000, scoped, tag = 'input window, operand 3, single buffered']
    #allocation7 [shape = 'u8[512]{0}', space=vmem, size = 0x400, scoped, tag = 'input window, operand 4, single buffered']
    #allocation8 [shape = 's32[1]{0}', space=sflag, size = 0x4, scoped, tag = 'scoped memory for transformer_block.9']
    %10 = vsyncpa [#allocation3], 0
    %11 = vsyncpa [#allocation5], 0
    %12 = vsyncpa [#allocation8], 0
    // Predicated region
    $region2: #{transformer_block.9} parent=1 // pred_check
      _
    $region3: #{transformer_block.9} parent=1 // pred_check_branch
      %14 = sbr.rel (0) target = $region5
    $region4: #{transformer_block.9} parent=1 // pred_region
      _
    $region5: #{transformer_block.9} parent=1 // pred_fallthru
      _
    // Predicated region
    $region6: #{transformer_block.9} parent=1 // pred_check
      _
    $region7: #{transformer_block.9} parent=1 // pred_check_branch
      %16 = sbr.rel (0) target = $region9
    $region8: #{transformer_block.9} parent=1 // pred_region
      %18 = vsyncadd [#allocation3], 0
      %s20 = sshll.u32 %s1, 4
      %s21 = int_to_ptr.hbm [resolvable:$true] %s20
      %s22 = sshll.u32 [#allocation2], 4
      %s23 = int_to_ptr.vmem [resolvable:$true] %s22
      %25 = dma.hbm_to_vmem [thread:$0]  %s21, 16, %s23, [#allocation3]
    $region9: #{transformer_block.9} parent=1 // pred_fallthru
      _
    // Predicated region
    $region10: #{transformer_block.9} parent=1 // pred_check
      _
    $region11: #{transformer_block.9} parent=1 // pred_check_branch
      %27 = sbr.rel (0) target = $region13
    $region12: #{transformer_block.9} parent=1 // pred_region
      %29 = vsyncadd [#allocation5], 0
      %s31 = sshll.u32 %s2, 4
      %s32 = int_to_ptr.hbm [resolvable:$true] %s31
      %s33 = sshll.u32 [#allocation4], 4
      %s34 = int_to_ptr.vmem [resolvable:$true] %s33
      %36 = dma.hbm_to_vmem [thread:$0]  %s32, 16, %s34, [#allocation5]
    $region13: #{transformer_block.9} parent=1 // pred_fallthru
      _
    // Predicated region
    $region14: #{transformer_block.9} parent=1 // pred_check
      _
    $region15: #{transformer_block.9} parent=1 // pred_check_branch
      %38 = sbr.rel (0) target = $region17
    $region16: #{transformer_block.9} parent=1 // pred_region
      %40 = vsyncadd [#allocation5], 0
      %s41 = sshll.u32 %s3, 4
      %s42 = int_to_ptr.hbm [resolvable:$true] %s41
      %s43 = sshll.u32 [#allocation6], 4
      %s44 = int_to_ptr.vmem [resolvable:$true] %s43
      %49 = dma.hbm_to_vmem [thread:$0]  %s42, 128, %s44, [#allocation5], 64, 64, 4
    $region17: #{transformer_block.9} parent=1 // pred_fallthru
      _
    // Predicated region
    $region18: #{transformer_block.9} parent=1 // pred_check
      _
    $region19: #{transformer_block.9} parent=1 // pred_check_branch
      %51 = sbr.rel (0) target = $region21
    $region20: #{transformer_block.9} parent=1 // pred_region
      %53 = vsyncadd [#allocation8], 0
      %s55 = sshll.u32 %s4, 4
      %s56 = int_to_ptr.hbm [resolvable:$true] %s55
      %s57 = sshll.u32 [#allocation7], 4
      %s58 = int_to_ptr.vmem [resolvable:$true] %s57
      %60 = dma.hbm_to_vmem [thread:$0]  %s56, 16, %s58, [#allocation8]
    $region21: #{transformer_block.9} parent=1 // pred_fallthru
      _
    // Predicated region
    $region22: #{transformer_block.9} parent=1 // pred_check
      _
    $region23: #{transformer_block.9} parent=1 // pred_check_branch
      %62 = sbr.rel (0) target = $region25
    $region24: #{transformer_block.9} parent=1 // pred_region
      %64 = dma.done [#allocation3], 16
    $region25: #{transformer_block.9} parent=1 // pred_fallthru
      _
    // Predicated region
    $region26: #{transformer_block.9} parent=1 // pred_check
      _
    $region27: #{transformer_block.9} parent=1 // pred_check_branch
      %66 = sbr.rel (0) target = $region29
    $region28: #{transformer_block.9} parent=1 // pred_region
      %68 = dma.done [#allocation5], 16
    $region29: #{transformer_block.9} parent=1 // pred_fallthru
      _
    // Predicated region
    $region30: #{transformer_block.9} parent=1 // pred_check
      _
    $region31: #{transformer_block.9} parent=1 // pred_check_branch
      %70 = sbr.rel (0) target = $region33
    $region32: #{transformer_block.9} parent=1 // pred_region
      %72 = dma.done [#allocation5], 128
    $region33: #{transformer_block.9} parent=1 // pred_fallthru
      _
    // Predicated region
    $region34: #{transformer_block.9} parent=1 // pred_check
      _
    $region35: #{transformer_block.9} parent=1 // pred_check_branch
      %74 = sbr.rel (0) target = $region37
    $region36: #{transformer_block.9} parent=1 // pred_region
      %76 = dma.done [#allocation8], 16
    $region37: #{transformer_block.9} parent=1 // pred_fallthru
      _
    %v78 = vld [vmem:[%s0] sm:$0xff]
    %v79 = vld [vmem:[%s0 + $0x8] sm:$0xff]
    %v80 = vld [vmem:[%s0 + $0x10] sm:$0xff]
    %v81 = vld [vmem:[%s0 + $0x18] sm:$0xff]
    %v82 = vld [vmem:[%s0 + $0x20] sm:$0xff]
    %v83 = vld [vmem:[%s0 + $0x28] sm:$0xff]
    %v84 = vld [vmem:[%s0 + $0x30] sm:$0xff]
    %v85 = vld [vmem:[%s0 + $0x38] sm:$0xff]
    %v86 = vld [vmem:[%s0 + $0x40] sm:$0xff]
    %v87 = vld [vmem:[%s0 + $0x48] sm:$0xff]
    %v88 = vld [vmem:[%s0 + $0x50] sm:$0xff]
    %v89 = vld [vmem:[%s0 + $0x58] sm:$0xff]
    %v90 = vld [vmem:[%s0 + $0x60] sm:$0xff]
    %v91 = vld [vmem:[%s0 + $0x68] sm:$0xff]
    %v92 = vld [vmem:[%s0 + $0x70] sm:$0xff]
    %v93 = vld [vmem:[%s0 + $0x78] sm:$0xff]
    %vm94 = vcmask 130048
    %v95 = vsel %vm94, %v78, 0.0
    %96 = vadd.xlane.f32.xlu0 %v95
    %v97 = vpop.xlane.xlu0 %96
    %v98 = vsel %vm94, %v79, 0.0
    %99 = vadd.xlane.f32.xlu0 %v98
    %v100 = vpop.xlane.xlu0 %99
    %v101 = vsel %vm94, %v80, 0.0
    %102 = vadd.xlane.f32.xlu0 %v101
    %v103 = vpop.xlane.xlu0 %102
    %v104 = vsel %vm94, %v81, 0.0
    %105 = vadd.xlane.f32.xlu0 %v104
    %v106 = vpop.xlane.xlu0 %105
    %v107 = vsel %vm94, %v82, 0.0
    %108 = vadd.xlane.f32.xlu0 %v107
    %v109 = vpop.xlane.xlu0 %108
    %v110 = vsel %vm94, %v83, 0.0
    %111 = vadd.xlane.f32.xlu0 %v110
    %v112 = vpop.xlane.xlu0 %111
    %v113 = vsel %vm94, %v84, 0.0
    %114 = vadd.xlane.f32.xlu0 %v113
    %v115 = vpop.xlane.xlu0 %114
    %v116 = vsel %vm94, %v85, 0.0
    %117 = vadd.xlane.f32.xlu0 %v116
    %v118 = vpop.xlane.xlu0 %117
    %v119 = vsel %vm94, %v86, 0.0
    %120 = vadd.xlane.f32.xlu0 %v119
    %v121 = vpop.xlane.xlu0 %120
    %v122 = vsel %vm94, %v87, 0.0
    %123 = vadd.xlane.f32.xlu0 %v122
    %v124 = vpop.xlane.xlu0 %123
    %v125 = vsel %vm94, %v88, 0.0
    %126 = vadd.xlane.f32.xlu0 %v125
    %v127 = vpop.xlane.xlu0 %126
    %v128 = vsel %vm94, %v89, 0.0
    %129 = vadd.xlane.f32.xlu0 %v128
    %v130 = vpop.xlane.xlu0 %129
    %v131 = vsel %vm94, %v90, 0.0
    %132 = vadd.xlane.f32.xlu0 %v131
    %v133 = vpop.xlane.xlu0 %132
    %v134 = vsel %vm94, %v91, 0.0
    %135 = vadd.xlane.f32.xlu0 %v134
    %v136 = vpop.xlane.xlu0 %135
    %v137 = vsel %vm94, %v92, 0.0
    %138 = vadd.xlane.f32.xlu0 %v137
    %v139 = vpop.xlane.xlu0 %138
    %v140 = vsel %vm94, %v93, 0.0
    %141 = vadd.xlane.f32.xlu0 %v140
    %v142 = vpop.xlane.xlu0 %141
    %v143 = vrcp.pop 16.0
    %v144 = vmul.f32 16.0, %v143
    %v145 = vsub.f32 1.0, %v144
    %v146 = vmul.f32 %v143, %v145
    %v147 = vadd.f32 %v143, %v146
    %vm148 = vweird.f32 %v143
    %v149 = vsel %vm148, %v143, %v147
    %v150 = vmul.f32 %v97, %v149
    %v151 = vmul.f32 %v100, %v149
    %v152 = vmul.f32 %v103, %v149
    %v153 = vmul.f32 %v106, %v149
    %v154 = vmul.f32 %v109, %v149
    %v155 = vmul.f32 %v112, %v149
    %v156 = vmul.f32 %v115, %v149
    %v157 = vmul.f32 %v118, %v149
    %v158 = vmul.f32 %v121, %v149
    %v159 = vmul.f32 %v124, %v149
    %v160 = vmul.f32 %v127, %v149
    %v161 = vmul.f32 %v130, %v149
    %v162 = vmul.f32 %v133, %v149
    %v163 = vmul.f32 %v136, %v149
    %v164 = vmul.f32 %v139, %v149
    %v165 = vmul.f32 %v142, %v149
    %v166 = vsub.f32 %v78, %v150
    %v167 = vsub.f32 %v79, %v151
    %v168 = vsub.f32 %v80, %v152
    %v169 = vsub.f32 %v81, %v153
    %v170 = vsub.f32 %v82, %v154
    %v171 = vsub.f32 %v83, %v155
    %v172 = vsub.f32 %v84, %v156
    %v173 = vsub.f32 %v85, %v157
    %v174 = vsub.f32 %v86, %v158
    %v175 = vsub.f32 %v87, %v159
    %v176 = vsub.f32 %v88, %v160
    %v177 = vsub.f32 %v89, %v161
    %v178 = vsub.f32 %v90, %v162
    %v179 = vsub.f32 %v91, %v163
    %v180 = vsub.f32 %v92, %v164
    %v181 = vsub.f32 %v93, %v165
    %v182 = vmul.f32 %v166, %v166
    %v183 = vmul.f32 %v167, %v167
    %v184 = vmul.f32 %v168, %v168
    %v185 = vmul.f32 %v169, %v169
    %v186 = vmul.f32 %v170, %v170
    %v187 = vmul.f32 %v171, %v171
    %v188 = vmul.f32 %v172, %v172
    %v189 = vmul.f32 %v173, %v173
    %v190 = vmul.f32 %v174, %v174
    %v191 = vmul.f32 %v175, %v175
    %v192 = vmul.f32 %v176, %v176
    %v193 = vmul.f32 %v177, %v177
    %v194 = vmul.f32 %v178, %v178
    %v195 = vmul.f32 %v179, %v179
    %v196 = vmul.f32 %v180, %v180
    %v197 = vmul.f32 %v181, %v181
    %v198 = vsel %vm94, %v182, 0.0
    %199 = vadd.xlane.f32.xlu0 %v198
    %v200 = vpop.xlane.xlu0 %199
    %v201 = vsel %vm94, %v183, 0.0
    %202 = vadd.xlane.f32.xlu0 %v201
    %v203 = vpop.xlane.xlu0 %202
    %v204 = vsel %vm94, %v184, 0.0
    %205 = vadd.xlane.f32.xlu0 %v204
    %v206 = vpop.xlane.xlu0 %205
    %v207 = vsel %vm94, %v185, 0.0
    %208 = vadd.xlane.f32.xlu0 %v207
    %v209 = vpop.xlane.xlu0 %208
    %v210 = vsel %vm94, %v186, 0.0
    %211 = vadd.xlane.f32.xlu0 %v210
    %v212 = vpop.xlane.xlu0 %211
    %v213 = vsel %vm94, %v187, 0.0
    %214 = vadd.xlane.f32.xlu0 %v213
    %v215 = vpop.xlane.xlu0 %214
    %v216 = vsel %vm94, %v188, 0.0
    %217 = vadd.xlane.f32.xlu0 %v216
    %v218 = vpop.xlane.xlu0 %217
    %v219 = vsel %vm94, %v189, 0.0
    %220 = vadd.xlane.f32.xlu0 %v219
    %v221 = vpop.xlane.xlu0 %220
    %v222 = vsel %vm94, %v190, 0.0
    %223 = vadd.xlane.f32.xlu0 %v222
    %v224 = vpop.xlane.xlu0 %223
    %v225 = vsel %vm94, %v191, 0.0
    %226 = vadd.xlane.f32.xlu0 %v225
    %v227 = vpop.xlane.xlu0 %226
    %v228 = vsel %vm94, %v192, 0.0
    %229 = vadd.xlane.f32.xlu0 %v228
    %v230 = vpop.xlane.xlu0 %229
    %v231 = vsel %vm94, %v193, 0.0
    %232 = vadd.xlane.f32.xlu0 %v231
    %v233 = vpop.xlane.xlu0 %232
    %v234 = vsel %vm94, %v194, 0.0
    %235 = vadd.xlane.f32.xlu0 %v234
    %v236 = vpop.xlane.xlu0 %235
    %v237 = vsel %vm94, %v195, 0.0
    %238 = vadd.xlane.f32.xlu0 %v237
    %v239 = vpop.xlane.xlu0 %238
    %v240 = vsel %vm94, %v196, 0.0
    %241 = vadd.xlane.f32.xlu0 %v240
    %v242 = vpop.xlane.xlu0 %241
    %v243 = vsel %vm94, %v197, 0.0
    %244 = vadd.xlane.f32.xlu0 %v243
    %v245 = vpop.xlane.xlu0 %244
    %v246 = vmul.f32 %v200, %v149
    %v247 = vmul.f32 %v203, %v149
    %v248 = vmul.f32 %v206, %v149
    %v249 = vmul.f32 %v209, %v149
    %v250 = vmul.f32 %v212, %v149
    %v251 = vmul.f32 %v215, %v149
    %v252 = vmul.f32 %v218, %v149
    %v253 = vmul.f32 %v221, %v149
    %v254 = vmul.f32 %v224, %v149
    %v255 = vmul.f32 %v227, %v149
    %v256 = vmul.f32 %v230, %v149
    %v257 = vmul.f32 %v233, %v149
    %v258 = vmul.f32 %v236, %v149
    %v259 = vmul.f32 %v239, %v149
    %v260 = vmul.f32 %v242, %v149
    %v261 = vmul.f32 %v245, %v149
    %v262 = vadd.f32 %v246, 1e-05
    %v263 = vadd.f32 %v247, 1e-05
    %v264 = vadd.f32 %v248, 1e-05
    %v265 = vadd.f32 %v249, 1e-05
    %v266 = vadd.f32 %v250, 1e-05
    %v267 = vadd.f32 %v251, 1e-05
    %v268 = vadd.f32 %v252, 1e-05
    %v269 = vadd.f32 %v253, 1e-05
    %v270 = vadd.f32 %v254, 1e-05
    %v271 = vadd.f32 %v255, 1e-05
    %v272 = vadd.f32 %v256, 1e-05
    %v273 = vadd.f32 %v257, 1e-05
    %v274 = vadd.f32 %v258, 1e-05
    %v275 = vadd.f32 %v259, 1e-05
    %v276 = vadd.f32 %v260, 1e-05
    %v277 = vadd.f32 %v261, 1e-05
    %v278 = vrsqrt.pop %v262
    %v279 = vmul.f32 %v278, %v262
    %v280 = vmul.f32 %v279, %v278
    %v281 = vmul.f32 0.5, %v280
    %v282 = vsub.f32 1.5, %v281
    %v283 = vmul.f32 %v278, %v282
    %vm284 = vweird.f32 %v262
    %vm285 = vweird.f32 %v278
    %vm286 = vmor %vm284, %vm285
    %v287 = vsel %vm286, %v278, %v283
    %v288 = vrsqrt.pop %v263
    %v289 = vmul.f32 %v288, %v263
    %v290 = vmul.f32 %v289, %v288
    %v291 = vmul.f32 0.5, %v290
    %v292 = vsub.f32 1.5, %v291
    %v293 = vmul.f32 %v288, %v292
    %vm294 = vweird.f32 %v263
    %vm295 = vweird.f32 %v288
    %vm296 = vmor %vm294, %vm295
    %v297 = vsel %vm296, %v288, %v293
    %v298 = vrsqrt.pop %v264
    %v299 = vmul.f32 %v298, %v264
    %v300 = vmul.f32 %v299, %v298
    %v301 = vmul.f32 0.5, %v300
    %v302 = vsub.f32 1.5, %v301
    %v303 = vmul.f32 %v298, %v302
    %vm304 = vweird.f32 %v264
    %vm305 = vweird.f32 %v298
    %vm306 = vmor %vm304, %vm305
    %v307 = vsel %vm306, %v298, %v303
    %v308 = vrsqrt.pop %v265
    %v309 = vmul.f32 %v308, %v265
    %v310 = vmul.f32 %v309, %v308
    %v311 = vmul.f32 0.5, %v310
    %v312 = vsub.f32 1.5, %v311
    %v313 = vmul.f32 %v308, %v312
    %vm314 = vweird.f32 %v265
    %vm315 = vweird.f32 %v308
    %vm316 = vmor %vm314, %vm315
    %v317 = vsel %vm316, %v308, %v313
    %v318 = vrsqrt.pop %v266
    %v319 = vmul.f32 %v318, %v266
    %v320 = vmul.f32 %v319, %v318
    %v321 = vmul.f32 0.5, %v320
    %v322 = vsub.f32 1.5, %v321
    %v323 = vmul.f32 %v318, %v322
    %vm324 = vweird.f32 %v266
    %vm325 = vweird.f32 %v318
    %vm326 = vmor %vm324, %vm325
    %v327 = vsel %vm326, %v318, %v323
    %v328 = vrsqrt.pop %v267
    %v329 = vmul.f32 %v328, %v267
    %v330 = vmul.f32 %v329, %v328
    %v331 = vmul.f32 0.5, %v330
    %v332 = vsub.f32 1.5, %v331
    %v333 = vmul.f32 %v328, %v332
    %vm334 = vweird.f32 %v267
    %vm335 = vweird.f32 %v328
    %vm336 = vmor %vm334, %vm335
    %v337 = vsel %vm336, %v328, %v333
    %v338 = vrsqrt.pop %v268
    %v339 = vmul.f32 %v338, %v268
    %v340 = vmul.f32 %v339, %v338
    %v341 = vmul.f32 0.5, %v340
    %v342 = vsub.f32 1.5, %v341
    %v343 = vmul.f32 %v338, %v342
    %vm344 = vweird.f32 %v268
    %vm345 = vweird.f32 %v338
    %vm346 = vmor %vm344, %vm345
    %v347 = vsel %vm346, %v338, %v343
    %v348 = vrsqrt.pop %v269
    %v349 = vmul.f32 %v348, %v269
    %v350 = vmul.f32 %v349, %v348
    %v351 = vmul.f32 0.5, %v350
    %v352 = vsub.f32 1.5, %v351
    %v353 = vmul.f32 %v348, %v352
    %vm354 = vweird.f32 %v269
    %vm355 = vweird.f32 %v348
    %vm356 = vmor %vm354, %vm355
    %v357 = vsel %vm356, %v348, %v353
    %v358 = vrsqrt.pop %v270
    %v359 = vmul.f32 %v358, %v270
    %v360 = vmul.f32 %v359, %v358
    %v361 = vmul.f32 0.5, %v360
    %v362 = vsub.f32 1.5, %v361
    %v363 = vmul.f32 %v358, %v362
    %vm364 = vweird.f32 %v270
    %vm365 = vweird.f32 %v358
    %vm366 = vmor %vm364, %vm365
    %v367 = vsel %vm366, %v358, %v363
    %v368 = vrsqrt.pop %v271
    %v369 = vmul.f32 %v368, %v271
    %v370 = vmul.f32 %v369, %v368
    %v371 = vmul.f32 0.5, %v370
    %v372 = vsub.f32 1.5, %v371
    %v373 = vmul.f32 %v368, %v372
    %vm374 = vweird.f32 %v271
    %vm375 = vweird.f32 %v368
    %vm376 = vmor %vm374, %vm375
    %v377 = vsel %vm376, %v368, %v373
    %v378 = vrsqrt.pop %v272
    %v379 = vmul.f32 %v378, %v272
    %v380 = vmul.f32 %v379, %v378
    %v381 = vmul.f32 0.5, %v380
    %v382 = vsub.f32 1.5, %v381
    %v383 = vmul.f32 %v378, %v382
    %vm384 = vweird.f32 %v272
    %vm385 = vweird.f32 %v378
    %vm386 = vmor %vm384, %vm385
    %v387 = vsel %vm386, %v378, %v383
    %v388 = vrsqrt.pop %v273
    %v389 = vmul.f32 %v388, %v273
    %v390 = vmul.f32 %v389, %v388
    %v391 = vmul.f32 0.5, %v390
    %v392 = vsub.f32 1.5, %v391
    %v393 = vmul.f32 %v388, %v392
    %vm394 = vweird.f32 %v273
    %vm395 = vweird.f32 %v388
    %vm396 = vmor %vm394, %vm395
    %v397 = vsel %vm396, %v388, %v393
    %v398 = vrsqrt.pop %v274
    %v399 = vmul.f32 %v398, %v274
    %v400 = vmul.f32 %v399, %v398
    %v401 = vmul.f32 0.5, %v400
    %v402 = vsub.f32 1.5, %v401
    %v403 = vmul.f32 %v398, %v402
    %vm404 = vweird.f32 %v274
    %vm405 = vweird.f32 %v398
    %vm406 = vmor %vm404, %vm405
    %v407 = vsel %vm406, %v398, %v403
    %v408 = vrsqrt.pop %v275
    %v409 = vmul.f32 %v408, %v275
    %v410 = vmul.f32 %v409, %v408
    %v411 = vmul.f32 0.5, %v410
    %v412 = vsub.f32 1.5, %v411
    %v413 = vmul.f32 %v408, %v412
    %vm414 = vweird.f32 %v275
    %vm415 = vweird.f32 %v408
    %vm416 = vmor %vm414, %vm415
    %v417 = vsel %vm416, %v408, %v413
    %v418 = vrsqrt.pop %v276
    %v419 = vmul.f32 %v418, %v276
    %v420 = vmul.f32 %v419, %v418
    %v421 = vmul.f32 0.5, %v420
    %v422 = vsub.f32 1.5, %v421
    %v423 = vmul.f32 %v418, %v422
    %vm424 = vweird.f32 %v276
    %vm425 = vweird.f32 %v418
    %vm426 = vmor %vm424, %vm425
    %v427 = vsel %vm426, %v418, %v423
    %v428 = vrsqrt.pop %v277
    %v429 = vmul.f32 %v428, %v277
    %v430 = vmul.f32 %v429, %v428
    %v431 = vmul.f32 0.5, %v430
    %v432 = vsub.f32 1.5, %v431
    %v433 = vmul.f32 %v428, %v432
    %vm434 = vweird.f32 %v277
    %vm435 = vweird.f32 %v428
    %vm436 = vmor %vm434, %vm435
    %v437 = vsel %vm436, %v428, %v433
    %v438 = vmul.f32 %v166, %v287
    %v439 = vmul.f32 %v167, %v297
    %v440 = vmul.f32 %v168, %v307
    %v441 = vmul.f32 %v169, %v317
    %v442 = vmul.f32 %v170, %v327
    %v443 = vmul.f32 %v171, %v337
    %v444 = vmul.f32 %v172, %v347
    %v445 = vmul.f32 %v173, %v357
    %v446 = vmul.f32 %v174, %v367
    %v447 = vmul.f32 %v175, %v377
    %v448 = vmul.f32 %v176, %v387
    %v449 = vmul.f32 %v177, %v397
    %v450 = vmul.f32 %v178, %v407
    %v451 = vmul.f32 %v179, %v417
    %v452 = vmul.f32 %v180, %v427
    %v453 = vmul.f32 %v181, %v437
    %v454 = vld [vmem:[#allocation2] sm:$0x1]
    %v456 = vperm.slane %v454, 0
    %v458 = vmul.f32 %v438, %v456
    %v459 = vmul.f32 %v439, %v456
    %v460 = vmul.f32 %v440, %v456
    %v461 = vmul.f32 %v441, %v456
    %v462 = vmul.f32 %v442, %v456
    %v463 = vmul.f32 %v443, %v456
    %v464 = vmul.f32 %v444, %v456
    %v465 = vmul.f32 %v445, %v456
    %v466 = vmul.f32 %v446, %v456
    %v467 = vmul.f32 %v447, %v456
    %v468 = vmul.f32 %v448, %v456
    %v469 = vmul.f32 %v449, %v456
    %v470 = vmul.f32 %v450, %v456
    %v471 = vmul.f32 %v451, %v456
    %v472 = vmul.f32 %v452, %v456
    %v473 = vmul.f32 %v453, %v456
    %v474 = vld [vmem:[#allocation4] sm:$0x1]
    %v476 = vperm.slane %v474, 0
    %v478 = vadd.f32 %v458, %v476
    %v479 = vadd.f32 %v459, %v476
    %v480 = vadd.f32 %v460, %v476
    %v481 = vadd.f32 %v461, %v476
    %v482 = vadd.f32 %v462, %v476
    %v483 = vadd.f32 %v463, %v476
    %v484 = vadd.f32 %v464, %v476
    %v485 = vadd.f32 %v465, %v476
    %v486 = vadd.f32 %v466, %v476
    %v487 = vadd.f32 %v467, %v476
    %v488 = vadd.f32 %v468, %v476
    %v489 = vadd.f32 %v469, %v476
    %v490 = vadd.f32 %v470, %v476
    %v491 = vadd.f32 %v471, %v476
    %v492 = vadd.f32 %v472, %v476
    %v493 = vadd.f32 %v473, %v476
    %v494 = vpack.c.bf16 %v479, %v478
    %v495 = vpack.c.bf16 %v481, %v480
    %v496 = vpack.c.bf16 %v483, %v482
    %v497 = vpack.c.bf16 %v485, %v484
    %v498 = vpack.c.bf16 %v487, %v486
    %v499 = vpack.c.bf16 %v489, %v488
    %v500 = vpack.c.bf16 %v491, %v490
    %v501 = vpack.c.bf16 %v493, %v492
    %v502 = vld [vmem:[#allocation6] sm:$0xf]
    %v503 = vld [vmem:[#allocation6 + $0x4] sm:$0xf]
    %v504 = vld [vmem:[#allocation7] sm:$0x1]
    %v506 = vperm.slane %v504, 0
    %v510 = vunpack.c.l.b16 %v502
    %v511 = vunpack.c.l.b16 %v503
    %v512 = vpack.c.b16 %v511, %v510
    %v515 = vsel %vm94, %v494, 0
    %v518 = vsel %vm94, %v495, 0
    %v521 = vsel %vm94, %v496, 0
    %v524 = vsel %vm94, %v497, 0
    %v527 = vsel %vm94, %v498, 0
    %v530 = vsel %vm94, %v499, 0
    %v533 = vsel %vm94, %v500, 0
    %v536 = vsel %vm94, %v501, 0
    %538 = vmatpush.bf16.msra.mxu0 0
    %539 = vmatpush.bf16.msra.mxu0 0
    %540 = vmatpush.bf16.msra.mxu0 0
    %541 = vmatpush.bf16.msra.mxu0 0
    %542 = vmatpush.bf16.msra.mxu0 0
    %543 = vmatpush.bf16.msra.mxu0 0
    %544 = vmatpush.bf16.msra.mxu0 0
    %545 = vmatpush.bf16.msra.mxu0 %v512
    %546 = vmatmul.bf16.gmra.mxu0 %v515
    %v547 = vpop.f32.mrf.mxu0
    %v548 = vadd.f32 %v506, %v547
    %v549 = vpop.f32.mrf.mxu0
    %v550 = vadd.f32 %v506, %v549
    %551 = vmatmul.bf16.gmra.mxu0 %v518
    %v552 = vpop.f32.mrf.mxu0
    %v553 = vadd.f32 %v506, %v552
    %v554 = vpop.f32.mrf.mxu0
    %v555 = vadd.f32 %v506, %v554
    %556 = vmatmul.bf16.gmra.mxu0 %v521
    %v557 = vpop.f32.mrf.mxu0
    %v558 = vadd.f32 %v506, %v557
    %v559 = vpop.f32.mrf.mxu0
    %v560 = vadd.f32 %v506, %v559
    %561 = vmatmul.bf16.gmra.mxu0 %v524
    %v562 = vpop.f32.mrf.mxu0
    %v563 = vadd.f32 %v506, %v562
    %v564 = vpop.f32.mrf.mxu0
    %v565 = vadd.f32 %v506, %v564
    %566 = vmatmul.bf16.gmra.mxu0 %v527
    %v567 = vpop.f32.mrf.mxu0
    %v568 = vadd.f32 %v506, %v567
    %v569 = vpop.f32.mrf.mxu0
    %v570 = vadd.f32 %v506, %v569
    %571 = vmatmul.bf16.gmra.mxu0 %v530
    %v572 = vpop.f32.mrf.mxu0
    %v573 = vadd.f32 %v506, %v572
    %v574 = vpop.f32.mrf.mxu0
    %v575 = vadd.f32 %v506, %v574
    %576 = vmatmul.bf16.gmra.mxu0 %v533
    %v577 = vpop.f32.mrf.mxu0
    %v578 = vadd.f32 %v506, %v577
    %v579 = vpop.f32.mrf.mxu0
    %v580 = vadd.f32 %v506, %v579
    %581 = vmatmul.bf16.gmra.mxu0 %v536
    %v582 = vpop.f32.mrf.mxu0
    %v583 = vadd.f32 %v506, %v582
    %v584 = vpop.f32.mrf.mxu0
    %v585 = vadd.f32 %v506, %v584
    %586 = vdwg.mxu0
    %vm587 = vcmask 523264
    %588 = vst.msk [vmem:[%s5] sm:$0xff] %vm587, %v548
    %589 = vst.msk [vmem:[%s5 + $0x8] sm:$0xff] %vm587, %v550
    %590 = vst.msk [vmem:[%s5 + $0x10] sm:$0xff] %vm587, %v553
    %591 = vst.msk [vmem:[%s5 + $0x18] sm:$0xff] %vm587, %v555
    %592 = vst.msk [vmem:[%s5 + $0x20] sm:$0xff] %vm587, %v558
    %593 = vst.msk [vmem:[%s5 + $0x28] sm:$0xff] %vm587, %v560
    %594 = vst.msk [vmem:[%s5 + $0x30] sm:$0xff] %vm587, %v563
    %595 = vst.msk [vmem:[%s5 + $0x38] sm:$0xff] %vm587, %v565
    %596 = vst.msk [vmem:[%s5 + $0x40] sm:$0xff] %vm587, %v568
    %597 = vst.msk [vmem:[%s5 + $0x48] sm:$0xff] %vm587, %v570
    %598 = vst.msk [vmem:[%s5 + $0x50] sm:$0xff] %vm587, %v573
    %599 = vst.msk [vmem:[%s5 + $0x58] sm:$0xff] %vm587, %v575
    %600 = vst.msk [vmem:[%s5 + $0x60] sm:$0xff] %vm587, %v578
    %601 = vst.msk [vmem:[%s5 + $0x68] sm:$0xff] %vm587, %v580
    %602 = vst.msk [vmem:[%s5 + $0x70] sm:$0xff] %vm587, %v583
    %603 = vst.msk [vmem:[%s5 + $0x78] sm:$0xff] %vm587, %v585
    // Predicated region
    $region38: #{transformer_block.9} parent=1 // pred_check
      _
    $region39: #{transformer_block.9} parent=1 // pred_check_branch
      %605 = sbr.rel (0) target = $region41
    $region40: #{transformer_block.9} parent=1 // pred_region
      _
    $region41: #{transformer_block.9} parent=1 // pred_fallthru
      _
    // Predicated region
    $region42: #{transformer_block.9} parent=1 // pred_check
      _
    $region43: #{transformer_block.9} parent=1 // pred_check_branch
      %607 = sbr.rel (0) target = $region45
    $region44: #{transformer_block.9} parent=1 // pred_region
      _
    $region45: #{transformer_block.9} parent=1 // pred_fallthru
      _
    %608 = vsyncpa [#allocation3], 1
    %609 = vsyncpa [#allocation5], 1
    %610 = vsyncpa [#allocation8], 1

// kernel: transformer_block.6
$region0: #{transformer_block.6}
  #allocation0 [shape = 'u32[]', space=smem, size = 0x4, offset = 0x4, fixed_abs, tag = 'smem constant byte address 0x4 - core index']
  #allocation1 [shape = 'u32[72,128]{1,0:T(1,128)}', space=vmem, size = 0x9000, scoped, tag = 'internal scratch']
  %s0 = inlined_call_operand.hbm [shape: f32[128,16], index: 0, kind: input, shape index: {}]
  %s1 = inlined_call_operand.vmem [shape: f32[1,16], index: 1, kind: input, shape index: {}]
  %s2 = inlined_call_operand.vmem [shape: f32[1,16], index: 2, kind: input, shape index: {}]
  %s3 = inlined_call_operand.vmem [shape: bf16[16,48], index: 3, kind: input, shape index: {}]
  %s4 = inlined_call_operand.vmem [shape: f32[1,48], index: 4, kind: input, shape index: {}]
  %s5 = inlined_call_operand.vmem [shape: f32[128,48], index: 5, kind: output, shape index: {}]
  %s6 = sld [smem:[#allocation0]]
  $region34: #{transformer_block.6} parent=0
    _
  %s8 = ssub.s32 1, %s6
  %s9 = scalar_select 0, %s8, %s6
  $region1: #{transformer_block.6} parent=0
    #allocation2 [shape = 'u8[65536]{0}', space=vmem, size = 0x10000, scoped, tag = 'input window, operand 0, single buffered']
    #allocation3 [shape = 's32[1]{0}', space=sflag, size = 0x4, scoped, tag = 'scoped memory for transformer_block.6']
    %10 = vsyncpa [#allocation3], 0
    // Predicated region
    $region2: #{transformer_block.6} parent=1 // pred_check
      _
    $region3: #{transformer_block.6} parent=1 // pred_check_branch
      %12 = sbr.rel (0) target = $region5
    $region4: #{transformer_block.6} parent=1 // pred_region
      %14 = vsyncadd [#allocation3], 0
      %s15 = sshll.u32 %s0, 4
      %s16 = int_to_ptr.hbm [resolvable:$true] %s15
      %s17 = sshll.u32 [#allocation2], 4
      %s18 = int_to_ptr.vmem [resolvable:$true] %s17
      %23 = dma.hbm_to_vmem [thread:$0]  %s16, 2048, %s18, [#allocation3], 128, 128, 8
    $region5: #{transformer_block.6} parent=1 // pred_fallthru
      _
    // Predicated region
    $region6: #{transformer_block.6} parent=1 // pred_check
      _
    $region7: #{transformer_block.6} parent=1 // pred_check_branch
      %25 = sbr.rel (0) target = $region9
    $region8: #{transformer_block.6} parent=1 // pred_region
      _
    $region9: #{transformer_block.6} parent=1 // pred_fallthru
      _
    // Predicated region
    $region10: #{transformer_block.6} parent=1 // pred_check
      _
    $region11: #{transformer_block.6} parent=1 // pred_check_branch
      %27 = sbr.rel (0) target = $region13
    $region12: #{transformer_block.6} parent=1 // pred_region
      _
    $region13: #{transformer_block.6} parent=1 // pred_fallthru
      _
    // Predicated region
    $region14: #{transformer_block.6} parent=1 // pred_check
      _
    $region15: #{transformer_block.6} parent=1 // pred_check_branch
      %29 = sbr.rel (0) target = $region17
    $region16: #{transformer_block.6} parent=1 // pred_region
      _
    $region17: #{transformer_block.6} parent=1 // pred_fallthru
      _
    // Predicated region
    $region18: #{transformer_block.6} parent=1 // pred_check
      _
    $region19: #{transformer_block.6} parent=1 // pred_check_branch
      %31 = sbr.rel (0) target = $region21
    $region20: #{transformer_block.6} parent=1 // pred_region
      _
    $region21: #{transformer_block.6} parent=1 // pred_fallthru
      _
    // Predicated region
    $region22: #{transformer_block.6} parent=1 // pred_check
      _
    $region23: #{transformer_block.6} parent=1 // pred_check_branch
      %33 = sbr.rel (0) target = $region25
    $region24: #{transformer_block.6} parent=1 // pred_region
      %35 = dma.done [#allocation3], 2048
    $region25: #{transformer_block.6} parent=1 // pred_fallthru
      _
    %v37 = vld [vmem:[#allocation2] sm:$0xff]
    %v38 = vld [vmem:[#allocation2 + $0x8] sm:$0xff]
    %v39 = vld [vmem:[#allocation2 + $0x10] sm:$0xff]
    %v40 = vld [vmem:[#allocation2 + $0x18] sm:$0xff]
    %v41 = vld [vmem:[#allocation2 + $0x20] sm:$0xff]
    %v42 = vld [vmem:[#allocation2 + $0x28] sm:$0xff]
    %v43 = vld [vmem:[#allocation2 + $0x30] sm:$0xff]
    %v44 = vld [vmem:[#allocation2 + $0x38] sm:$0xff]
    %v45 = vld [vmem:[#allocation2 + $0x40] sm:$0xff]
    %v46 = vld [vmem:[#allocation2 + $0x48] sm:$0xff]
    %v47 = vld [vmem:[#allocation2 + $0x50] sm:$0xff]
    %v48 = vld [vmem:[#allocation2 + $0x58] sm:$0xff]
    %v49 = vld [vmem:[#allocation2 + $0x60] sm:$0xff]
    %v50 = vld [vmem:[#allocation2 + $0x68] sm:$0xff]
    %v51 = vld [vmem:[#allocation2 + $0x70] sm:$0xff]
    %v52 = vld [vmem:[#allocation2 + $0x78] sm:$0xff]
    %vm53 = vcmask 130048
    %v54 = vsel %vm53, %v37, 0.0
    %55 = vadd.xlane.f32.xlu0 %v54
    %v56 = vpop.xlane.xlu0 %55
    %v57 = vsel %vm53, %v38, 0.0
    %58 = vadd.xlane.f32.xlu0 %v57
    %v59 = vpop.xlane.xlu0 %58
    %v60 = vsel %vm53, %v39, 0.0
    %61 = vadd.xlane.f32.xlu0 %v60
    %v62 = vpop.xlane.xlu0 %61
    %v63 = vsel %vm53, %v40, 0.0
    %64 = vadd.xlane.f32.xlu0 %v63
    %v65 = vpop.xlane.xlu0 %64
    %v66 = vsel %vm53, %v41, 0.0
    %67 = vadd.xlane.f32.xlu0 %v66
    %v68 = vpop.xlane.xlu0 %67
    %v69 = vsel %vm53, %v42, 0.0
    %70 = vadd.xlane.f32.xlu0 %v69
    %v71 = vpop.xlane.xlu0 %70
    %v72 = vsel %vm53, %v43, 0.0
    %73 = vadd.xlane.f32.xlu0 %v72
    %v74 = vpop.xlane.xlu0 %73
    %v75 = vsel %vm53, %v44, 0.0
    %76 = vadd.xlane.f32.xlu0 %v75
    %v77 = vpop.xlane.xlu0 %76
    %v78 = vsel %vm53, %v45, 0.0
    %79 = vadd.xlane.f32.xlu0 %v78
    %v80 = vpop.xlane.xlu0 %79
    %v81 = vsel %vm53, %v46, 0.0
    %82 = vadd.xlane.f32.xlu0 %v81
    %v83 = vpop.xlane.xlu0 %82
    %v84 = vsel %vm53, %v47, 0.0
    %85 = vadd.xlane.f32.xlu0 %v84
    %v86 = vpop.xlane.xlu0 %85
    %v87 = vsel %vm53, %v48, 0.0
    %88 = vadd.xlane.f32.xlu0 %v87
    %v89 = vpop.xlane.xlu0 %88
    %v90 = vsel %vm53, %v49, 0.0
    %91 = vadd.xlane.f32.xlu0 %v90
    %v92 = vpop.xlane.xlu0 %91
    %v93 = vsel %vm53, %v50, 0.0
    %94 = vadd.xlane.f32.xlu0 %v93
    %v95 = vpop.xlane.xlu0 %94
    %v96 = vsel %vm53, %v51, 0.0
    %97 = vadd.xlane.f32.xlu0 %v96
    %v98 = vpop.xlane.xlu0 %97
    %v99 = vsel %vm53, %v52, 0.0
    %100 = vadd.xlane.f32.xlu0 %v99
    %v101 = vpop.xlane.xlu0 %100
    %v102 = vrcp.pop 16.0
    %v103 = vmul.f32 16.0, %v102
    %v104 = vsub.f32 1.0, %v103
    %v105 = vmul.f32 %v102, %v104
    %v106 = vadd.f32 %v102, %v105
    %vm107 = vweird.f32 %v102
    %v108 = vsel %vm107, %v102, %v106
    %v109 = vmul.f32 %v56, %v108
    %v110 = vmul.f32 %v59, %v108
    %v111 = vmul.f32 %v62, %v108
    %v112 = vmul.f32 %v65, %v108
    %v113 = vmul.f32 %v68, %v108
    %v114 = vmul.f32 %v71, %v108
    %v115 = vmul.f32 %v74, %v108
    %v116 = vmul.f32 %v77, %v108
    %v117 = vmul.f32 %v80, %v108
    %v118 = vmul.f32 %v83, %v108
    %v119 = vmul.f32 %v86, %v108
    %v120 = vmul.f32 %v89, %v108
    %v121 = vmul.f32 %v92, %v108
    %v122 = vmul.f32 %v95, %v108
    %v123 = vmul.f32 %v98, %v108
    %v124 = vmul.f32 %v101, %v108
    %v125 = vsub.f32 %v37, %v109
    %v126 = vsub.f32 %v38, %v110
    %v127 = vsub.f32 %v39, %v111
    %v128 = vsub.f32 %v40, %v112
    %v129 = vsub.f32 %v41, %v113
    %v130 = vsub.f32 %v42, %v114
    %v131 = vsub.f32 %v43, %v115
    %v132 = vsub.f32 %v44, %v116
    %v133 = vsub.f32 %v45, %v117
    %v134 = vsub.f32 %v46, %v118
    %v135 = vsub.f32 %v47, %v119
    %v136 = vsub.f32 %v48, %v120
    %v137 = vsub.f32 %v49, %v121
    %v138 = vsub.f32 %v50, %v122
    %v139 = vsub.f32 %v51, %v123
    %v140 = vsub.f32 %v52, %v124
    %v141 = vmul.f32 %v125, %v125
    %v142 = vmul.f32 %v126, %v126
    %v143 = vmul.f32 %v127, %v127
    %v144 = vmul.f32 %v128, %v128
    %v145 = vmul.f32 %v129, %v129
    %v146 = vmul.f32 %v130, %v130
    %v147 = vmul.f32 %v131, %v131
    %v148 = vmul.f32 %v132, %v132
    %v149 = vmul.f32 %v133, %v133
    %v150 = vmul.f32 %v134, %v134
    %v151 = vmul.f32 %v135, %v135
    %v152 = vmul.f32 %v136, %v136
    %v153 = vmul.f32 %v137, %v137
    %v154 = vmul.f32 %v138, %v138
    %v155 = vmul.f32 %v139, %v139
    %v156 = vmul.f32 %v140, %v140
    %v157 = vsel %vm53, %v141, 0.0
    %158 = vadd.xlane.f32.xlu0 %v157
    %v159 = vpop.xlane.xlu0 %158
    %v160 = vsel %vm53, %v142, 0.0
    %161 = vadd.xlane.f32.xlu0 %v160
    %v162 = vpop.xlane.xlu0 %161
    %v163 = vsel %vm53, %v143, 0.0
    %164 = vadd.xlane.f32.xlu0 %v163
    %v165 = vpop.xlane.xlu0 %164
    %v166 = vsel %vm53, %v144, 0.0
    %167 = vadd.xlane.f32.xlu0 %v166
    %v168 = vpop.xlane.xlu0 %167
    %v169 = vsel %vm53, %v145, 0.0
    %170 = vadd.xlane.f32.xlu0 %v169
    %v171 = vpop.xlane.xlu0 %170
    %v172 = vsel %vm53, %v146, 0.0
    %173 = vadd.xlane.f32.xlu0 %v172
    %v174 = vpop.xlane.xlu0 %173
    %v175 = vsel %vm53, %v147, 0.0
    %176 = vadd.xlane.f32.xlu0 %v175
    %v177 = vpop.xlane.xlu0 %176
    %v178 = vsel %vm53, %v148, 0.0
    %179 = vadd.xlane.f32.xlu0 %v178
    %v180 = vpop.xlane.xlu0 %179
    %v181 = vsel %vm53, %v149, 0.0
    %182 = vadd.xlane.f32.xlu0 %v181
    %v183 = vpop.xlane.xlu0 %182
    %v184 = vsel %vm53, %v150, 0.0
    %185 = vadd.xlane.f32.xlu0 %v184
    %v186 = vpop.xlane.xlu0 %185
    %v187 = vsel %vm53, %v151, 0.0
    %188 = vadd.xlane.f32.xlu0 %v187
    %v189 = vpop.xlane.xlu0 %188
    %v190 = vsel %vm53, %v152, 0.0
    %191 = vadd.xlane.f32.xlu0 %v190
    %v192 = vpop.xlane.xlu0 %191
    %v193 = vsel %vm53, %v153, 0.0
    %194 = vadd.xlane.f32.xlu0 %v193
    %v195 = vpop.xlane.xlu0 %194
    %v196 = vsel %vm53, %v154, 0.0
    %197 = vadd.xlane.f32.xlu0 %v196
    %v198 = vpop.xlane.xlu0 %197
    %v199 = vsel %vm53, %v155, 0.0
    %200 = vadd.xlane.f32.xlu0 %v199
    %v201 = vpop.xlane.xlu0 %200
    %v202 = vsel %vm53, %v156, 0.0
    %203 = vadd.xlane.f32.xlu0 %v202
    %v204 = vpop.xlane.xlu0 %203
    %v205 = vmul.f32 %v159, %v108
    %v206 = vmul.f32 %v162, %v108
    %v207 = vmul.f32 %v165, %v108
    %v208 = vmul.f32 %v168, %v108
    %v209 = vmul.f32 %v171, %v108
    %v210 = vmul.f32 %v174, %v108
    %v211 = vmul.f32 %v177, %v108
    %v212 = vmul.f32 %v180, %v108
    %v213 = vmul.f32 %v183, %v108
    %v214 = vmul.f32 %v186, %v108
    %v215 = vmul.f32 %v189, %v108
    %v216 = vmul.f32 %v192, %v108
    %v217 = vmul.f32 %v195, %v108
    %v218 = vmul.f32 %v198, %v108
    %v219 = vmul.f32 %v201, %v108
    %v220 = vmul.f32 %v204, %v108
    %v221 = vadd.f32 %v205, 1e-05
    %v222 = vadd.f32 %v206, 1e-05
    %v223 = vadd.f32 %v207, 1e-05
    %v224 = vadd.f32 %v208, 1e-05
    %v225 = vadd.f32 %v209, 1e-05
    %v226 = vadd.f32 %v210, 1e-05
    %v227 = vadd.f32 %v211, 1e-05
    %v228 = vadd.f32 %v212, 1e-05
    %v229 = vadd.f32 %v213, 1e-05
    %v230 = vadd.f32 %v214, 1e-05
    %v231 = vadd.f32 %v215, 1e-05
    %v232 = vadd.f32 %v216, 1e-05
    %v233 = vadd.f32 %v217, 1e-05
    %v234 = vadd.f32 %v218, 1e-05
    %v235 = vadd.f32 %v219, 1e-05
    %v236 = vadd.f32 %v220, 1e-05
    %v237 = vrsqrt.pop %v221
    %v238 = vmul.f32 %v237, %v221
    %v239 = vmul.f32 %v238, %v237
    %v240 = vmul.f32 0.5, %v239
    %v241 = vsub.f32 1.5, %v240
    %v242 = vmul.f32 %v237, %v241
    %vm243 = vweird.f32 %v221
    %vm244 = vweird.f32 %v237
    %vm245 = vmor %vm243, %vm244
    %v246 = vsel %vm245, %v237, %v242
    %v247 = vrsqrt.pop %v222
    %v248 = vmul.f32 %v247, %v222
    %v249 = vmul.f32 %v248, %v247
    %v250 = vmul.f32 0.5, %v249
    %v251 = vsub.f32 1.5, %v250
    %v252 = vmul.f32 %v247, %v251
    %vm253 = vweird.f32 %v222
    %vm254 = vweird.f32 %v247
    %vm255 = vmor %vm253, %vm254
    %v256 = vsel %vm255, %v247, %v252
    %v257 = vrsqrt.pop %v223
    %v258 = vmul.f32 %v257, %v223
    %v259 = vmul.f32 %v258, %v257
    %v260 = vmul.f32 0.5, %v259
    %v261 = vsub.f32 1.5, %v260
    %v262 = vmul.f32 %v257, %v261
    %vm263 = vweird.f32 %v223
    %vm264 = vweird.f32 %v257
    %vm265 = vmor %vm263, %vm264
    %v266 = vsel %vm265, %v257, %v262
    %v267 = vrsqrt.pop %v224
    %v268 = vmul.f32 %v267, %v224
    %v269 = vmul.f32 %v268, %v267
    %v270 = vmul.f32 0.5, %v269
    %v271 = vsub.f32 1.5, %v270
    %v272 = vmul.f32 %v267, %v271
    %vm273 = vweird.f32 %v224
    %vm274 = vweird.f32 %v267
    %vm275 = vmor %vm273, %vm274
    %v276 = vsel %vm275, %v267, %v272
    %v277 = vrsqrt.pop %v225
    %v278 = vmul.f32 %v277, %v225
    %v279 = vmul.f32 %v278, %v277
    %v280 = vmul.f32 0.5, %v279
    %v281 = vsub.f32 1.5, %v280
    %v282 = vmul.f32 %v277, %v281
    %vm283 = vweird.f32 %v225
    %vm284 = vweird.f32 %v277
    %vm285 = vmor %vm283, %vm284
    %v286 = vsel %vm285, %v277, %v282
    %v287 = vrsqrt.pop %v226
    %v288 = vmul.f32 %v287, %v226
    %v289 = vmul.f32 %v288, %v287
    %v290 = vmul.f32 0.5, %v289
    %v291 = vsub.f32 1.5, %v290
    %v292 = vmul.f32 %v287, %v291
    %vm293 = vweird.f32 %v226
    %vm294 = vweird.f32 %v287
    %vm295 = vmor %vm293, %vm294
    %v296 = vsel %vm295, %v287, %v292
    %v297 = vrsqrt.pop %v227
    %v298 = vmul.f32 %v297, %v227
    %v299 = vmul.f32 %v298, %v297
    %v300 = vmul.f32 0.5, %v299
    %v301 = vsub.f32 1.5, %v300
    %v302 = vmul.f32 %v297, %v301
    %vm303 = vweird.f32 %v227
    %vm304 = vweird.f32 %v297
    %vm305 = vmor %vm303, %vm304
    %v306 = vsel %vm305, %v297, %v302
    %v307 = vrsqrt.pop %v228
    %v308 = vmul.f32 %v307, %v228
    %v309 = vmul.f32 %v308, %v307
    %v310 = vmul.f32 0.5, %v309
    %v311 = vsub.f32 1.5, %v310
    %v312 = vmul.f32 %v307, %v311
    %vm313 = vweird.f32 %v228
    %vm314 = vweird.f32 %v307
    %vm315 = vmor %vm313, %vm314
    %v316 = vsel %vm315, %v307, %v312
    %v317 = vrsqrt.pop %v229
    %v318 = vmul.f32 %v317, %v229
    %v319 = vmul.f32 %v318, %v317
    %v320 = vmul.f32 0.5, %v319
    %v321 = vsub.f32 1.5, %v320
    %v322 = vmul.f32 %v317, %v321
    %vm323 = vweird.f32 %v229
    %vm324 = vweird.f32 %v317
    %vm325 = vmor %vm323, %vm324
    %v326 = vsel %vm325, %v317, %v322
    %v327 = vrsqrt.pop %v230
    %v328 = vmul.f32 %v327, %v230
    %v329 = vmul.f32 %v328, %v327
    %v330 = vmul.f32 0.5, %v329
    %v331 = vsub.f32 1.5, %v330
    %v332 = vmul.f32 %v327, %v331
    %vm333 = vweird.f32 %v230
    %vm334 = vweird.f32 %v327
    %vm335 = vmor %vm333, %vm334
    %v336 = vsel %vm335, %v327, %v332
    %v337 = vrsqrt.pop %v231
    %v338 = vmul.f32 %v337, %v231
    %v339 = vmul.f32 %v338, %v337
    %v340 = vmul.f32 0.5, %v339
    %v341 = vsub.f32 1.5, %v340
    %v342 = vmul.f32 %v337, %v341
    %vm343 = vweird.f32 %v231
    %vm344 = vweird.f32 %v337
    %vm345 = vmor %vm343, %vm344
    %v346 = vsel %vm345, %v337, %v342
    %v347 = vrsqrt.pop %v232
    %v348 = vmul.f32 %v347, %v232
    %v349 = vmul.f32 %v348, %v347
    %v350 = vmul.f32 0.5, %v349
    %v351 = vsub.f32 1.5, %v350
    %v352 = vmul.f32 %v347, %v351
    %vm353 = vweird.f32 %v232
    %vm354 = vweird.f32 %v347
    %vm355 = vmor %vm353, %vm354
    %v356 = vsel %vm355, %v347, %v352
    %v357 = vrsqrt.pop %v233
    %v358 = vmul.f32 %v357, %v233
    %v359 = vmul.f32 %v358, %v357
    %v360 = vmul.f32 0.5, %v359
    %v361 = vsub.f32 1.5, %v360
    %v362 = vmul.f32 %v357, %v361
    %vm363 = vweird.f32 %v233
    %vm364 = vweird.f32 %v357
    %vm365 = vmor %vm363, %vm364
    %v366 = vsel %vm365, %v357, %v362
    %v367 = vrsqrt.pop %v234
    %v368 = vmul.f32 %v367, %v234
    %v369 = vmul.f32 %v368, %v367
    %v370 = vmul.f32 0.5, %v369
    %v371 = vsub.f32 1.5, %v370
    %v372 = vmul.f32 %v367, %v371
    %vm373 = vweird.f32 %v234
    %vm374 = vweird.f32 %v367
    %vm375 = vmor %vm373, %vm374
    %v376 = vsel %vm375, %v367, %v372
    %v377 = vrsqrt.pop %v235
    %v378 = vmul.f32 %v377, %v235
    %v379 = vmul.f32 %v378, %v377
    %v380 = vmul.f32 0.5, %v379
    %v381 = vsub.f32 1.5, %v380
    %v382 = vmul.f32 %v377, %v381
    %vm383 = vweird.f32 %v235
    %vm384 = vweird.f32 %v377
    %vm385 = vmor %vm383, %vm384
    %v386 = vsel %vm385, %v377, %v382
    %v387 = vrsqrt.pop %v236
    %v388 = vmul.f32 %v387, %v236
    %v389 = vmul.f32 %v388, %v387
    %v390 = vmul.f32 0.5, %v389
    %v391 = vsub.f32 1.5, %v390
    %v392 = vmul.f32 %v387, %v391
    %vm393 = vweird.f32 %v236
    %vm394 = vweird.f32 %v387
    %vm395 = vmor %vm393, %vm394
    %v396 = vsel %vm395, %v387, %v392
    %v397 = vmul.f32 %v125, %v246
    %v398 = vmul.f32 %v126, %v256
    %v399 = vmul.f32 %v127, %v266
    %v400 = vmul.f32 %v128, %v276
    %v401 = vmul.f32 %v129, %v286
    %v402 = vmul.f32 %v130, %v296
    %v403 = vmul.f32 %v131, %v306
    %v404 = vmul.f32 %v132, %v316
    %v405 = vmul.f32 %v133, %v326
    %v406 = vmul.f32 %v134, %v336
    %v407 = vmul.f32 %v135, %v346
    %v408 = vmul.f32 %v136, %v356
    %v409 = vmul.f32 %v137, %v366
    %v410 = vmul.f32 %v138, %v376
    %v411 = vmul.f32 %v139, %v386
    %v412 = vmul.f32 %v140, %v396
    %v413 = vld [vmem:[%s1] sm:$0x1]
    %v415 = vperm.slane %v413, 0
    %v417 = vmul.f32 %v397, %v415
    %v418 = vmul.f32 %v398, %v415
    %v419 = vmul.f32 %v399, %v415
    %v420 = vmul.f32 %v400, %v415
    %v421 = vmul.f32 %v401, %v415
    %v422 = vmul.f32 %v402, %v415
    %v423 = vmul.f32 %v403, %v415
    %v424 = vmul.f32 %v404, %v415
    %v425 = vmul.f32 %v405, %v415
    %v426 = vmul.f32 %v406, %v415
    %v427 = vmul.f32 %v407, %v415
    %v428 = vmul.f32 %v408, %v415
    %v429 = vmul.f32 %v409, %v415
    %v430 = vmul.f32 %v410, %v415
    %v431 = vmul.f32 %v411, %v415
    %v432 = vmul.f32 %v412, %v415
    %v433 = vld [vmem:[%s2] sm:$0x1]
    %v435 = vperm.slane %v433, 0
    %v437 = vadd.f32 %v417, %v435
    %v438 = vadd.f32 %v418, %v435
    %v439 = vadd.f32 %v419, %v435
    %v440 = vadd.f32 %v420, %v435
    %v441 = vadd.f32 %v421, %v435
    %v442 = vadd.f32 %v422, %v435
    %v443 = vadd.f32 %v423, %v435
    %v444 = vadd.f32 %v424, %v435
    %v445 = vadd.f32 %v425, %v435
    %v446 = vadd.f32 %v426, %v435
    %v447 = vadd.f32 %v427, %v435
    %v448 = vadd.f32 %v428, %v435
    %v449 = vadd.f32 %v429, %v435
    %v450 = vadd.f32 %v430, %v435
    %v451 = vadd.f32 %v431, %v435
    %v452 = vadd.f32 %v432, %v435
    %v453 = vpack.c.bf16 %v438, %v437
    %v454 = vpack.c.bf16 %v440, %v439
    %v455 = vpack.c.bf16 %v442, %v441
    %v456 = vpack.c.bf16 %v444, %v443
    %v457 = vpack.c.bf16 %v446, %v445
    %v458 = vpack.c.bf16 %v448, %v447
    %v459 = vpack.c.bf16 %v450, %v449
    %v460 = vpack.c.bf16 %v452, %v451
    %v461 = vld [vmem:[%s3] sm:$0xf]
    %v462 = vld [vmem:[%s3 + $0x4] sm:$0xf]
    %v463 = vld [vmem:[%s4] sm:$0x1]
    %v465 = vperm.slane %v463, 0
    %v469 = vunpack.c.l.b16 %v461
    %v470 = vunpack.c.l.b16 %v462
    %v471 = vpack.c.b16 %v470, %v469
    %v474 = vsel %vm53, %v453, 0
    %v477 = vsel %vm53, %v454, 0
    %v480 = vsel %vm53, %v455, 0
    %v483 = vsel %vm53, %v456, 0
    %v486 = vsel %vm53, %v457, 0
    %v489 = vsel %vm53, %v458, 0
    %v492 = vsel %vm53, %v459, 0
    %v495 = vsel %vm53, %v460, 0
    %497 = vmatpush.bf16.msra.mxu0 0
    %498 = vmatpush.bf16.msra.mxu0 0
    %499 = vmatpush.bf16.msra.mxu0 0
    %500 = vmatpush.bf16.msra.mxu0 0
    %501 = vmatpush.bf16.msra.mxu0 0
    %502 = vmatpush.bf16.msra.mxu0 0
    %503 = vmatpush.bf16.msra.mxu0 0
    %504 = vmatpush.bf16.msra.mxu0 %v471
    %505 = vmatmul.bf16.gmra.mxu0 %v474
    %v506 = vpop.f32.mrf.mxu0
    %v507 = vadd.f32 %v465, %v506
    %v508 = vpop.f32.mrf.mxu0
    %v509 = vadd.f32 %v465, %v508
    %510 = vmatmul.bf16.gmra.mxu0 %v477
    %v511 = vpop.f32.mrf.mxu0
    %v512 = vadd.f32 %v465, %v511
    %v513 = vpop.f32.mrf.mxu0
    %v514 = vadd.f32 %v465, %v513
    %515 = vmatmul.bf16.gmra.mxu0 %v480
    %v516 = vpop.f32.mrf.mxu0
    %v517 = vadd.f32 %v465, %v516
    %v518 = vpop.f32.mrf.mxu0
    %v519 = vadd.f32 %v465, %v518
    %520 = vmatmul.bf16.gmra.mxu0 %v483
    %v521 = vpop.f32.mrf.mxu0
    %v522 = vadd.f32 %v465, %v521
    %v523 = vpop.f32.mrf.mxu0
    %v524 = vadd.f32 %v465, %v523
    %525 = vmatmul.bf16.gmra.mxu0 %v486
    %v526 = vpop.f32.mrf.mxu0
    %v527 = vadd.f32 %v465, %v526
    %v528 = vpop.f32.mrf.mxu0
    %v529 = vadd.f32 %v465, %v528
    %530 = vmatmul.bf16.gmra.mxu0 %v489
    %v531 = vpop.f32.mrf.mxu0
    %v532 = vadd.f32 %v465, %v531
    %v533 = vpop.f32.mrf.mxu0
    %v534 = vadd.f32 %v465, %v533
    %535 = vmatmul.bf16.gmra.mxu0 %v492
    %v536 = vpop.f32.mrf.mxu0
    %v537 = vadd.f32 %v465, %v536
    %v538 = vpop.f32.mrf.mxu0
    %v539 = vadd.f32 %v465, %v538
    %540 = vmatmul.bf16.gmra.mxu0 %v495
    %v541 = vpop.f32.mrf.mxu0
    %v542 = vadd.f32 %v465, %v541
    %v543 = vpop.f32.mrf.mxu0
    %v544 = vadd.f32 %v465, %v543
    %545 = vdwg.mxu0
    %vm546 = vcmask 392192
    %547 = vst.msk [vmem:[%s5] sm:$0xff] %vm546, %v507
    %548 = vst.msk [vmem:[%s5 + $0x8] sm:$0xff] %vm546, %v509
    %549 = vst.msk [vmem:[%s5 + $0x10] sm:$0xff] %vm546, %v512
    %550 = vst.msk [vmem:[%s5 + $0x18] sm:$0xff] %vm546, %v514
    %551 = vst.msk [vmem:[%s5 + $0x20] sm:$0xff] %vm546, %v517
    %552 = vst.msk [vmem:[%s5 + $0x28] sm:$0xff] %vm546, %v519
    %553 = vst.msk [vmem:[%s5 + $0x30] sm:$0xff] %vm546, %v522
    %554 = vst.msk [vmem:[%s5 + $0x38] sm:$0xff] %vm546, %v524
    %555 = vst.msk [vmem:[%s5 + $0x40] sm:$0xff] %vm546, %v527
    %556 = vst.msk [vmem:[%s5 + $0x48] sm:$0xff] %vm546, %v529
    %557 = vst.msk [vmem:[%s5 + $0x50] sm:$0xff] %vm546, %v532
    %558 = vst.msk [vmem:[%s5 + $0x58] sm:$0xff] %vm546, %v534
    %559 = vst.msk [vmem:[%s5 + $0x60] sm:$0xff] %vm546, %v537
    %560 = vst.msk [vmem:[%s5 + $0x68] sm:$0xff] %vm546, %v539
    %561 = vst.msk [vmem:[%s5 + $0x70] sm:$0xff] %vm546, %v542
    %562 = vst.msk [vmem:[%s5 + $0x78] sm:$0xff] %vm546, %v544
    // Predicated region
    $region26: #{transformer_block.6} parent=1 // pred_check
      _
    $region27: #{transformer_block.6} parent=1 // pred_check_branch
      %564 = sbr.rel (0) target = $region29
    $region28: #{transformer_block.6} parent=1 // pred_region
      _
    $region29: #{transformer_block.6} parent=1 // pred_fallthru
      _
    // Predicated region
    $region30: #{transformer_block.6} parent=1 // pred_check
      _
    $region31: #{transformer_block.6} parent=1 // pred_check_branch
      %566 = sbr.rel (0) target = $region33
    $region32: #{transformer_block.6} parent=1 // pred_region
      _
    $region33: #{transformer_block.6} parent=1 // pred_fallthru
      _
    %567 = vsyncpa [#allocation3], 1

// kernel: transformer_block.8
$region0: #{transformer_block.8}
  #allocation0 [shape = 'u32[]', space=smem, size = 0x4, offset = 0x4, fixed_abs, tag = 'smem constant byte address 0x4 - core index']
  #allocation1 [shape = 'u32[72,128]{1,0:T(1,128)}', space=vmem, size = 0x9000, scoped, tag = 'internal scratch']
  %s0 = inlined_call_operand.vmem [shape: f32[2,64,48], index: 0, kind: input, shape index: {}]
  %s1 = inlined_call_operand.vmem [shape: f32[2,1], index: 1, kind: input, shape index: {}]
  %s2 = inlined_call_operand.hbm [shape: bf16[16,16], index: 2, kind: input, shape index: {}]
  %s3 = inlined_call_operand.vmem [shape: f32[1,16], index: 3, kind: input, shape index: {}]
  %s4 = inlined_call_operand.hbm [shape: f32[128,16], index: 4, kind: input, shape index: {}]
  %s5 = inlined_call_operand.vmem [shape: f32[128,16], index: 5, kind: output, shape index: {}]
  %s6 = sld [smem:[#allocation0]]
  $region61: #{transformer_block.8} parent=0
    _
  %s8 = ssub.s32 1, %s6
  %s9 = scalar_select 0, %s8, %s6
  $region1: #{transformer_block.8} parent=0
    #allocation2 [shape = 'u8[4096]{0}', space=vmem, size = 0x1000, scoped, tag = 'input window, operand 2, single buffered']
    #allocation3 [shape = 's32[2]{0}', space=sflag, size = 0x8, scoped, tag = 'scoped memory for transformer_block.8']
    #allocation4 [shape = 'u8[65536]{0}', space=vmem, size = 0x10000, scoped, tag = 'input window, operand 4']
    #allocation5 [shape = 's32[2]{0}', space=sflag, size = 0x8, scoped, tag = 'scoped memory for transformer_block.8']
    %10 = vsyncpa [#allocation3], 0
    %11 = vsyncpa [#allocation5], 0
    %s12 = scalar_lea.sflag [#allocation5], 1
    %13 = vsyncpa %s12, 0
    loop: start=0, step=1, limit=4
    $region2: #{transformer_block.8} parent=1 // loop_pre_header
      _
    $region3: #{transformer_block.8} parent=1 // loop_header
      %s15 = sphi 0, %s19
      %p16 = scmp.ge.s32.totalorder %s15, 4
      %s25 = sphi 0, %s27
      %s28 = sphi 0, %s25
      %s29 = sphi 0, %s28
      %s45 = sphi 0, %s29
      %s49 = sphi 0, %s49
      %s51 = sphi 0, %s49
      %s52 = sphi 0, %s51
      %s66 = sphi 0, %s52
      %s70 = sphi 0, %s70
      %s72 = sphi 0, %s70
      %s73 = sphi 0, %s72
      %s87 = sphi 0, %s73
      %s91 = sphi 0, %s91
      %s93 = sphi 0, %s91
      %s94 = sphi 0, %s93
      %s108 = sphi 0, %s94
      %s114 = sphi 0, %s116
      %s117 = sphi 0, %s114
      %s118 = sphi 0, %s117
      %s134 = sphi 0, %s118
      %s140 = sphi 0, %s142
      %s143 = sphi 0, %s140
      %s144 = sphi 0, %s143
      %s160 = sphi 0, %s144
    $region4: #{transformer_block.8} parent=1 // loop_header_branch
      %18 = sbr.rel (%p16) target = $region8
    $region5: #{transformer_block.8} parent=1 // loop_body
      %s20 = ssub.s32 %s15, 1
      %s21 = ssub.s32 %s15, 2
      %s22 = sadd.s32 %s15, 1
      %s23 = ssub.s32 %s15, %s22
      %p24 = scmp.eq.s32.totalorder %s23, 0
      %s26 = sadd.s32 %s25, 1
      %s27 = scalar_select %p24, %s25, %s26
      %p30 = pneg %p24
      %p31 = scmp.eq.s32.totalorder %s15, 1
      %p32 = por %p30, %p31
      %p33 = scmp.ne.s32.totalorder %s25, %s28
      %p34 = scmp.eq.s32.totalorder %s15, 0
      %p35 = por %p33, %p34
      %p36 = scmp.ne.s32.totalorder %s25, %s28
      %p37 = scmp.eq.s32.totalorder %s20, 1
      %p38 = por %p36, %p37
      %p39 = scmp.ne.s32.totalorder %s28, %s29
      %p40 = scmp.eq.s32.totalorder %s20, 0
      %p41 = por %p39, %p40
      %p42 = scmp.ne.s32.totalorder %s28, %s29
      %p43 = scmp.eq.s32.totalorder %s21, 1
      %p44 = por %p42, %p43
      %p46 = scmp.ne.s32.totalorder %s29, %s45
      %p47 = scmp.eq.s32.totalorder %s21, 0
      %p48 = por %p46, %p47
      %s50 = sadd.s32 %s49, 1
      %p53 = scmp.eq.s32.totalorder %s15, 1
      %p54 = scmp.ne.s32.totalorder %s49, %s51
      %p55 = scmp.eq.s32.totalorder %s15, 0
      %p56 = por %p54, %p55
      %p57 = scmp.ne.s32.totalorder %s49, %s51
      %p58 = scmp.eq.s32.totalorder %s20, 1
      %p59 = por %p57, %p58
      %p60 = scmp.ne.s32.totalorder %s51, %s52
      %p61 = scmp.eq.s32.totalorder %s20, 0
      %p62 = por %p60, %p61
      %p63 = scmp.ne.s32.totalorder %s51, %s52
      %p64 = scmp.eq.s32.totalorder %s21, 1
      %p65 = por %p63, %p64
      %p67 = scmp.ne.s32.totalorder %s52, %s66
      %p68 = scmp.eq.s32.totalorder %s21, 0
      %p69 = por %p67, %p68
      %s71 = sadd.s32 %s70, 1
      %p74 = scmp.eq.s32.totalorder %s15, 1
      %p75 = scmp.ne.s32.totalorder %s70, %s72
      %p76 = scmp.eq.s32.totalorder %s15, 0
      %p77 = por %p75, %p76
      %p78 = scmp.ne.s32.totalorder %s70, %s72
      %p79 = scmp.eq.s32.totalorder %s20, 1
      %p80 = por %p78, %p79
      %p81 = scmp.ne.s32.totalorder %s72, %s73
      %p82 = scmp.eq.s32.totalorder %s20, 0
      %p83 = por %p81, %p82
      %p84 = scmp.ne.s32.totalorder %s72, %s73
      %p85 = scmp.eq.s32.totalorder %s21, 1
      %p86 = por %p84, %p85
      %p88 = scmp.ne.s32.totalorder %s73, %s87
      %p89 = scmp.eq.s32.totalorder %s21, 0
      %p90 = por %p88, %p89
      %s92 = sadd.s32 %s91, 1
      %p95 = scmp.eq.s32.totalorder %s15, 1
      %p96 = scmp.ne.s32.totalorder %s91, %s93
      %p97 = scmp.eq.s32.totalorder %s15, 0
      %p98 = por %p96, %p97
      %p99 = scmp.ne.s32.totalorder %s91, %s93
      %p100 = scmp.eq.s32.totalorder %s20, 1
      %p101 = por %p99, %p100
      %p102 = scmp.ne.s32.totalorder %s93, %s94
      %p103 = scmp.eq.s32.totalorder %s20, 0
      %p104 = por %p102, %p103
      %p105 = scmp.ne.s32.totalorder %s93, %s94
      %p106 = scmp.eq.s32.totalorder %s21, 1
      %p107 = por %p105, %p106
      %p109 = scmp.ne.s32.totalorder %s94, %s108
      %p110 = scmp.eq.s32.totalorder %s21, 0
      %p111 = por %p109, %p110
      %s112 = ssub.s32 %s15, %s22
      %p113 = scmp.eq.s32.totalorder %s112, 0
      %s115 = sadd.s32 %s114, 1
      %s116 = scalar_select %p113, %s114, %s115
      %p119 = pneg %p113
      %p120 = scmp.eq.s32.totalorder %s15, 1
      %p121 = por %p119, %p120
      %p122 = scmp.ne.s32.totalorder %s114, %s117
      %p123 = scmp.eq.s32.totalorder %s15, 0
      %p124 = por %p122, %p123
      %p125 = scmp.ne.s32.totalorder %s114, %s117
      %p126 = scmp.eq.s32.totalorder %s20, 1
      %p127 = por %p125, %p126
      %p128 = scmp.ne.s32.totalorder %s117, %s118
      %p129 = scmp.eq.s32.totalorder %s20, 0
      %p130 = por %p128, %p129
      %p131 = scmp.ne.s32.totalorder %s117, %s118
      %p132 = scmp.eq.s32.totalorder %s21, 1
      %p133 = por %p131, %p132
      %p135 = scmp.ne.s32.totalorder %s118, %s134
      %p136 = scmp.eq.s32.totalorder %s21, 0
      %p137 = por %p135, %p136
      %s138 = ssub.s32 %s15, %s22
      %p139 = scmp.eq.s32.totalorder %s138, 0
      %s141 = sadd.s32 %s140, 1
      %s142 = scalar_select %p139, %s140, %s141
      %p145 = pneg %p139
      %p146 = scmp.eq.s32.totalorder %s15, 1
      %p147 = por %p145, %p146
      %p148 = scmp.ne.s32.totalorder %s140, %s143
      %p149 = scmp.eq.s32.totalorder %s15, 0
      %p150 = por %p148, %p149
      %p151 = scmp.ne.s32.totalorder %s140, %s143
      %p152 = scmp.eq.s32.totalorder %s20, 1
      %p153 = por %p151, %p152
      %p154 = scmp.ne.s32.totalorder %s143, %s144
      %p155 = scmp.eq.s32.totalorder %s20, 0
      %p156 = por %p154, %p155
      %p157 = scmp.ne.s32.totalorder %s143, %s144
      %p158 = scmp.eq.s32.totalorder %s21, 1
      %p159 = por %p157, %p158
      %p161 = scmp.ne.s32.totalorder %s144, %s160
      %p162 = scmp.eq.s32.totalorder %s21, 0
      %p163 = por %p161, %p162
      %p164 = scmp.le.s32.totalorder 1, %s15
      %p165 = scmp.lt.s32.totalorder %s15, 3
      %p166 = pnand %p164, %p165
      %p167 = pneg %p166
      // Predicated region
      $region9: #{transformer_block.8} parent=5 // pred_check
        _
      $region10: #{transformer_block.8} parent=5 // pred_check_branch
        %169 = sbr.rel (%p166) target = $region12
      $region11: #{transformer_block.8} parent=5 // pred_region
        %s170 = ssub.s32 %s15, 1
        // Predicated region
        $region13: #{transformer_block.8} parent=11 // pred_check
          %p171 = pneg %p62
        $region14: #{transformer_block.8} parent=11 // pred_check_branch
          %173 = sbr.rel (%p171) target = $region16
        $region15: #{transformer_block.8} parent=11 // pred_region
          _
        $region16: #{transformer_block.8} parent=11 // pred_fallthru
          _
        // Predicated region
        $region17: #{transformer_block.8} parent=11 // pred_check
          %p174 = pneg %p83
        $region18: #{transformer_block.8} parent=11 // pred_check_branch
          %176 = sbr.rel (%p174) target = $region20
        $region19: #{transformer_block.8} parent=11 // pred_region
          %178 = vsyncadd [#allocation3], 0
          %s179 = sshll.u32 %s2, 4
          %s180 = int_to_ptr.hbm [resolvable:$true] %s179
          %s181 = sshll.u32 [#allocation2], 4
          %s182 = int_to_ptr.vmem [resolvable:$true] %s181
          %187 = dma.hbm_to_vmem [thread:$0]  %s180, 128, %s182, [#allocation3], 64, 64, 4
        $region20: #{transformer_block.8} parent=11 // pred_fallthru
          _
        // Predicated region
        $region21: #{transformer_block.8} parent=11 // pred_check
          %p188 = pneg %p104
        $region22: #{transformer_block.8} parent=11 // pred_check_branch
          %190 = sbr.rel (%p188) target = $region24
        $region23: #{transformer_block.8} parent=11 // pred_region
          _
        $region24: #{transformer_block.8} parent=11 // pred_fallthru
          _
      $region12: #{transformer_block.8} parent=5 // pred_fallthru
        _
      %p191 = scmp.lt.s32.totalorder %s15, 2
      // Predicated region
      $region25: #{transformer_block.8} parent=5 // pred_check
        %p192 = pneg %p191
      $region26: #{transformer_block.8} parent=5 // pred_check_branch
        %194 = sbr.rel (%p192) target = $region28
      $region27: #{transformer_block.8} parent=5 // pred_region
        // Predicated region
        $region29: #{transformer_block.8} parent=27 // pred_check
          %p195 = pneg %p35
        $region30: #{transformer_block.8} parent=27 // pred_check_branch
          %197 = sbr.rel (%p195) target = $region32
        $region31: #{transformer_block.8} parent=27 // pred_region
          %p198 = scmp.lt.s32.totalorder %s15, 1
          %s199 = scalar_select %p198, %s15, 1
          %s200 = smul.addr %s199, 8
          %s201 = smul.addr %s200, 8
          %s202 = scalar_lea.vmem %s0, %s201
        $region32: #{transformer_block.8} parent=27 // pred_fallthru
          _
        // Predicated region
        $region33: #{transformer_block.8} parent=27 // pred_check
          %p203 = pneg %p124
        $region34: #{transformer_block.8} parent=27 // pred_check_branch
          %205 = sbr.rel (%p203) target = $region36
        $region35: #{transformer_block.8} parent=27 // pred_region
          %s206 = sand.u32 %s114, 1
          %s207 = scalar_lea.sflag [#allocation5], %s206
          %s208 = sand.u32 %s114, 1
          %s209 = smul.addr %s208, 64
          %s210 = scalar_lea.vmem [#allocation4], %s209
          %s211 = smul.u32 8, %s15
          %213 = vsyncadd %s207, 0
          %s214 = smul.addr %s211, 8
          %s215 = scalar_lea.hbm %s4, %s214
          %s216 = sshll.u32 %s215, 4
          %s217 = int_to_ptr.hbm [resolvable:$true] %s216
          %s218 = sshll.u32 %s210, 4
          %s219 = int_to_ptr.vmem [resolvable:$true] %s218
          %224 = dma.hbm_to_vmem [thread:$0]  %s217, 1024, %s219, %s207, 128, 128, 8
        $region36: #{transformer_block.8} parent=27 // pred_fallthru
          _
      $region28: #{transformer_block.8} parent=5 // pred_fallthru
        _
      %p225 = scmp.le.s32.totalorder 1, %s15
      %p226 = scmp.lt.s32.totalorder %s15, 3
      %p227 = pnand %p225, %p226
      %p228 = pneg %p227
      // Predicated region
      $region37: #{transformer_block.8} parent=5 // pred_check
        _
      $region38: #{transformer_block.8} parent=5 // pred_check_branch
        %230 = sbr.rel (%p227) target = $region40
      $region39: #{transformer_block.8} parent=5 // pred_region
        %s231 = ssub.s32 %s15, 1
        // Predicated region
        $region41: #{transformer_block.8} parent=39 // pred_check
          %p232 = pneg %p83
        $region42: #{transformer_block.8} parent=39 // pred_check_branch
          %234 = sbr.rel (%p232) target = $region44
        $region43: #{transformer_block.8} parent=39 // pred_region
          %236 = dma.done [#allocation3], 128
        $region44: #{transformer_block.8} parent=39 // pred_fallthru
          _
        %s237 = sand.u32 %s117, 1
        %s238 = scalar_lea.sflag [#allocation5], %s237
        %s239 = sand.u32 %s117, 1
        %s240 = smul.addr %s239, 64
        %s241 = scalar_lea.vmem [#allocation4], %s240
        // Predicated region
        $region45: #{transformer_block.8} parent=39 // pred_check
          %p242 = pneg %p130
        $region46: #{transformer_block.8} parent=39 // pred_check_branch
          %244 = sbr.rel (%p242) target = $region48
        $region47: #{transformer_block.8} parent=39 // pred_region
          %246 = dma.done %s238, 1024
        $region48: #{transformer_block.8} parent=39 // pred_fallthru
          _
        %p247 = scmp.lt.s32.totalorder %s20, 1
        %s248 = scalar_select %p247, %s20, 1
        %s249 = smul.addr %s248, 8
        %s250 = smul.addr %s249, 8
        %s251 = scalar_lea.vmem %s0, %s250
        %p252 = pneg %p41
        %p253 = pneg %p38
        %p254 = pneg %p62
        %p255 = pneg %p59
        %p256 = pneg %p83
        %p257 = pneg %p80
        %p258 = pneg %p104
        %p259 = pneg %p101
        %s260 = sand.u32 %s117, 1
        %s261 = scalar_lea.sflag [#allocation5], %s260
        %s262 = sand.u32 %s117, 1
        %s263 = smul.addr %s262, 64
        %s264 = scalar_lea.vmem [#allocation4], %s263
        %p265 = pneg %p130
        %p266 = pneg %p127
        %p267 = pneg %p156
        %p268 = pneg %p153
        %s269 = smul.u32 8, %s20
        %p270 = scmp.lt.s32.totalorder %s269, 15
        %s271 = scalar_select %p270, %s269, 15
        %s272 = smul.addr %s271, 8
        %s273 = scalar_lea.vmem %s5, %s272
        %p274 = scmp.lt.s32.totalorder %s20, 1
        %s275 = scalar_select %p274, %s20, 1
        %s276 = smul.addr %s275, 8
        %s277 = smul.addr %s276, 8
        %s278 = scalar_lea.vmem %s0, %s277
        %s279 = smul.u32 8, %s20
        %s280 = smul.u32 8, %s20
        %p281 = scmp.lt.s32.totalorder %s280, 15
        %s282 = scalar_select %p281, %s280, 15
        %s283 = smul.addr %s282, 8
        %s284 = scalar_lea.vmem %s5, %s283
        %s285 = smul.u32 8, %s20
        %v287 = vld [vmem:[%s278] sm:$0xff]
        %v288 = vld [vmem:[%s278 + $0x8] sm:$0xff]
        %v289 = vld [vmem:[%s278 + $0x10] sm:$0xff]
        %v290 = vld [vmem:[%s278 + $0x18] sm:$0xff]
        %v291 = vld [vmem:[%s278 + $0x20] sm:$0xff]
        %v292 = vld [vmem:[%s278 + $0x28] sm:$0xff]
        %v293 = vld [vmem:[%s278 + $0x30] sm:$0xff]
        %v294 = vld [vmem:[%s278 + $0x38] sm:$0xff]
        %v295 = vld [vmem:[%s241] sm:$0xff]
        %v296 = vld [vmem:[%s241 + $0x8] sm:$0xff]
        %v297 = vld [vmem:[%s241 + $0x10] sm:$0xff]
        %v298 = vld [vmem:[%s241 + $0x18] sm:$0xff]
        %v299 = vld [vmem:[%s241 + $0x20] sm:$0xff]
        %v300 = vld [vmem:[%s241 + $0x28] sm:$0xff]
        %v301 = vld [vmem:[%s241 + $0x30] sm:$0xff]
        %v302 = vld [vmem:[%s241 + $0x38] sm:$0xff]
        %v303 = vld [vmem:[%s3] sm:$0x1]
        %v305 = vperm.slane %v303, 0
        %v307 = vadd.f32 %v295, %v305
        %v308 = vadd.f32 %v296, %v305
        %v309 = vadd.f32 %v297, %v305
        %v310 = vadd.f32 %v298, %v305
        %v311 = vadd.f32 %v299, %v305
        %v312 = vadd.f32 %v300, %v305
        %v313 = vadd.f32 %v301, %v305
        %v314 = vadd.f32 %v302, %v305
        %v315 = vmul.f32 %v287, %v287
        %v316 = vmul.f32 %v288, %v288
        %v317 = vmul.f32 %v289, %v289
        %v318 = vmul.f32 %v290, %v290
        %v319 = vmul.f32 %v291, %v291
        %v320 = vmul.f32 %v292, %v292
        %v321 = vmul.f32 %v293, %v293
        %v322 = vmul.f32 %v294, %v294
        %vm323 = vcmask 64512
        %v324 = vsel %vm323, %v315, 0.0
        %v325 = vsel %vm323, %v316, 0.0
        %v326 = vadd.f32 %v324, %v325
        %v327 = vsel %vm323, %v317, 0.0
        %v328 = vadd.f32 %v326, %v327
        %v329 = vsel %vm323, %v318, 0.0
        %v330 = vadd.f32 %v328, %v329
        %v331 = vsel %vm323, %v319, 0.0
        %v332 = vadd.f32 %v330, %v331
        %v333 = vsel %vm323, %v320, 0.0
        %v334 = vadd.f32 %v332, %v333
        %v335 = vsel %vm323, %v321, 0.0
        %v336 = vadd.f32 %v334, %v335
        %v337 = vsel %vm323, %v322, 0.0
        %v338 = vadd.f32 %v336, %v337
        %v339 = vrot.slane %v338, 4
        %v340 = vadd.f32 %v338, %v339
        %v341 = vrot.slane %v340, 2
        %v342 = vadd.f32 %v340, %v341
        %v343 = vrot.slane %v342, 1
        %v344 = vadd.f32 %v342, %v343
        %v345 = vmax.f32 %v344, 1e-24
        %v346 = vrsqrt.pop %v345
        %v347 = vmul.f32 %v346, %v345
        %v348 = vmul.f32 %v347, %v346
        %v349 = vmul.f32 0.5, %v348
        %v350 = vsub.f32 1.5, %v349
        %v351 = vmul.f32 %v346, %v350
        %vm352 = vweird.f32 %v345
        %vm353 = vweird.f32 %v346
        %vm354 = vmor %vm352, %vm353
        %v355 = vsel %vm354, %v346, %v351
        %v356 = vmul.f32 %v287, %v355
        %v357 = vmul.f32 %v288, %v355
        %v358 = vmul.f32 %v289, %v355
        %v359 = vmul.f32 %v290, %v355
        %v360 = vmul.f32 %v291, %v355
        %v361 = vmul.f32 %v292, %v355
        %v362 = vmul.f32 %v293, %v355
        %v363 = vmul.f32 %v294, %v355
        %vm364 = vcmask 195712
        %v365 = vsel %vm364, %v315, 0.0
        %v366 = vsel %vm364, %v316, 0.0
        %v367 = vadd.f32 %v365, %v366
        %v368 = vsel %vm364, %v317, 0.0
        %v369 = vadd.f32 %v367, %v368
        %v370 = vsel %vm364, %v318, 0.0
        %v371 = vadd.f32 %v369, %v370
        %v372 = vsel %vm364, %v319, 0.0
        %v373 = vadd.f32 %v371, %v372
        %v374 = vsel %vm364, %v320, 0.0
        %v375 = vadd.f32 %v373, %v374
        %v376 = vsel %vm364, %v321, 0.0
        %v377 = vadd.f32 %v375, %v376
        %v378 = vsel %vm364, %v322, 0.0
        %v379 = vadd.f32 %v377, %v378
        %v380 = vrot.slane %v379, 4
        %v381 = vadd.f32 %v379, %v380
        %v382 = vrot.slane %v381, 2
        %v383 = vadd.f32 %v381, %v382
        %v384 = vrot.slane %v383, 1
        %v385 = vadd.f32 %v383, %v384
        %v386 = vmax.f32 %v385, 1e-24
        %v387 = vrsqrt.pop %v386
        %v388 = vmul.f32 %v387, %v386
        %v389 = vmul.f32 %v388, %v387
        %v390 = vmul.f32 0.5, %v389
        %v391 = vsub.f32 1.5, %v390
        %v392 = vmul.f32 %v387, %v391
        %vm393 = vweird.f32 %v386
        %vm394 = vweird.f32 %v387
        %vm395 = vmor %vm393, %vm394
        %v396 = vsel %vm395, %v387, %v392
        %v397 = vmul.f32 %v287, %v396
        %v398 = vmul.f32 %v288, %v396
        %v399 = vmul.f32 %v289, %v396
        %v400 = vmul.f32 %v290, %v396
        %v401 = vmul.f32 %v291, %v396
        %v402 = vmul.f32 %v292, %v396
        %v403 = vmul.f32 %v293, %v396
        %v404 = vmul.f32 %v294, %v396
        %405 = vxpose.xlu0.b32.start [1/16] %v356, 128
        %406 = vxpose.xlu0.b32.cont [2/16] %v357, 128
        %407 = vxpose.xlu0.b32.cont [3/16] %v358, 128
        %408 = vxpose.xlu0.b32.cont [4/16] %v359, 128
        %409 = vxpose.xlu0.b32.cont [5/16] %v360, 128
        %410 = vxpose.xlu0.b32.cont [6/16] %v361, 128
        %411 = vxpose.xlu0.b32.cont [7/16] %v362, 128
        %412 = vxpose.xlu0.b32.cont [8/16] %v363, 128
        %413 = vxpose.xlu0.b32.cont [9/16] 0.0, 128
        %414 = vxpose.xlu0.b32.cont [10/16] 0.0, 128
        %415 = vxpose.xlu0.b32.cont [11/16] 0.0, 128
        %416 = vxpose.xlu0.b32.cont [12/16] 0.0, 128
        %417 = vxpose.xlu0.b32.cont [13/16] 0.0, 128
        %418 = vxpose.xlu0.b32.cont [14/16] 0.0, 128
        %419 = vxpose.xlu0.b32.cont [15/16] 0.0, 128
        %420 = vxpose.xlu0.b32.end [16/16] 0.0, 128
        %v421 = vpop.trf.xlu0
        %v422 = vpop.trf.xlu0
        %v423 = vpop.trf.xlu0
        %v424 = vpop.trf.xlu0
        %v425 = vpop.trf.xlu0
        %v426 = vpop.trf.xlu0
        %v427 = vpop.trf.xlu0
        %v428 = vpop.trf.xlu0
        %v429 = vpop.trf.xlu0
        %v430 = vpop.trf.xlu0
        %v431 = vpop.trf.xlu0
        %v432 = vpop.trf.xlu0
        %v433 = vpop.trf.xlu0
        %v434 = vpop.trf.xlu0
        %v435 = vpop.trf.xlu0
        %v436 = vpop.trf.xlu0
        %445 = vrot.lane.b32.xlu0 %v397, 112
        %v446 = vpop.permute.xlu0 %445
        %447 = vrot.lane.b32.xlu0 %v398, 112
        %v448 = vpop.permute.xlu0 %447
        %449 = vrot.lane.b32.xlu0 %v399, 112
        %v450 = vpop.permute.xlu0 %449
        %451 = vrot.lane.b32.xlu0 %v400, 112
        %v452 = vpop.permute.xlu0 %451
        %453 = vrot.lane.b32.xlu0 %v401, 112
        %v454 = vpop.permute.xlu0 %453
        %455 = vrot.lane.b32.xlu0 %v402, 112
        %v456 = vpop.permute.xlu0 %455
        %457 = vrot.lane.b32.xlu0 %v403, 112
        %v458 = vpop.permute.xlu0 %457
        %459 = vrot.lane.b32.xlu0 %v404, 112
        %v460 = vpop.permute.xlu0 %459
        %vm469 = vcmask 523264
        %v471 = vsel %vm469, %v421, 0
        %473 = vmatpush.msra.mxu0 0.0
        %474 = vmatpush.msra.mxu0 0.0
        %475 = vmatpush.msra.mxu0 0.0
        %476 = vmatpush.msra.mxu0 0.0
        %477 = vmatpush.msra.mxu0 0.0
        %478 = vmatpush.msra.mxu0 0.0
        %479 = vmatpush.msra.mxu0 0.0
        %480 = vmatpush.msra.mxu0 0.0
        %481 = vmatpush.msra.mxu0 %v460
        %482 = vmatpush.msra.mxu0 %v458
        %483 = vmatpush.msra.mxu0 %v456
        %484 = vmatpush.msra.mxu0 %v454
        %485 = vmatpush.msra.mxu0 %v452
        %486 = vmatpush.msra.mxu0 %v450
        %487 = vmatpush.msra.mxu0 %v448
        %488 = vmatpush.msra.mxu0 %v446
        %489 = vmatmul.f32.gmra.mxu0 %v471
        %v490 = vpop.f32.mrf.mxu0
        %v491 = vadd.f32 0.0, %v490
        %492 = vdwg.mxu0
        %v493 = vld [vmem:[%s1] sm:$0x1]
        %s495 = vtos %v493
        %v496 = vstv %s495
        %v498 = vmul.f32 %v491, %v496
        %v499 = vsel %vm323, %v498, -inf
        %500 = vmax.xlane.f32.xlu0 %v499
        %v501 = vpop.xlane.xlu0 %500
        %v502 = vsub.f32 %v498, %v501
        %v503 = vmul.f32 %v502, 1.442695
        %v504 = vpow.pop %v503
        %v505 = vsel %vm323, %v504, 0.0
        %506 = vadd.xlane.f32.xlu0 %v505
        %v507 = vpop.xlane.xlu0 %506
        %v508 = vrcp.pop %v507
        %v509 = vmul.f32 %v504, %v508
        %518 = vrot.lane.b32.xlu0 %v287, 96
        %v519 = vpop.permute.xlu0 %518
        %520 = vrot.lane.b32.xlu0 %v288, 96
        %v521 = vpop.permute.xlu0 %520
        %522 = vrot.lane.b32.xlu0 %v289, 96
        %v523 = vpop.permute.xlu0 %522
        %524 = vrot.lane.b32.xlu0 %v290, 96
        %v525 = vpop.permute.xlu0 %524
        %526 = vrot.lane.b32.xlu0 %v291, 96
        %v527 = vpop.permute.xlu0 %526
        %528 = vrot.lane.b32.xlu0 %v292, 96
        %v529 = vpop.permute.xlu0 %528
        %530 = vrot.lane.b32.xlu0 %v293, 96
        %v531 = vpop.permute.xlu0 %530
        %532 = vrot.lane.b32.xlu0 %v294, 96
        %v533 = vpop.permute.xlu0 %532
        %v534 = vsel %vm323, %v519, 0
        %v536 = vsel %vm323, %v521, 0
        %v538 = vsel %vm323, %v523, 0
        %v540 = vsel %vm323, %v525, 0
        %v542 = vsel %vm323, %v527, 0
        %v544 = vsel %vm323, %v529, 0
        %v546 = vsel %vm323, %v531, 0
        %v548 = vsel %vm323, %v533, 0
        %v551 = vsel %vm323, %v509, 0
        %553 = vmatpush.xpose.msra.mxu0 0.0
        %554 = vmatpush.xpose.msra.mxu0 0.0
        %555 = vmatpush.xpose.msra.mxu0 0.0
        %556 = vmatpush.xpose.msra.mxu0 0.0
        %557 = vmatpush.xpose.msra.mxu0 0.0
        %558 = vmatpush.xpose.msra.mxu0 0.0
        %559 = vmatpush.xpose.msra.mxu0 0.0
        %560 = vmatpush.xpose.msra.mxu0 0.0
        %561 = vmatpush.xpose.msra.mxu0 0.0
        %562 = vmatpush.xpose.msra.mxu0 0.0
        %563 = vmatpush.xpose.msra.mxu0 0.0
        %564 = vmatpush.xpose.msra.mxu0 0.0
        %565 = vmatpush.xpose.msra.mxu0 0.0
        %566 = vmatpush.xpose.msra.mxu0 0.0
        %567 = vmatpush.xpose.msra.mxu0 0.0
        %568 = vmatpush.xpose.msra.mxu0 %v551
        %569 = vmatmul.f32.gmra.mxu0 %v534
        %v570 = vpop.f32.mrf.mxu0
        %v571 = vadd.f32 0.0, %v570
        %572 = vmatmul.f32.gmra.mxu0 %v536
        %v573 = vpop.f32.mrf.mxu0
        %v574 = vadd.f32 0.0, %v573
        %575 = vmatmul.f32.gmra.mxu0 %v538
        %v576 = vpop.f32.mrf.mxu0
        %v577 = vadd.f32 0.0, %v576
        %578 = vmatmul.f32.gmra.mxu0 %v540
        %v579 = vpop.f32.mrf.mxu0
        %v580 = vadd.f32 0.0, %v579
        %581 = vmatmul.f32.gmra.mxu0 %v542
        %v582 = vpop.f32.mrf.mxu0
        %v583 = vadd.f32 0.0, %v582
        %584 = vmatmul.f32.gmra.mxu0 %v544
        %v585 = vpop.f32.mrf.mxu0
        %v586 = vadd.f32 0.0, %v585
        %587 = vmatmul.f32.gmra.mxu0 %v546
        %v588 = vpop.f32.mrf.mxu0
        %v589 = vadd.f32 0.0, %v588
        %590 = vmatmul.f32.gmra.mxu0 %v548
        %v591 = vpop.f32.mrf.mxu0
        %v592 = vadd.f32 0.0, %v591
        %593 = vdwg.mxu0
        %v594 = vpack.c.bf16 %v574, %v571
        %v595 = vpack.c.bf16 %v580, %v577
        %v596 = vpack.c.bf16 %v586, %v583
        %v597 = vpack.c.bf16 %v592, %v589
        %v598 = vld [vmem:[#allocation2] sm:$0xf]
        %v600 = vsel %vm323, %v594, 0
        %v603 = vsel %vm323, %v595, 0
        %v606 = vsel %vm323, %v596, 0
        %v609 = vsel %vm323, %v597, 0
        %vm611 = vcmask 1043456
        %v613 = vsel %vm611, %v598, 0
        %615 = vmatpush.bf16.msra.mxu0 0
        %616 = vmatpush.bf16.msra.mxu0 0
        %617 = vmatpush.bf16.msra.mxu0 0
        %618 = vmatpush.bf16.msra.mxu0 0
        %619 = vmatpush.bf16.msra.mxu0 0
        %620 = vmatpush.bf16.msra.mxu0 0
        %621 = vmatpush.bf16.msra.mxu0 0
        %622 = vmatpush.bf16.msra.mxu0 %v613
        %623 = vmatmul.bf16.gmra.mxu0 %v600
        %v624 = vpop.f32.mrf.mxu0
        %v625 = vadd.f32 0.0, %v624
        %v626 = vpop.f32.mrf.mxu0
        %v627 = vadd.f32 0.0, %v626
        %628 = vmatmul.bf16.gmra.mxu0 %v603
        %v629 = vpop.f32.mrf.mxu0
        %v630 = vadd.f32 0.0, %v629
        %v631 = vpop.f32.mrf.mxu0
        %v632 = vadd.f32 0.0, %v631
        %633 = vmatmul.bf16.gmra.mxu0 %v606
        %v634 = vpop.f32.mrf.mxu0
        %v635 = vadd.f32 0.0, %v634
        %v636 = vpop.f32.mrf.mxu0
        %v637 = vadd.f32 0.0, %v636
        %638 = vmatmul.bf16.gmra.mxu0 %v609
        %v639 = vpop.f32.mrf.mxu0
        %v640 = vadd.f32 0.0, %v639
        %v641 = vpop.f32.mrf.mxu0
        %v642 = vadd.f32 0.0, %v641
        %643 = vdwg.mxu0
        %v644 = vadd.f32 %v307, %v625
        %v645 = vadd.f32 %v308, %v627
        %v646 = vadd.f32 %v309, %v630
        %v647 = vadd.f32 %v310, %v632
        %v648 = vadd.f32 %v311, %v635
        %v649 = vadd.f32 %v312, %v637
        %v650 = vadd.f32 %v313, %v640
        %v651 = vadd.f32 %v314, %v642
        %vm652 = vcmask 130112
        %v653 = vsel %vm652, %v315, 0.0
        %v654 = vsel %vm652, %v316, 0.0
        %v655 = vadd.f32 %v653, %v654
        %v656 = vsel %vm652, %v317, 0.0
        %v657 = vadd.f32 %v655, %v656
        %v658 = vsel %vm652, %v318, 0.0
        %v659 = vadd.f32 %v657, %v658
        %v660 = vsel %vm652, %v319, 0.0
        %v661 = vadd.f32 %v659, %v660
        %v662 = vsel %vm652, %v320, 0.0
        %v663 = vadd.f32 %v661, %v662
        %v664 = vsel %vm652, %v321, 0.0
        %v665 = vadd.f32 %v663, %v664
        %v666 = vsel %vm652, %v322, 0.0
        %v667 = vadd.f32 %v665, %v666
        %v668 = vrot.slane %v667, 4
        %v669 = vadd.f32 %v667, %v668
        %v670 = vrot.slane %v669, 2
        %v671 = vadd.f32 %v669, %v670
        %v672 = vrot.slane %v671, 1
        %v673 = vadd.f32 %v671, %v672
        %v674 = vmax.f32 %v673, 1e-24
        %v675 = vrsqrt.pop %v674
        %v676 = vmul.f32 %v675, %v674
        %v677 = vmul.f32 %v676, %v675
        %v678 = vmul.f32 0.5, %v677
        %v679 = vsub.f32 1.5, %v678
        %v680 = vmul.f32 %v675, %v679
        %vm681 = vweird.f32 %v674
        %vm682 = vweird.f32 %v675
        %vm683 = vmor %vm681, %vm682
        %v684 = vsel %vm683, %v675, %v680
        %v685 = vmul.f32 %v287, %v684
        %v686 = vmul.f32 %v288, %v684
        %v687 = vmul.f32 %v289, %v684
        %v688 = vmul.f32 %v290, %v684
        %v689 = vmul.f32 %v291, %v684
        %v690 = vmul.f32 %v292, %v684
        %v691 = vmul.f32 %v293, %v684
        %v692 = vmul.f32 %v294, %v684
        %vm693 = vcmask 261312
        %v694 = vsel %vm693, %v315, 0.0
        %v695 = vsel %vm693, %v316, 0.0
        %v696 = vadd.f32 %v694, %v695
        %v697 = vsel %vm693, %v317, 0.0
        %v698 = vadd.f32 %v696, %v697
        %v699 = vsel %vm693, %v318, 0.0
        %v700 = vadd.f32 %v698, %v699
        %v701 = vsel %vm693, %v319, 0.0
        %v702 = vadd.f32 %v700, %v701
        %v703 = vsel %vm693, %v320, 0.0
        %v704 = vadd.f32 %v702, %v703
        %v705 = vsel %vm693, %v321, 0.0
        %v706 = vadd.f32 %v704, %v705
        %v707 = vsel %vm693, %v322, 0.0
        %v708 = vadd.f32 %v706, %v707
        %v709 = vrot.slane %v708, 4
        %v710 = vadd.f32 %v708, %v709
        %v711 = vrot.slane %v710, 2
        %v712 = vadd.f32 %v710, %v711
        %v713 = vrot.slane %v712, 1
        %v714 = vadd.f32 %v712, %v713
        %v715 = vmax.f32 %v714, 1e-24
        %v716 = vrsqrt.pop %v715
        %v717 = vmul.f32 %v716, %v715
        %v718 = vmul.f32 %v717, %v716
        %v719 = vmul.f32 0.5, %v718
        %v720 = vsub.f32 1.5, %v719
        %v721 = vmul.f32 %v716, %v720
        %vm722 = vweird.f32 %v715
        %vm723 = vweird.f32 %v716
        %vm724 = vmor %vm722, %vm723
        %v725 = vsel %vm724, %v716, %v721
        %v726 = vmul.f32 %v287, %v725
        %v727 = vmul.f32 %v288, %v725
        %v728 = vmul.f32 %v289, %v725
        %v729 = vmul.f32 %v290, %v725
        %v730 = vmul.f32 %v291, %v725
        %v731 = vmul.f32 %v292, %v725
        %v732 = vmul.f32 %v293, %v725
        %v733 = vmul.f32 %v294, %v725
        %742 = vrot.lane.b32.xlu0 %v685, 120
        %v743 = vpop.permute.xlu0 %742
        %744 = vrot.lane.b32.xlu0 %v686, 120
        %v745 = vpop.permute.xlu0 %744
        %746 = vrot.lane.b32.xlu0 %v687, 120
        %v747 = vpop.permute.xlu0 %746
        %748 = vrot.lane.b32.xlu0 %v688, 120
        %v749 = vpop.permute.xlu0 %748
        %750 = vrot.lane.b32.xlu0 %v689, 120
        %v751 = vpop.permute.xlu0 %750
        %752 = vrot.lane.b32.xlu0 %v690, 120
        %v753 = vpop.permute.xlu0 %752
        %754 = vrot.lane.b32.xlu0 %v691, 120
        %v755 = vpop.permute.xlu0 %754
        %756 = vrot.lane.b32.xlu0 %v692, 120
        %v757 = vpop.permute.xlu0 %756
        %766 = vxpose.xlu0.b32.start [1/16] %v743, 128
        %767 = vxpose.xlu0.b32.cont [2/16] %v745, 128
        %768 = vxpose.xlu0.b32.cont [3/16] %v747, 128
        %769 = vxpose.xlu0.b32.cont [4/16] %v749, 128
        %770 = vxpose.xlu0.b32.cont [5/16] %v751, 128
        %771 = vxpose.xlu0.b32.cont [6/16] %v753, 128
        %772 = vxpose.xlu0.b32.cont [7/16] %v755, 128
        %773 = vxpose.xlu0.b32.cont [8/16] %v757, 128
        %774 = vxpose.xlu0.b32.cont [9/16] 0.0, 128
        %775 = vxpose.xlu0.b32.cont [10/16] 0.0, 128
        %776 = vxpose.xlu0.b32.cont [11/16] 0.0, 128
        %777 = vxpose.xlu0.b32.cont [12/16] 0.0, 128
        %778 = vxpose.xlu0.b32.cont [13/16] 0.0, 128
        %779 = vxpose.xlu0.b32.cont [14/16] 0.0, 128
        %780 = vxpose.xlu0.b32.cont [15/16] 0.0, 128
        %781 = vxpose.xlu0.b32.end [16/16] 0.0, 128
        %v782 = vpop.trf.xlu0
        %v783 = vpop.trf.xlu0
        %v784 = vpop.trf.xlu0
        %v785 = vpop.trf.xlu0
        %v786 = vpop.trf.xlu0
        %v787 = vpop.trf.xlu0
        %v788 = vpop.trf.xlu0
        %v789 = vpop.trf.xlu0
        %v790 = vpop.trf.xlu0
        %v791 = vpop.trf.xlu0
        %v792 = vpop.trf.xlu0
        %v793 = vpop.trf.xlu0
        %v794 = vpop.trf.xlu0
        %v795 = vpop.trf.xlu0
        %v796 = vpop.trf.xlu0
        %v797 = vpop.trf.xlu0
        %806 = vrot.lane.b32.xlu0 %v726, 104
        %v807 = vpop.permute.xlu0 %806
        %808 = vrot.lane.b32.xlu0 %v727, 104
        %v809 = vpop.permute.xlu0 %808
        %810 = vrot.lane.b32.xlu0 %v728, 104
        %v811 = vpop.permute.xlu0 %810
        %812 = vrot.lane.b32.xlu0 %v729, 104
        %v813 = vpop.permute.xlu0 %812
        %814 = vrot.lane.b32.xlu0 %v730, 104
        %v815 = vpop.permute.xlu0 %814
        %816 = vrot.lane.b32.xlu0 %v731, 104
        %v817 = vpop.permute.xlu0 %816
        %818 = vrot.lane.b32.xlu0 %v732, 104
        %v819 = vpop.permute.xlu0 %818
        %820 = vrot.lane.b32.xlu0 %v733, 104
        %v821 = vpop.permute.xlu0 %820
        %v831 = vsel %vm469, %v782, 0
        %833 = vmatpush.msra.mxu0 0.0
        %834 = vmatpush.msra.mxu0 0.0
        %835 = vmatpush.msra.mxu0 0.0
        %836 = vmatpush.msra.mxu0 0.0
        %837 = vmatpush.msra.mxu0 0.0
        %838 = vmatpush.msra.mxu0 0.0
        %839 = vmatpush.msra.mxu0 0.0
        %840 = vmatpush.msra.mxu0 0.0
        %841 = vmatpush.msra.mxu0 %v821
        %842 = vmatpush.msra.mxu0 %v819
        %843 = vmatpush.msra.mxu0 %v817
        %844 = vmatpush.msra.mxu0 %v815
        %845 = vmatpush.msra.mxu0 %v813
        %846 = vmatpush.msra.mxu0 %v811
        %847 = vmatpush.msra.mxu0 %v809
        %848 = vmatpush.msra.mxu0 %v807
        %849 = vmatmul.f32.gmra.mxu0 %v831
        %v850 = vpop.f32.mrf.mxu0
        %v851 = vadd.f32 0.0, %v850
        %852 = vdwg.mxu0
        %v853 = vld [vmem:[%s1 + $0x1] sm:$0x1]
        %s855 = vtos %v853
        %v856 = vstv %s855
        %v858 = vmul.f32 %v851, %v856
        %v859 = vsel %vm323, %v858, -inf
        %860 = vmax.xlane.f32.xlu0 %v859
        %v861 = vpop.xlane.xlu0 %860
        %v862 = vsub.f32 %v858, %v861
        %v863 = vmul.f32 %v862, 1.442695
        %v864 = vpow.pop %v863
        %v865 = vsel %vm323, %v864, 0.0
        %866 = vadd.xlane.f32.xlu0 %v865
        %v867 = vpop.xlane.xlu0 %866
        %v868 = vrcp.pop %v867
        %v869 = vmul.f32 %v864, %v868
        %870 = vrot.lane.b32.xlu0 %v287, 88
        %v871 = vpop.permute.xlu0 %870
        %872 = vrot.lane.b32.xlu0 %v288, 88
        %v873 = vpop.permute.xlu0 %872
        %874 = vrot.lane.b32.xlu0 %v289, 88
        %v875 = vpop.permute.xlu0 %874
        %876 = vrot.lane.b32.xlu0 %v290, 88
        %v877 = vpop.permute.xlu0 %876
        %878 = vrot.lane.b32.xlu0 %v291, 88
        %v879 = vpop.permute.xlu0 %878
        %880 = vrot.lane.b32.xlu0 %v292, 88
        %v881 = vpop.permute.xlu0 %880
        %882 = vrot.lane.b32.xlu0 %v293, 88
        %v883 = vpop.permute.xlu0 %882
        %884 = vrot.lane.b32.xlu0 %v294, 88
        %v885 = vpop.permute.xlu0 %884
        %v886 = vsel %vm323, %v871, 0
        %v888 = vsel %vm323, %v873, 0
        %v890 = vsel %vm323, %v875, 0
        %v892 = vsel %vm323, %v877, 0
        %v894 = vsel %vm323, %v879, 0
        %v896 = vsel %vm323, %v881, 0
        %v898 = vsel %vm323, %v883, 0
        %v900 = vsel %vm323, %v885, 0
        %v903 = vsel %vm323, %v869, 0
        %905 = vmatpush.xpose.msra.mxu0 0.0
        %906 = vmatpush.xpose.msra.mxu0 0.0
        %907 = vmatpush.xpose.msra.mxu0 0.0
        %908 = vmatpush.xpose.msra.mxu0 0.0
        %909 = vmatpush.xpose.msra.mxu0 0.0
        %910 = vmatpush.xpose.msra.mxu0 0.0
        %911 = vmatpush.xpose.msra.mxu0 0.0
        %912 = vmatpush.xpose.msra.mxu0 0.0
        %913 = vmatpush.xpose.msra.mxu0 0.0
        %914 = vmatpush.xpose.msra.mxu0 0.0
        %915 = vmatpush.xpose.msra.mxu0 0.0
        %916 = vmatpush.xpose.msra.mxu0 0.0
        %917 = vmatpush.xpose.msra.mxu0 0.0
        %918 = vmatpush.xpose.msra.mxu0 0.0
        %919 = vmatpush.xpose.msra.mxu0 0.0
        %920 = vmatpush.xpose.msra.mxu0 %v903
        %921 = vmatmul.f32.gmra.mxu0 %v886
        %v922 = vpop.f32.mrf.mxu0
        %v923 = vadd.f32 0.0, %v922
        %924 = vmatmul.f32.gmra.mxu0 %v888
        %v925 = vpop.f32.mrf.mxu0
        %v926 = vadd.f32 0.0, %v925
        %927 = vmatmul.f32.gmra.mxu0 %v890
        %v928 = vpop.f32.mrf.mxu0
        %v929 = vadd.f32 0.0, %v928
        %930 = vmatmul.f32.gmra.mxu0 %v892
        %v931 = vpop.f32.mrf.mxu0
        %v932 = vadd.f32 0.0, %v931
        %933 = vmatmul.f32.gmra.mxu0 %v894
        %v934 = vpop.f32.mrf.mxu0
        %v935 = vadd.f32 0.0, %v934
        %936 = vmatmul.f32.gmra.mxu0 %v896
        %v937 = vpop.f32.mrf.mxu0
        %v938 = vadd.f32 0.0, %v937
        %939 = vmatmul.f32.gmra.mxu0 %v898
        %v940 = vpop.f32.mrf.mxu0
        %v941 = vadd.f32 0.0, %v940
        %942 = vmatmul.f32.gmra.mxu0 %v900
        %v943 = vpop.f32.mrf.mxu0
        %v944 = vadd.f32 0.0, %v943
        %945 = vdwg.mxu0
        %v946 = vpack.c.bf16 %v926, %v923
        %v947 = vpack.c.bf16 %v932, %v929
        %v948 = vpack.c.bf16 %v938, %v935
        %v949 = vpack.c.bf16 %v944, %v941
        %v950 = vld [vmem:[#allocation2 + $0x4] sm:$0xf]
        %v952 = vsel %vm323, %v946, 0
        %v955 = vsel %vm323, %v947, 0
        %v958 = vsel %vm323, %v948, 0
        %v961 = vsel %vm323, %v949, 0
        %v964 = vsel %vm611, %v950, 0
        %966 = vmatpush.bf16.msra.mxu0 0
        %967 = vmatpush.bf16.msra.mxu0 0
        %968 = vmatpush.bf16.msra.mxu0 0
        %969 = vmatpush.bf16.msra.mxu0 0
        %970 = vmatpush.bf16.msra.mxu0 0
        %971 = vmatpush.bf16.msra.mxu0 0
        %972 = vmatpush.bf16.msra.mxu0 0
        %973 = vmatpush.bf16.msra.mxu0 %v964
        %974 = vmatmul.bf16.gmra.mxu0 %v952
        %v975 = vpop.f32.mrf.mxu0
        %v976 = vadd.f32 0.0, %v975
        %v977 = vpop.f32.mrf.mxu0
        %v978 = vadd.f32 0.0, %v977
        %979 = vmatmul.bf16.gmra.mxu0 %v955
        %v980 = vpop.f32.mrf.mxu0
        %v981 = vadd.f32 0.0, %v980
        %v982 = vpop.f32.mrf.mxu0
        %v983 = vadd.f32 0.0, %v982
        %984 = vmatmul.bf16.gmra.mxu0 %v958
        %v985 = vpop.f32.mrf.mxu0
        %v986 = vadd.f32 0.0, %v985
        %v987 = vpop.f32.mrf.mxu0
        %v988 = vadd.f32 0.0, %v987
        %989 = vmatmul.bf16.gmra.mxu0 %v961
        %v990 = vpop.f32.mrf.mxu0
        %v991 = vadd.f32 0.0, %v990
        %v992 = vpop.f32.mrf.mxu0
        %v993 = vadd.f32 0.0, %v992
        %994 = vdwg.mxu0
        %v995 = vadd.f32 %v644, %v976
        %v996 = vadd.f32 %v645, %v978
        %v997 = vadd.f32 %v646, %v981
        %v998 = vadd.f32 %v647, %v983
        %v999 = vadd.f32 %v648, %v986
        %v1000 = vadd.f32 %v649, %v988
        %v1001 = vadd.f32 %v650, %v991
        %v1002 = vadd.f32 %v651, %v993
        %vm1003 = vcmask 130048
        %1004 = vst.msk [vmem:[%s284] sm:$0xff] %vm1003, %v995
        %1005 = vst.msk [vmem:[%s284 + $0x8] sm:$0xff] %vm1003, %v996
        %1006 = vst.msk [vmem:[%s284 + $0x10] sm:$0xff] %vm1003, %v997
        %1007 = vst.msk [vmem:[%s284 + $0x18] sm:$0xff] %vm1003, %v998
        %1008 = vst.msk [vmem:[%s284 + $0x20] sm:$0xff] %vm1003, %v999
        %1009 = vst.msk [vmem:[%s284 + $0x28] sm:$0xff] %vm1003, %v1000
        %1010 = vst.msk [vmem:[%s284 + $0x30] sm:$0xff] %vm1003, %v1001
        %1011 = vst.msk [vmem:[%s284 + $0x38] sm:$0xff] %vm1003, %v1002
        %s1012 = smul.u32 8, %s20
        %p1013 = scmp.lt.s32.totalorder %s1012, 15
        %s1014 = scalar_select %p1013, %s1012, 15
        %s1015 = smul.addr %s1014, 8
        %s1016 = scalar_lea.vmem %s5, %s1015
        // Predicated region
        $region49: #{transformer_block.8} parent=39 // pred_check
          %p1017 = pneg %p153
        $region50: #{transformer_block.8} parent=39 // pred_check_branch
          %1019 = sbr.rel (%p1017) target = $region52
        $region51: #{transformer_block.8} parent=39 // pred_region
          %s1020 = smul.u32 8, %s20
        $region52: #{transformer_block.8} parent=39 // pred_fallthru
          _
      $region40: #{transformer_block.8} parent=5 // pred_fallthru
        _
      %p1021 = scmp.le.s32.totalorder 2, %s15
      // Predicated region
      $region53: #{transformer_block.8} parent=5 // pred_check
        %p1022 = pneg %p1021
      $region54: #{transformer_block.8} parent=5 // pred_check_branch
        %1024 = sbr.rel (%p1022) target = $region56
      $region55: #{transformer_block.8} parent=5 // pred_region
        %s1025 = ssub.s32 %s15, 2
        // Predicated region
        $region57: #{transformer_block.8} parent=55 // pred_check
          %p1026 = pneg %p159
        $region58: #{transformer_block.8} parent=55 // pred_check_branch
          %1028 = sbr.rel (%p1026) target = $region60
        $region59: #{transformer_block.8} parent=55 // pred_region
          %s1029 = smul.u32 8, %s21
          %p1030 = scmp.lt.s32.totalorder %s1029, 15
          %s1031 = scalar_select %p1030, %s1029, 15
          %s1032 = smul.addr %s1031, 8
          %s1033 = scalar_lea.vmem %s5, %s1032
        $region60: #{transformer_block.8} parent=55 // pred_fallthru
          _
      $region56: #{transformer_block.8} parent=5 // pred_fallthru
        _
    $region6: #{transformer_block.8} parent=1 // loop_footer
      %s19 = sadd.s32 1, %s15
    $region7: #{transformer_block.8} parent=1 // loop_footer_branch
      %14 = sbr.rel target = $region3
    $region8: #{transformer_block.8} parent=1 // loop_exit
      _
    %1034 = vsyncpa [#allocation3], 1
    %s1035 = scalar_lea.sflag [#allocation3], 1
    %1036 = vsyncpa %s1035, 1
    %1037 = vsyncpa [#allocation5], 1
    %s1038 = scalar_lea.sflag [#allocation5], 1
    %1039 = vsyncpa %s1038, 1

// kernel: transformer_block.11
$region0: #{transformer_block.11}
  #allocation0 [shape = 'u32[]', space=smem, size = 0x4, offset = 0x4, fixed_abs, tag = 'smem constant byte address 0x4 - core index']
  #allocation1 [shape = 'u32[72,128]{1,0:T(1,128)}', space=vmem, size = 0x9000, scoped, tag = 'internal scratch']
  %s0 = inlined_call_operand.vmem [shape: f32[128,32], index: 0, kind: input, shape index: {}]
  %s1 = inlined_call_operand.vmem [shape: bf16[32,16], index: 1, kind: input, shape index: {}]
  %s2 = inlined_call_operand.vmem [shape: f32[1,16], index: 2, kind: input, shape index: {}]
  %s3 = inlined_call_operand.vmem [shape: f32[128,16], index: 3, kind: input, shape index: {}]
  %s4 = inlined_call_operand.hbm [shape: f32[128,16], index: 4, kind: output, shape index: {}]
  %s5 = sld [smem:[#allocation0]]
  $region26: #{transformer_block.11} parent=0
    _
  %s7 = ssub.s32 1, %s5
  %s8 = scalar_select 0, %s7, %s5
  $region1: #{transformer_block.11} parent=0
    #allocation2 [shape = 'u8[65536]{0}', space=vmem, size = 0x10000, scoped, tag = 'output window, operand 0, single buffered']
    #allocation3 [shape = 's32[1]{0}', space=sflag, size = 0x4, scoped, tag = 'scoped memory for transformer_block.11']
    %9 = vsyncpa [#allocation3], 0
    // Predicated region
    $region2: #{transformer_block.11} parent=1 // pred_check
      _
    $region3: #{transformer_block.11} parent=1 // pred_check_branch
      %11 = sbr.rel (0) target = $region5
    $region4: #{transformer_block.11} parent=1 // pred_region
      _
    $region5: #{transformer_block.11} parent=1 // pred_fallthru
      _
    // Predicated region
    $region6: #{transformer_block.11} parent=1 // pred_check
      _
    $region7: #{transformer_block.11} parent=1 // pred_check_branch
      %13 = sbr.rel (0) target = $region9
    $region8: #{transformer_block.11} parent=1 // pred_region
      _
    $region9: #{transformer_block.11} parent=1 // pred_fallthru
      _
    // Predicated region
    $region10: #{transformer_block.11} parent=1 // pred_check
      _
    $region11: #{transformer_block.11} parent=1 // pred_check_branch
      %15 = sbr.rel (0) target = $region13
    $region12: #{transformer_block.11} parent=1 // pred_region
      _
    $region13: #{transformer_block.11} parent=1 // pred_fallthru
      _
    // Predicated region
    $region14: #{transformer_block.11} parent=1 // pred_check
      _
    $region15: #{transformer_block.11} parent=1 // pred_check_branch
      %17 = sbr.rel (0) target = $region17
    $region16: #{transformer_block.11} parent=1 // pred_region
      _
    $region17: #{transformer_block.11} parent=1 // pred_fallthru
      _
    %v19 = vld [vmem:[%s0] sm:$0xff]
    %v20 = vld [vmem:[%s0 + $0x8] sm:$0xff]
    %v21 = vld [vmem:[%s0 + $0x10] sm:$0xff]
    %v22 = vld [vmem:[%s0 + $0x18] sm:$0xff]
    %v23 = vld [vmem:[%s0 + $0x20] sm:$0xff]
    %v24 = vld [vmem:[%s0 + $0x28] sm:$0xff]
    %v25 = vld [vmem:[%s0 + $0x30] sm:$0xff]
    %v26 = vld [vmem:[%s0 + $0x38] sm:$0xff]
    %v27 = vld [vmem:[%s0 + $0x40] sm:$0xff]
    %v28 = vld [vmem:[%s0 + $0x48] sm:$0xff]
    %v29 = vld [vmem:[%s0 + $0x50] sm:$0xff]
    %v30 = vld [vmem:[%s0 + $0x58] sm:$0xff]
    %v31 = vld [vmem:[%s0 + $0x60] sm:$0xff]
    %v32 = vld [vmem:[%s0 + $0x68] sm:$0xff]
    %v33 = vld [vmem:[%s0 + $0x70] sm:$0xff]
    %v34 = vld [vmem:[%s0 + $0x78] sm:$0xff]
    %v35 = vpack.c.bf16 %v20, %v19
    %v36 = vpack.c.bf16 %v22, %v21
    %v37 = vpack.c.bf16 %v24, %v23
    %v38 = vpack.c.bf16 %v26, %v25
    %v39 = vpack.c.bf16 %v28, %v27
    %v40 = vpack.c.bf16 %v30, %v29
    %v41 = vpack.c.bf16 %v32, %v31
    %v42 = vpack.c.bf16 %v34, %v33
    %v43 = vld [vmem:[%s1] sm:$0xf]
    %v44 = vld [vmem:[%s1 + $0x4] sm:$0xf]
    %v45 = vld [vmem:[%s1 + $0x8] sm:$0xf]
    %v46 = vld [vmem:[%s1 + $0xc] sm:$0xf]
    %v47 = vld [vmem:[%s2] sm:$0x1]
    %v49 = vperm.slane %v47, 0
    %v55 = vunpack.c.l.b16 %v43
    %v56 = vunpack.c.l.b16 %v44
    %v57 = vunpack.c.l.b16 %v45
    %v58 = vunpack.c.l.b16 %v46
    %v59 = vpack.c.b16 %v56, %v55
    %v60 = vpack.c.b16 %v58, %v57
    %vm63 = vcmask 261120
    %v65 = vsel %vm63, %v35, 0
    %v68 = vsel %vm63, %v36, 0
    %v71 = vsel %vm63, %v37, 0
    %v74 = vsel %vm63, %v38, 0
    %v77 = vsel %vm63, %v39, 0
    %v80 = vsel %vm63, %v40, 0
    %v83 = vsel %vm63, %v41, 0
    %v86 = vsel %vm63, %v42, 0
    %88 = vmatpush.bf16.msra.mxu0 0
    %89 = vmatpush.bf16.msra.mxu0 0
    %90 = vmatpush.bf16.msra.mxu0 0
    %91 = vmatpush.bf16.msra.mxu0 0
    %92 = vmatpush.bf16.msra.mxu0 0
    %93 = vmatpush.bf16.msra.mxu0 0
    %94 = vmatpush.bf16.msra.mxu0 %v60
    %95 = vmatpush.bf16.msra.mxu0 %v59
    %96 = vmatmul.bf16.gmra.mxu0 %v65
    %v97 = vpop.f32.mrf.mxu0
    %v98 = vadd.f32 %v49, %v97
    %v99 = vpop.f32.mrf.mxu0
    %v100 = vadd.f32 %v49, %v99
    %101 = vmatmul.bf16.gmra.mxu0 %v68
    %v102 = vpop.f32.mrf.mxu0
    %v103 = vadd.f32 %v49, %v102
    %v104 = vpop.f32.mrf.mxu0
    %v105 = vadd.f32 %v49, %v104
    %106 = vmatmul.bf16.gmra.mxu0 %v71
    %v107 = vpop.f32.mrf.mxu0
    %v108 = vadd.f32 %v49, %v107
    %v109 = vpop.f32.mrf.mxu0
    %v110 = vadd.f32 %v49, %v109
    %111 = vmatmul.bf16.gmra.mxu0 %v74
    %v112 = vpop.f32.mrf.mxu0
    %v113 = vadd.f32 %v49, %v112
    %v114 = vpop.f32.mrf.mxu0
    %v115 = vadd.f32 %v49, %v114
    %116 = vmatmul.bf16.gmra.mxu0 %v77
    %v117 = vpop.f32.mrf.mxu0
    %v118 = vadd.f32 %v49, %v117
    %v119 = vpop.f32.mrf.mxu0
    %v120 = vadd.f32 %v49, %v119
    %121 = vmatmul.bf16.gmra.mxu0 %v80
    %v122 = vpop.f32.mrf.mxu0
    %v123 = vadd.f32 %v49, %v122
    %v124 = vpop.f32.mrf.mxu0
    %v125 = vadd.f32 %v49, %v124
    %126 = vmatmul.bf16.gmra.mxu0 %v83
    %v127 = vpop.f32.mrf.mxu0
    %v128 = vadd.f32 %v49, %v127
    %v129 = vpop.f32.mrf.mxu0
    %v130 = vadd.f32 %v49, %v129
    %131 = vmatmul.bf16.gmra.mxu0 %v86
    %v132 = vpop.f32.mrf.mxu0
    %v133 = vadd.f32 %v49, %v132
    %v134 = vpop.f32.mrf.mxu0
    %v135 = vadd.f32 %v49, %v134
    %136 = vdwg.mxu0
    %v137 = vld [vmem:[%s3] sm:$0xff]
    %v138 = vld [vmem:[%s3 + $0x8] sm:$0xff]
    %v139 = vld [vmem:[%s3 + $0x10] sm:$0xff]
    %v140 = vld [vmem:[%s3 + $0x18] sm:$0xff]
    %v141 = vld [vmem:[%s3 + $0x20] sm:$0xff]
    %v142 = vld [vmem:[%s3 + $0x28] sm:$0xff]
    %v143 = vld [vmem:[%s3 + $0x30] sm:$0xff]
    %v144 = vld [vmem:[%s3 + $0x38] sm:$0xff]
    %v145 = vld [vmem:[%s3 + $0x40] sm:$0xff]
    %v146 = vld [vmem:[%s3 + $0x48] sm:$0xff]
    %v147 = vld [vmem:[%s3 + $0x50] sm:$0xff]
    %v148 = vld [vmem:[%s3 + $0x58] sm:$0xff]
    %v149 = vld [vmem:[%s3 + $0x60] sm:$0xff]
    %v150 = vld [vmem:[%s3 + $0x68] sm:$0xff]
    %v151 = vld [vmem:[%s3 + $0x70] sm:$0xff]
    %v152 = vld [vmem:[%s3 + $0x78] sm:$0xff]
    %v153 = vadd.f32 %v98, %v137
    %v154 = vadd.f32 %v100, %v138
    %v155 = vadd.f32 %v103, %v139
    %v156 = vadd.f32 %v105, %v140
    %v157 = vadd.f32 %v108, %v141
    %v158 = vadd.f32 %v110, %v142
    %v159 = vadd.f32 %v113, %v143
    %v160 = vadd.f32 %v115, %v144
    %v161 = vadd.f32 %v118, %v145
    %v162 = vadd.f32 %v120, %v146
    %v163 = vadd.f32 %v123, %v147
    %v164 = vadd.f32 %v125, %v148
    %v165 = vadd.f32 %v128, %v149
    %v166 = vadd.f32 %v130, %v150
    %v167 = vadd.f32 %v133, %v151
    %v168 = vadd.f32 %v135, %v152
    %vm169 = vcmask 130048
    %170 = vst.msk [vmem:[#allocation2] sm:$0xff] %vm169, %v153
    %171 = vst.msk [vmem:[#allocation2 + $0x8] sm:$0xff] %vm169, %v154
    %172 = vst.msk [vmem:[#allocation2 + $0x10] sm:$0xff] %vm169, %v155
    %173 = vst.msk [vmem:[#allocation2 + $0x18] sm:$0xff] %vm169, %v156
    %174 = vst.msk [vmem:[#allocation2 + $0x20] sm:$0xff] %vm169, %v157
    %175 = vst.msk [vmem:[#allocation2 + $0x28] sm:$0xff] %vm169, %v158
    %176 = vst.msk [vmem:[#allocation2 + $0x30] sm:$0xff] %vm169, %v159
    %177 = vst.msk [vmem:[#allocation2 + $0x38] sm:$0xff] %vm169, %v160
    %178 = vst.msk [vmem:[#allocation2 + $0x40] sm:$0xff] %vm169, %v161
    %179 = vst.msk [vmem:[#allocation2 + $0x48] sm:$0xff] %vm169, %v162
    %180 = vst.msk [vmem:[#allocation2 + $0x50] sm:$0xff] %vm169, %v163
    %181 = vst.msk [vmem:[#allocation2 + $0x58] sm:$0xff] %vm169, %v164
    %182 = vst.msk [vmem:[#allocation2 + $0x60] sm:$0xff] %vm169, %v165
    %183 = vst.msk [vmem:[#allocation2 + $0x68] sm:$0xff] %vm169, %v166
    %184 = vst.msk [vmem:[#allocation2 + $0x70] sm:$0xff] %vm169, %v167
    %185 = vst.msk [vmem:[#allocation2 + $0x78] sm:$0xff] %vm169, %v168
    // Predicated region
    $region18: #{transformer_block.11} parent=1 // pred_check
      _
    $region19: #{transformer_block.11} parent=1 // pred_check_branch
      %187 = sbr.rel (0) target = $region21
    $region20: #{transformer_block.11} parent=1 // pred_region
      %189 = vsyncadd [#allocation3], 0
      %s190 = sshll.u32 [#allocation2], 4
      %s191 = int_to_ptr.vmem [resolvable:$true] %s190
      %s192 = sshll.u32 %s4, 4
      %s193 = int_to_ptr.hbm [resolvable:$true] %s192
      %198 = dma.vmem_to_hbm [thread:$0]  %s191, 2048, %s193, [#allocation3], 128, 128, 8
    $region21: #{transformer_block.11} parent=1 // pred_fallthru
      _
    // Predicated region
    $region22: #{transformer_block.11} parent=1 // pred_check
      _
    $region23: #{transformer_block.11} parent=1 // pred_check_branch
      %200 = sbr.rel (0) target = $region25
    $region24: #{transformer_block.11} parent=1 // pred_region
      %202 = dma.done [#allocation3], 2048
    $region25: #{transformer_block.11} parent=1 // pred_fallthru
      _
    %203 = vsyncpa [#allocation3], 1

// kernel: transformer_block.10
$region0: #{transformer_block.10}
  #allocation0 [shape = 'u32[]', space=smem, size = 0x4, offset = 0x4, fixed_abs, tag = 'smem constant byte address 0x4 - core index']
  #allocation1 [shape = 'u32[72,128]{1,0:T(1,128)}', space=vmem, size = 0x9000, scoped, tag = 'internal scratch']
  #allocation2 [shape = 'f32[10,10,64]{2,1,0:T(8,128)}', space=vmem, size = 0x14000, scoped, tag = 'scratch operand']
  %s0 = inlined_call_operand.vmem [shape: f32[2,8,8,64], index: 0, kind: input, shape index: {}]
  %s1 = inlined_call_operand.vmem [shape: f32[9,64], index: 1, kind: input, shape index: {}]
  %s2 = inlined_call_operand.hbm [shape: f32[1,64], index: 2, kind: input, shape index: {}]
  %s3 = inlined_call_operand.vmem [shape: f32[2,8,8,32], index: 3, kind: output, shape index: {}]
  %s4 = sld [smem:[#allocation0]]
  $region49: #{transformer_block.10} parent=0
    _
  %s6 = ssub.s32 1, %s4
  %s7 = scalar_select 0, %s6, %s4
  $region1: #{transformer_block.10} parent=0
    #allocation3 [shape = 'u8[512]{0}', space=vmem, size = 0x400, scoped, tag = 'input window, operand 2, single buffered']
    #allocation4 [shape = 's32[2]{0}', space=sflag, size = 0x8, scoped, tag = 'scoped memory for transformer_block.10']
    %8 = vsyncpa [#allocation4], 0
    loop: start=0, step=1, limit=4
    $region2: #{transformer_block.10} parent=1 // loop_pre_header
      _
    $region3: #{transformer_block.10} parent=1 // loop_header
      %s10 = sphi 0, %s14
      %p11 = scmp.ge.s32.totalorder %s10, 4
      %s20 = sphi 0, %s22
      %s23 = sphi 0, %s20
      %s24 = sphi 0, %s23
      %s40 = sphi 0, %s24
      %s44 = sphi 0, %s44
      %s46 = sphi 0, %s44
      %s47 = sphi 0, %s46
      %s61 = sphi 0, %s47
      %s65 = sphi 0, %s65
      %s67 = sphi 0, %s65
      %s68 = sphi 0, %s67
      %s82 = sphi 0, %s68
      %s88 = sphi 0, %s90
      %s91 = sphi 0, %s88
      %s92 = sphi 0, %s91
      %s108 = sphi 0, %s92
    $region4: #{transformer_block.10} parent=1 // loop_header_branch
      %13 = sbr.rel (%p11) target = $region8
    $region5: #{transformer_block.10} parent=1 // loop_body
      %s15 = ssub.s32 %s10, 1
      %s16 = ssub.s32 %s10, 2
      %s17 = sadd.s32 %s10, 1
      %s18 = ssub.s32 %s10, %s17
      %p19 = scmp.eq.s32.totalorder %s18, 0
      %s21 = sadd.s32 %s20, 1
      %s22 = scalar_select %p19, %s20, %s21
      %p25 = pneg %p19
      %p26 = scmp.eq.s32.totalorder %s10, 1
      %p27 = por %p25, %p26
      %p28 = scmp.ne.s32.totalorder %s20, %s23
      %p29 = scmp.eq.s32.totalorder %s10, 0
      %p30 = por %p28, %p29
      %p31 = scmp.ne.s32.totalorder %s20, %s23
      %p32 = scmp.eq.s32.totalorder %s15, 1
      %p33 = por %p31, %p32
      %p34 = scmp.ne.s32.totalorder %s23, %s24
      %p35 = scmp.eq.s32.totalorder %s15, 0
      %p36 = por %p34, %p35
      %p37 = scmp.ne.s32.totalorder %s23, %s24
      %p38 = scmp.eq.s32.totalorder %s16, 1
      %p39 = por %p37, %p38
      %p41 = scmp.ne.s32.totalorder %s24, %s40
      %p42 = scmp.eq.s32.totalorder %s16, 0
      %p43 = por %p41, %p42
      %s45 = sadd.s32 %s44, 1
      %p48 = scmp.eq.s32.totalorder %s10, 1
      %p49 = scmp.ne.s32.totalorder %s44, %s46
      %p50 = scmp.eq.s32.totalorder %s10, 0
      %p51 = por %p49, %p50
      %p52 = scmp.ne.s32.totalorder %s44, %s46
      %p53 = scmp.eq.s32.totalorder %s15, 1
      %p54 = por %p52, %p53
      %p55 = scmp.ne.s32.totalorder %s46, %s47
      %p56 = scmp.eq.s32.totalorder %s15, 0
      %p57 = por %p55, %p56
      %p58 = scmp.ne.s32.totalorder %s46, %s47
      %p59 = scmp.eq.s32.totalorder %s16, 1
      %p60 = por %p58, %p59
      %p62 = scmp.ne.s32.totalorder %s47, %s61
      %p63 = scmp.eq.s32.totalorder %s16, 0
      %p64 = por %p62, %p63
      %s66 = sadd.s32 %s65, 1
      %p69 = scmp.eq.s32.totalorder %s10, 1
      %p70 = scmp.ne.s32.totalorder %s65, %s67
      %p71 = scmp.eq.s32.totalorder %s10, 0
      %p72 = por %p70, %p71
      %p73 = scmp.ne.s32.totalorder %s65, %s67
      %p74 = scmp.eq.s32.totalorder %s15, 1
      %p75 = por %p73, %p74
      %p76 = scmp.ne.s32.totalorder %s67, %s68
      %p77 = scmp.eq.s32.totalorder %s15, 0
      %p78 = por %p76, %p77
      %p79 = scmp.ne.s32.totalorder %s67, %s68
      %p80 = scmp.eq.s32.totalorder %s16, 1
      %p81 = por %p79, %p80
      %p83 = scmp.ne.s32.totalorder %s68, %s82
      %p84 = scmp.eq.s32.totalorder %s16, 0
      %p85 = por %p83, %p84
      %s86 = ssub.s32 %s10, %s17
      %p87 = scmp.eq.s32.totalorder %s86, 0
      %s89 = sadd.s32 %s88, 1
      %s90 = scalar_select %p87, %s88, %s89
      %p93 = pneg %p87
      %p94 = scmp.eq.s32.totalorder %s10, 1
      %p95 = por %p93, %p94
      %p96 = scmp.ne.s32.totalorder %s88, %s91
      %p97 = scmp.eq.s32.totalorder %s10, 0
      %p98 = por %p96, %p97
      %p99 = scmp.ne.s32.totalorder %s88, %s91
      %p100 = scmp.eq.s32.totalorder %s15, 1
      %p101 = por %p99, %p100
      %p102 = scmp.ne.s32.totalorder %s91, %s92
      %p103 = scmp.eq.s32.totalorder %s15, 0
      %p104 = por %p102, %p103
      %p105 = scmp.ne.s32.totalorder %s91, %s92
      %p106 = scmp.eq.s32.totalorder %s16, 1
      %p107 = por %p105, %p106
      %p109 = scmp.ne.s32.totalorder %s92, %s108
      %p110 = scmp.eq.s32.totalorder %s16, 0
      %p111 = por %p109, %p110
      %p112 = scmp.le.s32.totalorder 1, %s10
      %p113 = scmp.lt.s32.totalorder %s10, 3
      %p114 = pnand %p112, %p113
      %p115 = pneg %p114
      // Predicated region
      $region9: #{transformer_block.10} parent=5 // pred_check
        _
      $region10: #{transformer_block.10} parent=5 // pred_check_branch
        %117 = sbr.rel (%p114) target = $region12
      $region11: #{transformer_block.10} parent=5 // pred_region
        %s118 = ssub.s32 %s10, 1
        // Predicated region
        $region13: #{transformer_block.10} parent=11 // pred_check
          %p119 = pneg %p57
        $region14: #{transformer_block.10} parent=11 // pred_check_branch
          %121 = sbr.rel (%p119) target = $region16
        $region15: #{transformer_block.10} parent=11 // pred_region
          _
        $region16: #{transformer_block.10} parent=11 // pred_fallthru
          _
        // Predicated region
        $region17: #{transformer_block.10} parent=11 // pred_check
          %p122 = pneg %p78
        $region18: #{transformer_block.10} parent=11 // pred_check_branch
          %124 = sbr.rel (%p122) target = $region20
        $region19: #{transformer_block.10} parent=11 // pred_region
          %126 = vsyncadd [#allocation4], 0
          %s128 = sshll.u32 %s2, 4
          %s129 = int_to_ptr.hbm [resolvable:$true] %s128
          %s130 = sshll.u32 [#allocation3], 4
          %s131 = int_to_ptr.vmem [resolvable:$true] %s130
          %133 = dma.hbm_to_vmem [thread:$0]  %s129, 16, %s131, [#allocation4]
        $region20: #{transformer_block.10} parent=11 // pred_fallthru
          _
      $region12: #{transformer_block.10} parent=5 // pred_fallthru
        _
      %p134 = scmp.lt.s32.totalorder %s10, 2
      // Predicated region
      $region21: #{transformer_block.10} parent=5 // pred_check
        %p135 = pneg %p134
      $region22: #{transformer_block.10} parent=5 // pred_check_branch
        %137 = sbr.rel (%p135) target = $region24
      $region23: #{transformer_block.10} parent=5 // pred_region
        // Predicated region
        $region25: #{transformer_block.10} parent=23 // pred_check
          %p138 = pneg %p30
        $region26: #{transformer_block.10} parent=23 // pred_check_branch
          %140 = sbr.rel (%p138) target = $region28
        $region27: #{transformer_block.10} parent=23 // pred_region
          %p141 = scmp.lt.s32.totalorder %s10, 1
          %s142 = scalar_select %p141, %s10, 1
          %s143 = smul.addr %s142, 8
          %s144 = smul.addr %s143, 8
          %s145 = scalar_lea.vmem %s0, %s144
        $region28: #{transformer_block.10} parent=23 // pred_fallthru
          _
      $region24: #{transformer_block.10} parent=5 // pred_fallthru
        _
      %p146 = scmp.le.s32.totalorder 1, %s10
      %p147 = scmp.lt.s32.totalorder %s10, 3
      %p148 = pnand %p146, %p147
      %p149 = pneg %p148
      // Predicated region
      $region29: #{transformer_block.10} parent=5 // pred_check
        _
      $region30: #{transformer_block.10} parent=5 // pred_check_branch
        %151 = sbr.rel (%p148) target = $region32
      $region31: #{transformer_block.10} parent=5 // pred_region
        %s152 = ssub.s32 %s10, 1
        // Predicated region
        $region33: #{transformer_block.10} parent=31 // pred_check
          %p153 = pneg %p78
        $region34: #{transformer_block.10} parent=31 // pred_check_branch
          %155 = sbr.rel (%p153) target = $region36
        $region35: #{transformer_block.10} parent=31 // pred_region
          %157 = dma.done [#allocation4], 16
        $region36: #{transformer_block.10} parent=31 // pred_fallthru
          _
        %p158 = scmp.lt.s32.totalorder %s15, 1
        %s159 = scalar_select %p158, %s15, 1
        %s160 = smul.addr %s159, 8
        %s161 = smul.addr %s160, 8
        %s162 = scalar_lea.vmem %s0, %s161
        %p163 = pneg %p36
        %p164 = pneg %p33
        %p165 = pneg %p57
        %p166 = pneg %p54
        %p167 = pneg %p78
        %p168 = pneg %p75
        %p169 = pneg %p104
        %p170 = pneg %p101
        %p171 = scmp.lt.s32.totalorder %s15, 1
        %s172 = scalar_select %p171, %s15, 1
        %s173 = smul.addr %s172, 8
        %s174 = smul.addr %s173, 8
        %s175 = scalar_lea.vmem %s3, %s174
        %p176 = scmp.lt.s32.totalorder %s15, 1
        %s177 = scalar_select %p176, %s15, 1
        %s178 = smul.addr %s177, 8
        %s179 = smul.addr %s178, 8
        %s180 = scalar_lea.vmem %s0, %s179
        %p181 = scmp.lt.s32.totalorder %s15, 1
        %s182 = scalar_select %p181, %s15, 1
        %s183 = smul.addr %s182, 8
        %s184 = smul.addr %s183, 8
        %s185 = scalar_lea.vmem %s3, %s184
        %vm186 = vcmask 523264
        %187 = vst.msk [vmem:[#allocation2] sm:$0xff] %vm186, 0.0
        %vm188 = vcmask 517120
        %189 = vst.msk [vmem:[#allocation2 + $0x8] sm:$0x3] %vm188, 0.0
        %s190 = scalar_lea.vmem [#allocation2], 144
        %191 = vst.msk [vmem:[%s190] sm:$0xff] %vm186, 0.0
        %192 = vst.msk [vmem:[%s190 + $0x8] sm:$0x3] %vm188, 0.0
        %vm193 = vcmask 516096
        %194 = vst.msk [vmem:[#allocation2] sm:$0x1] %vm193, 0.0
        %195 = vst.msk [vmem:[#allocation2 + $0x10] sm:$0x1] %vm193, 0.0
        %196 = vst.msk [vmem:[#allocation2 + $0x20] sm:$0x1] %vm193, 0.0
        %197 = vst.msk [vmem:[#allocation2 + $0x30] sm:$0x1] %vm193, 0.0
        %198 = vst.msk [vmem:[#allocation2 + $0x40] sm:$0x1] %vm193, 0.0
        %199 = vst.msk [vmem:[#allocation2 + $0x50] sm:$0x1] %vm193, 0.0
        %200 = vst.msk [vmem:[#allocation2 + $0x60] sm:$0x1] %vm193, 0.0
        %201 = vst.msk [vmem:[#allocation2 + $0x70] sm:$0x1] %vm193, 0.0
        %202 = vst.msk [vmem:[#allocation2 + $0x80] sm:$0x1] %vm193, 0.0
        %203 = vst.msk [vmem:[#allocation2 + $0x90] sm:$0x1] %vm193, 0.0
        %204 = vst.msk [vmem:[#allocation2 + $0x9] sm:$0x1] %vm193, 0.0
        %205 = vst.msk [vmem:[#allocation2 + $0x19] sm:$0x1] %vm193, 0.0
        %206 = vst.msk [vmem:[#allocation2 + $0x29] sm:$0x1] %vm193, 0.0
        %207 = vst.msk [vmem:[#allocation2 + $0x39] sm:$0x1] %vm193, 0.0
        %208 = vst.msk [vmem:[#allocation2 + $0x49] sm:$0x1] %vm193, 0.0
        %209 = vst.msk [vmem:[#allocation2 + $0x59] sm:$0x1] %vm193, 0.0
        %210 = vst.msk [vmem:[#allocation2 + $0x69] sm:$0x1] %vm193, 0.0
        %211 = vst.msk [vmem:[#allocation2 + $0x79] sm:$0x1] %vm193, 0.0
        %212 = vst.msk [vmem:[#allocation2 + $0x89] sm:$0x1] %vm193, 0.0
        %213 = vst.msk [vmem:[#allocation2 + $0x99] sm:$0x1] %vm193, 0.0
        %v214 = vld [vmem:[%s180] sm:$0xff]
        %v215 = vld [vmem:[%s180 + $0x8] sm:$0xff]
        %v216 = vld [vmem:[%s180 + $0x10] sm:$0xff]
        %v217 = vld [vmem:[%s180 + $0x18] sm:$0xff]
        %v218 = vld [vmem:[%s180 + $0x20] sm:$0xff]
        %v219 = vld [vmem:[%s180 + $0x28] sm:$0xff]
        %v220 = vld [vmem:[%s180 + $0x30] sm:$0xff]
        %v221 = vld [vmem:[%s180 + $0x38] sm:$0xff]
        %s222 = scalar_lea.vmem [#allocation2], 16
        %223 = vst.msk [vmem:[%s222 + $0x1] sm:$0xff] %vm186, %v214
        %224 = vst.msk [vmem:[%s222 + $0x11] sm:$0xff] %vm186, %v215
        %225 = vst.msk [vmem:[%s222 + $0x21] sm:$0xff] %vm186, %v216
        %226 = vst.msk [vmem:[%s222 + $0x31] sm:$0xff] %vm186, %v217
        %227 = vst.msk [vmem:[%s222 + $0x41] sm:$0xff] %vm186, %v218
        %228 = vst.msk [vmem:[%s222 + $0x51] sm:$0xff] %vm186, %v219
        %229 = vst.msk [vmem:[%s222 + $0x61] sm:$0xff] %vm186, %v220
        %230 = vst.msk [vmem:[%s222 + $0x71] sm:$0xff] %vm186, %v221
        %v231 = vld [vmem:[#allocation2] sm:$0xff]
        %v232 = vld [vmem:[#allocation2 + $0x8] sm:$0x3]
        %v233 = vld [vmem:[#allocation2 + $0x10] sm:$0xff]
        %v234 = vld [vmem:[#allocation2 + $0x18] sm:$0x3]
        %v235 = vld [vmem:[#allocation2 + $0x20] sm:$0xff]
        %v236 = vld [vmem:[#allocation2 + $0x28] sm:$0x3]
        %v237 = vld [vmem:[#allocation2 + $0x30] sm:$0xff]
        %v238 = vld [vmem:[#allocation2 + $0x38] sm:$0x3]
        %v239 = vld [vmem:[#allocation2 + $0x40] sm:$0xff]
        %v240 = vld [vmem:[#allocation2 + $0x48] sm:$0x3]
        %v241 = vld [vmem:[#allocation2 + $0x50] sm:$0xff]
        %v242 = vld [vmem:[#allocation2 + $0x58] sm:$0x3]
        %v243 = vld [vmem:[#allocation2 + $0x60] sm:$0xff]
        %v244 = vld [vmem:[#allocation2 + $0x68] sm:$0x3]
        %v245 = vld [vmem:[#allocation2 + $0x70] sm:$0xff]
        %v246 = vld [vmem:[#allocation2 + $0x78] sm:$0x3]
        %v247 = vld [vmem:[#allocation2 + $0x80] sm:$0xff]
        %v248 = vld [vmem:[#allocation2 + $0x88] sm:$0x3]
        %v249 = vld [vmem:[#allocation2 + $0x90] sm:$0xff]
        %v250 = vld [vmem:[#allocation2 + $0x98] sm:$0x3]
        %v251 = vld [vmem:[%s1] sm:$0x1]
        %v252 = vperm.slane %v251, 0
        %v253 = vmul.f32 %v231, %v252
        %v254 = vmul.f32 %v233, %v252
        %v255 = vmul.f32 %v235, %v252
        %v256 = vmul.f32 %v237, %v252
        %v257 = vmul.f32 %v239, %v252
        %v258 = vmul.f32 %v241, %v252
        %v259 = vmul.f32 %v243, %v252
        %v260 = vmul.f32 %v245, %v252
        %v261 = vadd.f32 %v253, 0.0
        %v262 = vadd.f32 %v254, 0.0
        %v263 = vadd.f32 %v255, 0.0
        %v264 = vadd.f32 %v256, 0.0
        %v265 = vadd.f32 %v257, 0.0
        %v266 = vadd.f32 %v258, 0.0
        %v267 = vadd.f32 %v259, 0.0
        %v268 = vadd.f32 %v260, 0.0
        %v269 = vld [vmem:[%s1 + $0x3] sm:$0x1]
        %v270 = vperm.slane %v269, 0
        %v271 = vmul.f32 %v233, %v270
        %v272 = vmul.f32 %v235, %v270
        %v273 = vmul.f32 %v237, %v270
        %v274 = vmul.f32 %v239, %v270
        %v275 = vmul.f32 %v241, %v270
        %v276 = vmul.f32 %v243, %v270
        %v277 = vmul.f32 %v245, %v270
        %v278 = vmul.f32 %v247, %v270
        %v279 = vadd.f32 %v261, %v271
        %v280 = vadd.f32 %v262, %v272
        %v281 = vadd.f32 %v263, %v273
        %v282 = vadd.f32 %v264, %v274
        %v283 = vadd.f32 %v265, %v275
        %v284 = vadd.f32 %v266, %v276
        %v285 = vadd.f32 %v267, %v277
        %v286 = vadd.f32 %v268, %v278
        %v287 = vld [vmem:[%s1 + $0x6] sm:$0x1]
        %v288 = vperm.slane %v287, 0
        %v289 = vmul.f32 %v235, %v288
        %v290 = vmul.f32 %v237, %v288
        %v291 = vmul.f32 %v239, %v288
        %v292 = vmul.f32 %v241, %v288
        %v293 = vmul.f32 %v243, %v288
        %v294 = vmul.f32 %v245, %v288
        %v295 = vmul.f32 %v247, %v288
        %v296 = vmul.f32 %v249, %v288
        %v297 = vadd.f32 %v279, %v289
        %v298 = vadd.f32 %v280, %v290
        %v299 = vadd.f32 %v281, %v291
        %v300 = vadd.f32 %v282, %v292
        %v301 = vadd.f32 %v283, %v293
        %v302 = vadd.f32 %v284, %v294
        %v303 = vadd.f32 %v285, %v295
        %v304 = vadd.f32 %v286, %v296
        %v305 = vld [vmem:[%s1 + $0x1] sm:$0x1]
        %v306 = vperm.slane %v305, 0
        %v307 = vmul.f32 %v231, %v306
        %v308 = vmul.f32 %v232, %v306
        %v309 = vmul.f32 %v233, %v306
        %v310 = vmul.f32 %v234, %v306
        %v311 = vmul.f32 %v235, %v306
        %v312 = vmul.f32 %v236, %v306
        %v313 = vmul.f32 %v237, %v306
        %v314 = vmul.f32 %v238, %v306
        %v315 = vmul.f32 %v239, %v306
        %v316 = vmul.f32 %v240, %v306
        %v317 = vmul.f32 %v241, %v306
        %v318 = vmul.f32 %v242, %v306
        %v319 = vmul.f32 %v243, %v306
        %v320 = vmul.f32 %v244, %v306
        %v321 = vmul.f32 %v245, %v306
        %v322 = vmul.f32 %v246, %v306
        %vm339 = vcmask 1046528
        %v340 = vrot.slane %v307, 1
        %v341 = vrot.slane %v308, 1
        %v342 = vsel %vm339, %v340, %v341
        %v343 = vrot.slane %v309, 1
        %v344 = vrot.slane %v310, 1
        %v345 = vsel %vm339, %v343, %v344
        %v346 = vrot.slane %v311, 1
        %v347 = vrot.slane %v312, 1
        %v348 = vsel %vm339, %v346, %v347
        %v349 = vrot.slane %v313, 1
        %v350 = vrot.slane %v314, 1
        %v351 = vsel %vm339, %v349, %v350
        %v352 = vrot.slane %v315, 1
        %v353 = vrot.slane %v316, 1
        %v354 = vsel %vm339, %v352, %v353
        %v355 = vrot.slane %v317, 1
        %v356 = vrot.slane %v318, 1
        %v357 = vsel %vm339, %v355, %v356
        %v358 = vrot.slane %v319, 1
        %v359 = vrot.slane %v320, 1
        %v360 = vsel %vm339, %v358, %v359
        %v361 = vrot.slane %v321, 1
        %v362 = vrot.slane %v322, 1
        %v363 = vsel %vm339, %v361, %v362
        %v372 = vadd.f32 %v297, %v342
        %v373 = vadd.f32 %v298, %v345
        %v374 = vadd.f32 %v299, %v348
        %v375 = vadd.f32 %v300, %v351
        %v376 = vadd.f32 %v301, %v354
        %v377 = vadd.f32 %v302, %v357
        %v378 = vadd.f32 %v303, %v360
        %v379 = vadd.f32 %v304, %v363
        %v380 = vld [vmem:[%s1 + $0x4] sm:$0x1]
        %v381 = vperm.slane %v380, 0
        %v382 = vmul.f32 %v233, %v381
        %v383 = vmul.f32 %v234, %v381
        %v384 = vmul.f32 %v235, %v381
        %v385 = vmul.f32 %v236, %v381
        %v386 = vmul.f32 %v237, %v381
        %v387 = vmul.f32 %v238, %v381
        %v388 = vmul.f32 %v239, %v381
        %v389 = vmul.f32 %v240, %v381
        %v390 = vmul.f32 %v241, %v381
        %v391 = vmul.f32 %v242, %v381
        %v392 = vmul.f32 %v243, %v381
        %v393 = vmul.f32 %v244, %v381
        %v394 = vmul.f32 %v245, %v381
        %v395 = vmul.f32 %v246, %v381
        %v396 = vmul.f32 %v247, %v381
        %v397 = vmul.f32 %v248, %v381
        %v414 = vrot.slane %v382, 1
        %v415 = vrot.slane %v383, 1
        %v416 = vsel %vm339, %v414, %v415
        %v417 = vrot.slane %v384, 1
        %v418 = vrot.slane %v385, 1
        %v419 = vsel %vm339, %v417, %v418
        %v420 = vrot.slane %v386, 1
        %v421 = vrot.slane %v387, 1
        %v422 = vsel %vm339, %v420, %v421
        %v423 = vrot.slane %v388, 1
        %v424 = vrot.slane %v389, 1
        %v425 = vsel %vm339, %v423, %v424
        %v426 = vrot.slane %v390, 1
        %v427 = vrot.slane %v391, 1
        %v428 = vsel %vm339, %v426, %v427
        %v429 = vrot.slane %v392, 1
        %v430 = vrot.slane %v393, 1
        %v431 = vsel %vm339, %v429, %v430
        %v432 = vrot.slane %v394, 1
        %v433 = vrot.slane %v395, 1
        %v434 = vsel %vm339, %v432, %v433
        %v435 = vrot.slane %v396, 1
        %v436 = vrot.slane %v397, 1
        %v437 = vsel %vm339, %v435, %v436
        %v446 = vadd.f32 %v372, %v416
        %v447 = vadd.f32 %v373, %v419
        %v448 = vadd.f32 %v374, %v422
        %v449 = vadd.f32 %v375, %v425
        %v450 = vadd.f32 %v376, %v428
        %v451 = vadd.f32 %v377, %v431
        %v452 = vadd.f32 %v378, %v434
        %v453 = vadd.f32 %v379, %v437
        %v454 = vld [vmem:[%s1 + $0x7] sm:$0x1]
        %v455 = vperm.slane %v454, 0
        %v456 = vmul.f32 %v235, %v455
        %v457 = vmul.f32 %v236, %v455
        %v458 = vmul.f32 %v237, %v455
        %v459 = vmul.f32 %v238, %v455
        %v460 = vmul.f32 %v239, %v455
        %v461 = vmul.f32 %v240, %v455
        %v462 = vmul.f32 %v241, %v455
        %v463 = vmul.f32 %v242, %v455
        %v464 = vmul.f32 %v243, %v455
        %v465 = vmul.f32 %v244, %v455
        %v466 = vmul.f32 %v245, %v455
        %v467 = vmul.f32 %v246, %v455
        %v468 = vmul.f32 %v247, %v455
        %v469 = vmul.f32 %v248, %v455
        %v470 = vmul.f32 %v249, %v455
        %v471 = vmul.f32 %v250, %v455
        %v488 = vrot.slane %v456, 1
        %v489 = vrot.slane %v457, 1
        %v490 = vsel %vm339, %v488, %v489
        %v491 = vrot.slane %v458, 1
        %v492 = vrot.slane %v459, 1
        %v493 = vsel %vm339, %v491, %v492
        %v494 = vrot.slane %v460, 1
        %v495 = vrot.slane %v461, 1
        %v496 = vsel %vm339, %v494, %v495
        %v497 = vrot.slane %v462, 1
        %v498 = vrot.slane %v463, 1
        %v499 = vsel %vm339, %v497, %v498
        %v500 = vrot.slane %v464, 1
        %v501 = vrot.slane %v465, 1
        %v502 = vsel %vm339, %v500, %v501
        %v503 = vrot.slane %v466, 1
        %v504 = vrot.slane %v467, 1
        %v505 = vsel %vm339, %v503, %v504
        %v506 = vrot.slane %v468, 1
        %v507 = vrot.slane %v469, 1
        %v508 = vsel %vm339, %v506, %v507
        %v509 = vrot.slane %v470, 1
        %v510 = vrot.slane %v471, 1
        %v511 = vsel %vm339, %v509, %v510
        %v520 = vadd.f32 %v446, %v490
        %v521 = vadd.f32 %v447, %v493
        %v522 = vadd.f32 %v448, %v496
        %v523 = vadd.f32 %v449, %v499
        %v524 = vadd.f32 %v450, %v502
        %v525 = vadd.f32 %v451, %v505
        %v526 = vadd.f32 %v452, %v508
        %v527 = vadd.f32 %v453, %v511
        %v528 = vld [vmem:[%s1 + $0x2] sm:$0x1]
        %v529 = vperm.slane %v528, 0
        %v530 = vmul.f32 %v231, %v529
        %v531 = vmul.f32 %v232, %v529
        %v532 = vmul.f32 %v233, %v529
        %v533 = vmul.f32 %v234, %v529
        %v534 = vmul.f32 %v235, %v529
        %v535 = vmul.f32 %v236, %v529
        %v536 = vmul.f32 %v237, %v529
        %v537 = vmul.f32 %v238, %v529
        %v538 = vmul.f32 %v239, %v529
        %v539 = vmul.f32 %v240, %v529
        %v540 = vmul.f32 %v241, %v529
        %v541 = vmul.f32 %v242, %v529
        %v542 = vmul.f32 %v243, %v529
        %v543 = vmul.f32 %v244, %v529
        %v544 = vmul.f32 %v245, %v529
        %v545 = vmul.f32 %v246, %v529
        %vm562 = vcmask 1045504
        %v563 = vrot.slane %v530, 2
        %v564 = vrot.slane %v531, 2
        %v565 = vsel %vm562, %v563, %v564
        %v566 = vrot.slane %v532, 2
        %v567 = vrot.slane %v533, 2
        %v568 = vsel %vm562, %v566, %v567
        %v569 = vrot.slane %v534, 2
        %v570 = vrot.slane %v535, 2
        %v571 = vsel %vm562, %v569, %v570
        %v572 = vrot.slane %v536, 2
        %v573 = vrot.slane %v537, 2
        %v574 = vsel %vm562, %v572, %v573
        %v575 = vrot.slane %v538, 2
        %v576 = vrot.slane %v539, 2
        %v577 = vsel %vm562, %v575, %v576
        %v578 = vrot.slane %v540, 2
        %v579 = vrot.slane %v541, 2
        %v580 = vsel %vm562, %v578, %v579
        %v581 = vrot.slane %v542, 2
        %v582 = vrot.slane %v543, 2
        %v583 = vsel %vm562, %v581, %v582
        %v584 = vrot.slane %v544, 2
        %v585 = vrot.slane %v545, 2
        %v586 = vsel %vm562, %v584, %v585
        %v595 = vadd.f32 %v520, %v565
        %v596 = vadd.f32 %v521, %v568
        %v597 = vadd.f32 %v522, %v571
        %v598 = vadd.f32 %v523, %v574
        %v599 = vadd.f32 %v524, %v577
        %v600 = vadd.f32 %v525, %v580
        %v601 = vadd.f32 %v526, %v583
        %v602 = vadd.f32 %v527, %v586
        %v603 = vld [vmem:[%s1 + $0x5] sm:$0x1]
        %v604 = vperm.slane %v603, 0
        %v605 = vmul.f32 %v233, %v604
        %v606 = vmul.f32 %v234, %v604
        %v607 = vmul.f32 %v235, %v604
        %v608 = vmul.f32 %v236, %v604
        %v609 = vmul.f32 %v237, %v604
        %v610 = vmul.f32 %v238, %v604
        %v611 = vmul.f32 %v239, %v604
        %v612 = vmul.f32 %v240, %v604
        %v613 = vmul.f32 %v241, %v604
        %v614 = vmul.f32 %v242, %v604
        %v615 = vmul.f32 %v243, %v604
        %v616 = vmul.f32 %v244, %v604
        %v617 = vmul.f32 %v245, %v604
        %v618 = vmul.f32 %v246, %v604
        %v619 = vmul.f32 %v247, %v604
        %v620 = vmul.f32 %v248, %v604
        %v637 = vrot.slane %v605, 2
        %v638 = vrot.slane %v606, 2
        %v639 = vsel %vm562, %v637, %v638
        %v640 = vrot.slane %v607, 2
        %v641 = vrot.slane %v608, 2
        %v642 = vsel %vm562, %v640, %v641
        %v643 = vrot.slane %v609, 2
        %v644 = vrot.slane %v610, 2
        %v645 = vsel %vm562, %v643, %v644
        %v646 = vrot.slane %v611, 2
        %v647 = vrot.slane %v612, 2
        %v648 = vsel %vm562, %v646, %v647
        %v649 = vrot.slane %v613, 2
        %v650 = vrot.slane %v614, 2
        %v651 = vsel %vm562, %v649, %v650
        %v652 = vrot.slane %v615, 2
        %v653 = vrot.slane %v616, 2
        %v654 = vsel %vm562, %v652, %v653
        %v655 = vrot.slane %v617, 2
        %v656 = vrot.slane %v618, 2
        %v657 = vsel %vm562, %v655, %v656
        %v658 = vrot.slane %v619, 2
        %v659 = vrot.slane %v620, 2
        %v660 = vsel %vm562, %v658, %v659
        %v669 = vadd.f32 %v595, %v639
        %v670 = vadd.f32 %v596, %v642
        %v671 = vadd.f32 %v597, %v645
        %v672 = vadd.f32 %v598, %v648
        %v673 = vadd.f32 %v599, %v651
        %v674 = vadd.f32 %v600, %v654
        %v675 = vadd.f32 %v601, %v657
        %v676 = vadd.f32 %v602, %v660
        %v677 = vld [vmem:[%s1 + $0x8] sm:$0x1]
        %v678 = vperm.slane %v677, 0
        %v679 = vmul.f32 %v235, %v678
        %v680 = vmul.f32 %v236, %v678
        %v681 = vmul.f32 %v237, %v678
        %v682 = vmul.f32 %v238, %v678
        %v683 = vmul.f32 %v239, %v678
        %v684 = vmul.f32 %v240, %v678
        %v685 = vmul.f32 %v241, %v678
        %v686 = vmul.f32 %v242, %v678
        %v687 = vmul.f32 %v243, %v678
        %v688 = vmul.f32 %v244, %v678
        %v689 = vmul.f32 %v245, %v678
        %v690 = vmul.f32 %v246, %v678
        %v691 = vmul.f32 %v247, %v678
        %v692 = vmul.f32 %v248, %v678
        %v693 = vmul.f32 %v249, %v678
        %v694 = vmul.f32 %v250, %v678
        %v711 = vrot.slane %v679, 2
        %v712 = vrot.slane %v680, 2
        %v713 = vsel %vm562, %v711, %v712
        %v714 = vrot.slane %v681, 2
        %v715 = vrot.slane %v682, 2
        %v716 = vsel %vm562, %v714, %v715
        %v717 = vrot.slane %v683, 2
        %v718 = vrot.slane %v684, 2
        %v719 = vsel %vm562, %v717, %v718
        %v720 = vrot.slane %v685, 2
        %v721 = vrot.slane %v686, 2
        %v722 = vsel %vm562, %v720, %v721
        %v723 = vrot.slane %v687, 2
        %v724 = vrot.slane %v688, 2
        %v725 = vsel %vm562, %v723, %v724
        %v726 = vrot.slane %v689, 2
        %v727 = vrot.slane %v690, 2
        %v728 = vsel %vm562, %v726, %v727
        %v729 = vrot.slane %v691, 2
        %v730 = vrot.slane %v692, 2
        %v731 = vsel %vm562, %v729, %v730
        %v732 = vrot.slane %v693, 2
        %v733 = vrot.slane %v694, 2
        %v734 = vsel %vm562, %v732, %v733
        %v743 = vadd.f32 %v669, %v713
        %v744 = vadd.f32 %v670, %v716
        %v745 = vadd.f32 %v671, %v719
        %v746 = vadd.f32 %v672, %v722
        %v747 = vadd.f32 %v673, %v725
        %v748 = vadd.f32 %v674, %v728
        %v749 = vadd.f32 %v675, %v731
        %v750 = vadd.f32 %v676, %v734
        %v751 = vld [vmem:[#allocation3] sm:$0x1]
        %v753 = vperm.slane %v751, 0
        %v755 = vadd.f32 %v743, %v753
        %v756 = vadd.f32 %v744, %v753
        %v757 = vadd.f32 %v745, %v753
        %v758 = vadd.f32 %v746, %v753
        %v759 = vadd.f32 %v747, %v753
        %v760 = vadd.f32 %v748, %v753
        %v761 = vadd.f32 %v749, %v753
        %v762 = vadd.f32 %v750, %v753
        %v763 = vmul.f32 %v755, 0.5
        %v764 = vmul.f32 %v756, 0.5
        %v765 = vmul.f32 %v757, 0.5
        %v766 = vmul.f32 %v758, 0.5
        %v767 = vmul.f32 %v759, 0.5
        %v768 = vmul.f32 %v760, 0.5
        %v769 = vmul.f32 %v761, 0.5
        %v770 = vmul.f32 %v762, 0.5
        %v771 = vmul.f32 %v755, 0.70710677
        %v772 = vmul.f32 %v756, 0.70710677
        %v773 = vmul.f32 %v757, 0.70710677
        %v774 = vmul.f32 %v758, 0.70710677
        %v775 = vmul.f32 %v759, 0.70710677
        %v776 = vmul.f32 %v760, 0.70710677
        %v777 = vmul.f32 %v761, 0.70710677
        %v778 = vmul.f32 %v762, 0.70710677
        %v779 = vand.u32 2147483647, %v771
        %v780 = vand.u32 2147483647, %v772
        %v781 = vand.u32 2147483647, %v773
        %v782 = vand.u32 2147483647, %v774
        %v783 = vand.u32 2147483647, %v775
        %v784 = vand.u32 2147483647, %v776
        %v785 = vand.u32 2147483647, %v777
        %v786 = vand.u32 2147483647, %v778
        %v787 = vmul.f32 %v779, 0.3275911
        %v788 = vmul.f32 %v780, 0.3275911
        %v789 = vmul.f32 %v781, 0.3275911
        %v790 = vmul.f32 %v782, 0.3275911
        %v791 = vmul.f32 %v783, 0.3275911
        %v792 = vmul.f32 %v784, 0.3275911
        %v793 = vmul.f32 %v785, 0.3275911
        %v794 = vmul.f32 %v786, 0.3275911
        %v795 = vadd.f32 %v787, 1.0
        %v796 = vadd.f32 %v788, 1.0
        %v797 = vadd.f32 %v789, 1.0
        %v798 = vadd.f32 %v790, 1.0
        %v799 = vadd.f32 %v791, 1.0
        %v800 = vadd.f32 %v792, 1.0
        %v801 = vadd.f32 %v793, 1.0
        %v802 = vadd.f32 %v794, 1.0
        %v803 = vrcp.pop %v795
        %v804 = vmul.f32 %v795, %v803
        %v805 = vsub.f32 1.0, %v804
        %v806 = vmul.f32 %v803, %v805
        %v807 = vadd.f32 %v803, %v806
        %vm808 = vweird.f32 %v795
        %vm809 = vweird.f32 %v803
        %vm810 = vmor %vm808, %vm809
        %v811 = vsel %vm810, %v803, %v807
        %v812 = vand.u32 2147483647, %v795
        %vm813 = vcmp.eq.f32.partialorder %v812, 8.507059e+37
        %v814 = vand.u32 %v795, 2147483648
        %v815 = vor.u32 1.1754944e-38, %v814
        %v816 = vsel %vm813, %v815, %v811
        %v817 = vmul.f32 1.0, %v816
        %v818 = vrcp.pop %v796
        %v819 = vmul.f32 %v796, %v818
        %v820 = vsub.f32 1.0, %v819
        %v821 = vmul.f32 %v818, %v820
        %v822 = vadd.f32 %v818, %v821
        %vm823 = vweird.f32 %v796
        %vm824 = vweird.f32 %v818
        %vm825 = vmor %vm823, %vm824
        %v826 = vsel %vm825, %v818, %v822
        %v827 = vand.u32 2147483647, %v796
        %vm828 = vcmp.eq.f32.partialorder %v827, 8.507059e+37
        %v829 = vand.u32 %v796, 2147483648
        %v830 = vor.u32 1.1754944e-38, %v829
        %v831 = vsel %vm828, %v830, %v826
        %v832 = vmul.f32 1.0, %v831
        %v833 = vrcp.pop %v797
        %v834 = vmul.f32 %v797, %v833
        %v835 = vsub.f32 1.0, %v834
        %v836 = vmul.f32 %v833, %v835
        %v837 = vadd.f32 %v833, %v836
        %vm838 = vweird.f32 %v797
        %vm839 = vweird.f32 %v833
        %vm840 = vmor %vm838, %vm839
        %v841 = vsel %vm840, %v833, %v837
        %v842 = vand.u32 2147483647, %v797
        %vm843 = vcmp.eq.f32.partialorder %v842, 8.507059e+37
        %v844 = vand.u32 %v797, 2147483648
        %v845 = vor.u32 1.1754944e-38, %v844
        %v846 = vsel %vm843, %v845, %v841
        %v847 = vmul.f32 1.0, %v846
        %v848 = vrcp.pop %v798
        %v849 = vmul.f32 %v798, %v848
        %v850 = vsub.f32 1.0, %v849
        %v851 = vmul.f32 %v848, %v850
        %v852 = vadd.f32 %v848, %v851
        %vm853 = vweird.f32 %v798
        %vm854 = vweird.f32 %v848
        %vm855 = vmor %vm853, %vm854
        %v856 = vsel %vm855, %v848, %v852
        %v857 = vand.u32 2147483647, %v798
        %vm858 = vcmp.eq.f32.partialorder %v857, 8.507059e+37
        %v859 = vand.u32 %v798, 2147483648
        %v860 = vor.u32 1.1754944e-38, %v859
        %v861 = vsel %vm858, %v860, %v856
        %v862 = vmul.f32 1.0, %v861
        %v863 = vrcp.pop %v799
        %v864 = vmul.f32 %v799, %v863
        %v865 = vsub.f32 1.0, %v864
        %v866 = vmul.f32 %v863, %v865
        %v867 = vadd.f32 %v863, %v866
        %vm868 = vweird.f32 %v799
        %vm869 = vweird.f32 %v863
        %vm870 = vmor %vm868, %vm869
        %v871 = vsel %vm870, %v863, %v867
        %v872 = vand.u32 2147483647, %v799
        %vm873 = vcmp.eq.f32.partialorder %v872, 8.507059e+37
        %v874 = vand.u32 %v799, 2147483648
        %v875 = vor.u32 1.1754944e-38, %v874
        %v876 = vsel %vm873, %v875, %v871
        %v877 = vmul.f32 1.0, %v876
        %v878 = vrcp.pop %v800
        %v879 = vmul.f32 %v800, %v878
        %v880 = vsub.f32 1.0, %v879
        %v881 = vmul.f32 %v878, %v880
        %v882 = vadd.f32 %v878, %v881
        %vm883 = vweird.f32 %v800
        %vm884 = vweird.f32 %v878
        %vm885 = vmor %vm883, %vm884
        %v886 = vsel %vm885, %v878, %v882
        %v887 = vand.u32 2147483647, %v800
        %vm888 = vcmp.eq.f32.partialorder %v887, 8.507059e+37
        %v889 = vand.u32 %v800, 2147483648
        %v890 = vor.u32 1.1754944e-38, %v889
        %v891 = vsel %vm888, %v890, %v886
        %v892 = vmul.f32 1.0, %v891
        %v893 = vrcp.pop %v801
        %v894 = vmul.f32 %v801, %v893
        %v895 = vsub.f32 1.0, %v894
        %v896 = vmul.f32 %v893, %v895
        %v897 = vadd.f32 %v893, %v896
        %vm898 = vweird.f32 %v801
        %vm899 = vweird.f32 %v893
        %vm900 = vmor %vm898, %vm899
        %v901 = vsel %vm900, %v893, %v897
        %v902 = vand.u32 2147483647, %v801
        %vm903 = vcmp.eq.f32.partialorder %v902, 8.507059e+37
        %v904 = vand.u32 %v801, 2147483648
        %v905 = vor.u32 1.1754944e-38, %v904
        %v906 = vsel %vm903, %v905, %v901
        %v907 = vmul.f32 1.0, %v906
        %v908 = vrcp.pop %v802
        %v909 = vmul.f32 %v802, %v908
        %v910 = vsub.f32 1.0, %v909
        %v911 = vmul.f32 %v908, %v910
        %v912 = vadd.f32 %v908, %v911
        %vm913 = vweird.f32 %v802
        %vm914 = vweird.f32 %v908
        %vm915 = vmor %vm913, %vm914
        %v916 = vsel %vm915, %v908, %v912
        %v917 = vand.u32 2147483647, %v802
        %vm918 = vcmp.eq.f32.partialorder %v917, 8.507059e+37
        %v919 = vand.u32 %v802, 2147483648
        %v920 = vor.u32 1.1754944e-38, %v919
        %v921 = vsel %vm918, %v920, %v916
        %v922 = vmul.f32 1.0, %v921
        %v923 = vmul.f32 %v817, 1.0614054
        %v924 = vmul.f32 %v832, 1.0614054
        %v925 = vmul.f32 %v847, 1.0614054
        %v926 = vmul.f32 %v862, 1.0614054
        %v927 = vmul.f32 %v877, 1.0614054
        %v928 = vmul.f32 %v892, 1.0614054
        %v929 = vmul.f32 %v907, 1.0614054
        %v930 = vmul.f32 %v922, 1.0614054
        %v931 = vadd.f32 %v923, -1.4531521
        %v932 = vadd.f32 %v924, -1.4531521
        %v933 = vadd.f32 %v925, -1.4531521
        %v934 = vadd.f32 %v926, -1.4531521
        %v935 = vadd.f32 %v927, -1.4531521
        %v936 = vadd.f32 %v928, -1.4531521
        %v937 = vadd.f32 %v929, -1.4531521
        %v938 = vadd.f32 %v930, -1.4531521
        %v939 = vmul.f32 %v931, %v817
        %v940 = vmul.f32 %v932, %v832
        %v941 = vmul.f32 %v933, %v847
        %v942 = vmul.f32 %v934, %v862
        %v943 = vmul.f32 %v935, %v877
        %v944 = vmul.f32 %v936, %v892
        %v945 = vmul.f32 %v937, %v907
        %v946 = vmul.f32 %v938, %v922
        %v947 = vadd.f32 %v939, 1.4214138
        %v948 = vadd.f32 %v940, 1.4214138
        %v949 = vadd.f32 %v941, 1.4214138
        %v950 = vadd.f32 %v942, 1.4214138
        %v951 = vadd.f32 %v943, 1.4214138
        %v952 = vadd.f32 %v944, 1.4214138
        %v953 = vadd.f32 %v945, 1.4214138
        %v954 = vadd.f32 %v946, 1.4214138
        %v955 = vmul.f32 %v947, %v817
        %v956 = vmul.f32 %v948, %v832
        %v957 = vmul.f32 %v949, %v847
        %v958 = vmul.f32 %v950, %v862
        %v959 = vmul.f32 %v951, %v877
        %v960 = vmul.f32 %v952, %v892
        %v961 = vmul.f32 %v953, %v907
        %v962 = vmul.f32 %v954, %v922
        %v963 = vadd.f32 %v955, -0.28449672
        %v964 = vadd.f32 %v956, -0.28449672
        %v965 = vadd.f32 %v957, -0.28449672
        %v966 = vadd.f32 %v958, -0.28449672
        %v967 = vadd.f32 %v959, -0.28449672
        %v968 = vadd.f32 %v960, -0.28449672
        %v969 = vadd.f32 %v961, -0.28449672
        %v970 = vadd.f32 %v962, -0.28449672
        %v971 = vmul.f32 %v963, %v817
        %v972 = vmul.f32 %v964, %v832
        %v973 = vmul.f32 %v965, %v847
        %v974 = vmul.f32 %v966, %v862
        %v975 = vmul.f32 %v967, %v877
        %v976 = vmul.f32 %v968, %v892
        %v977 = vmul.f32 %v969, %v907
        %v978 = vmul.f32 %v970, %v922
        %v979 = vadd.f32 %v971, 0.2548296
        %v980 = vadd.f32 %v972, 0.2548296
        %v981 = vadd.f32 %v973, 0.2548296
        %v982 = vadd.f32 %v974, 0.2548296
        %v983 = vadd.f32 %v975, 0.2548296
        %v984 = vadd.f32 %v976, 0.2548296
        %v985 = vadd.f32 %v977, 0.2548296
        %v986 = vadd.f32 %v978, 0.2548296
        %v987 = vmul.f32 %v979, %v817
        %v988 = vmul.f32 %v980, %v832
        %v989 = vmul.f32 %v981, %v847
        %v990 = vmul.f32 %v982, %v862
        %v991 = vmul.f32 %v983, %v877
        %v992 = vmul.f32 %v984, %v892
        %v993 = vmul.f32 %v985, %v907
        %v994 = vmul.f32 %v986, %v922
        %v995 = vsub.f32 0.0, %v779
        %v996 = vsub.f32 0.0, %v780
        %v997 = vsub.f32 0.0, %v781
        %v998 = vsub.f32 0.0, %v782
        %v999 = vsub.f32 0.0, %v783
        %v1000 = vsub.f32 0.0, %v784
        %v1001 = vsub.f32 0.0, %v785
        %v1002 = vsub.f32 0.0, %v786
        %v1003 = vmul.f32 %v995, %v779
        %v1004 = vmul.f32 %v996, %v780
        %v1005 = vmul.f32 %v997, %v781
        %v1006 = vmul.f32 %v998, %v782
        %v1007 = vmul.f32 %v999, %v783
        %v1008 = vmul.f32 %v1000, %v784
        %v1009 = vmul.f32 %v1001, %v785
        %v1010 = vmul.f32 %v1002, %v786
        %v1011 = vmul.f32 %v1003, 1.442695
        %v1012 = vpow.pop %v1011
        %v1013 = vmul.f32 %v1004, 1.442695
        %v1014 = vpow.pop %v1013
        %v1015 = vmul.f32 %v1005, 1.442695
        %v1016 = vpow.pop %v1015
        %v1017 = vmul.f32 %v1006, 1.442695
        %v1018 = vpow.pop %v1017
        %v1019 = vmul.f32 %v1007, 1.442695
        %v1020 = vpow.pop %v1019
        %v1021 = vmul.f32 %v1008, 1.442695
        %v1022 = vpow.pop %v1021
        %v1023 = vmul.f32 %v1009, 1.442695
        %v1024 = vpow.pop %v1023
        %v1025 = vmul.f32 %v1010, 1.442695
        %v1026 = vpow.pop %v1025
        %v1027 = vmul.f32 %v987, %v1012
        %v1028 = vmul.f32 %v988, %v1014
        %v1029 = vmul.f32 %v989, %v1016
        %v1030 = vmul.f32 %v990, %v1018
        %v1031 = vmul.f32 %v991, %v1020
        %v1032 = vmul.f32 %v992, %v1022
        %v1033 = vmul.f32 %v993, %v1024
        %v1034 = vmul.f32 %v994, %v1026
        %v1035 = vsub.f32 1.0, %v1027
        %v1036 = vsub.f32 1.0, %v1028
        %v1037 = vsub.f32 1.0, %v1029
        %v1038 = vsub.f32 1.0, %v1030
        %v1039 = vsub.f32 1.0, %v1031
        %v1040 = vsub.f32 1.0, %v1032
        %v1041 = vsub.f32 1.0, %v1033
        %v1042 = vsub.f32 1.0, %v1034
        %vm1043 = vcmp.lt.f32.partialorder %v771, 0.0
        %vm1044 = vcmp.lt.f32.partialorder %v772, 0.0
        %vm1045 = vcmp.lt.f32.partialorder %v773, 0.0
        %vm1046 = vcmp.lt.f32.partialorder %v774, 0.0
        %vm1047 = vcmp.lt.f32.partialorder %v775, 0.0
        %vm1048 = vcmp.lt.f32.partialorder %v776, 0.0
        %vm1049 = vcmp.lt.f32.partialorder %v777, 0.0
        %vm1050 = vcmp.lt.f32.partialorder %v778, 0.0
        %v1051 = vsub.f32 0.0, %v1035
        %v1052 = vsub.f32 0.0, %v1036
        %v1053 = vsub.f32 0.0, %v1037
        %v1054 = vsub.f32 0.0, %v1038
        %v1055 = vsub.f32 0.0, %v1039
        %v1056 = vsub.f32 0.0, %v1040
        %v1057 = vsub.f32 0.0, %v1041
        %v1058 = vsub.f32 0.0, %v1042
        %v1059 = vsel %vm1043, %v1051, %v1035
        %v1060 = vsel %vm1044, %v1052, %v1036
        %v1061 = vsel %vm1045, %v1053, %v1037
        %v1062 = vsel %vm1046, %v1054, %v1038
        %v1063 = vsel %vm1047, %v1055, %v1039
        %v1064 = vsel %vm1048, %v1056, %v1040
        %v1065 = vsel %vm1049, %v1057, %v1041
        %v1066 = vsel %vm1050, %v1058, %v1042
        %v1067 = vadd.f32 %v1059, 1.0
        %v1068 = vadd.f32 %v1060, 1.0
        %v1069 = vadd.f32 %v1061, 1.0
        %v1070 = vadd.f32 %v1062, 1.0
        %v1071 = vadd.f32 %v1063, 1.0
        %v1072 = vadd.f32 %v1064, 1.0
        %v1073 = vadd.f32 %v1065, 1.0
        %v1074 = vadd.f32 %v1066, 1.0
        %v1075 = vmul.f32 %v763, %v1067
        %v1076 = vmul.f32 %v764, %v1068
        %v1077 = vmul.f32 %v765, %v1069
        %v1078 = vmul.f32 %v766, %v1070
        %v1079 = vmul.f32 %v767, %v1071
        %v1080 = vmul.f32 %v768, %v1072
        %v1081 = vmul.f32 %v769, %v1073
        %v1082 = vmul.f32 %v770, %v1074
        %1091 = vrot.lane.b32.xlu0 %v755, 96
        %v1092 = vpop.permute.xlu0 %1091
        %1093 = vrot.lane.b32.xlu0 %v756, 96
        %v1094 = vpop.permute.xlu0 %1093
        %1095 = vrot.lane.b32.xlu0 %v757, 96
        %v1096 = vpop.permute.xlu0 %1095
        %1097 = vrot.lane.b32.xlu0 %v758, 96
        %v1098 = vpop.permute.xlu0 %1097
        %1099 = vrot.lane.b32.xlu0 %v759, 96
        %v1100 = vpop.permute.xlu0 %1099
        %1101 = vrot.lane.b32.xlu0 %v760, 96
        %v1102 = vpop.permute.xlu0 %1101
        %1103 = vrot.lane.b32.xlu0 %v761, 96
        %v1104 = vpop.permute.xlu0 %1103
        %1105 = vrot.lane.b32.xlu0 %v762, 96
        %v1106 = vpop.permute.xlu0 %1105
        %v1115 = vmul.f32 %v1075, %v1092
        %v1116 = vmul.f32 %v1076, %v1094
        %v1117 = vmul.f32 %v1077, %v1096
        %v1118 = vmul.f32 %v1078, %v1098
        %v1119 = vmul.f32 %v1079, %v1100
        %v1120 = vmul.f32 %v1080, %v1102
        %v1121 = vmul.f32 %v1081, %v1104
        %v1122 = vmul.f32 %v1082, %v1106
        %vm1123 = vcmask 261120
        %1124 = vst.msk [vmem:[%s185] sm:$0xff] %vm1123, %v1115
        %1125 = vst.msk [vmem:[%s185 + $0x8] sm:$0xff] %vm1123, %v1116
        %1126 = vst.msk [vmem:[%s185 + $0x10] sm:$0xff] %vm1123, %v1117
        %1127 = vst.msk [vmem:[%s185 + $0x18] sm:$0xff] %vm1123, %v1118
        %1128 = vst.msk [vmem:[%s185 + $0x20] sm:$0xff] %vm1123, %v1119
        %1129 = vst.msk [vmem:[%s185 + $0x28] sm:$0xff] %vm1123, %v1120
        %1130 = vst.msk [vmem:[%s185 + $0x30] sm:$0xff] %vm1123, %v1121
        %1131 = vst.msk [vmem:[%s185 + $0x38] sm:$0xff] %vm1123, %v1122
        %p1132 = scmp.lt.s32.totalorder %s15, 1
        %s1133 = scalar_select %p1132, %s15, 1
        %s1134 = smul.addr %s1133, 8
        %s1135 = smul.addr %s1134, 8
        %s1136 = scalar_lea.vmem %s3, %s1135
        // Predicated region
        $region37: #{transformer_block.10} parent=31 // pred_check
          %p1137 = pneg %p101
        $region38: #{transformer_block.10} parent=31 // pred_check_branch
          %1139 = sbr.rel (%p1137) target = $region40
        $region39: #{transformer_block.10} parent=31 // pred_region
          _
        $region40: #{transformer_block.10} parent=31 // pred_fallthru
          _
      $region32: #{transformer_block.10} parent=5 // pred_fallthru
        _
      %p1140 = scmp.le.s32.totalorder 2, %s10
      // Predicated region
      $region41: #{transformer_block.10} parent=5 // pred_check
        %p1141 = pneg %p1140
      $region42: #{transformer_block.10} parent=5 // pred_check_branch
        %1143 = sbr.rel (%p1141) target = $region44
      $region43: #{transformer_block.10} parent=5 // pred_region
        %s1144 = ssub.s32 %s10, 2
        // Predicated region
        $region45: #{transformer_block.10} parent=43 // pred_check
          %p1145 = pneg %p107
        $region46: #{transformer_block.10} parent=43 // pred_check_branch
          %1147 = sbr.rel (%p1145) target = $region48
        $region47: #{transformer_block.10} parent=43 // pred_region
          %p1148 = scmp.lt.s32.totalorder %s16, 1
          %s1149 = scalar_select %p1148, %s16, 1
          %s1150 = smul.addr %s1149, 8
          %s1151 = smul.addr %s1150, 8
          %s1152 = scalar_lea.vmem %s3, %s1151
        $region48: #{transformer_block.10} parent=43 // pred_fallthru
          _
      $region44: #{transformer_block.10} parent=5 // pred_fallthru
        _
    $region6: #{transformer_block.10} parent=1 // loop_footer
      %s14 = sadd.s32 1, %s10
    $region7: #{transformer_block.10} parent=1 // loop_footer_branch
      %9 = sbr.rel target = $region3
    $region8: #{transformer_block.10} parent=1 // loop_exit
      _
    %1153 = vsyncpa [#allocation4], 1
    %s1154 = scalar_lea.sflag [#allocation4], 1
    %1155 = vsyncpa %s1154, 1

</llo_original>
